<compile_context>
chip_gen: v6e
topology: v6e:2x2x1
jax: 0.10.0
libtpu: 0.0.40
codegen_flags: <defaults>
</compile_context>

<pallas_src>
import collections
import functools

import jax
import jax.numpy as jnp
from jax.experimental import pallas as pl
from jax.experimental.pallas import tpu as pltpu


INTERMEDIATE_DIM = 256

_CFG = collections.namedtuple(
    "_CFG",
    ["orig", "orig_pad", "inter", "latent", "lat_pad", "tb",
     "sigmoid_bf16", "weights_buf1"])

_FAST_PATH_OK = None   # None = unknown, True/False once probed on this process


def _round_up(x, m):
    return ((x + m - 1) // m) * m


def _bf16_eup_ok():
    """bf16 sigmoid only where the EUP runs bf16 (not v5-class chips)."""
    try:
        kind = jax.devices()[0].device_kind.lower()
        return "v5" not in kind
    except Exception:
        return False


def _choose_tb(B):
    """Batch-tile rows: multiple of 16, big enough to amortize per-step overhead,
    >=2 grid steps when possible (v7x megacore), minimal batch padding."""
    B16 = _round_up(max(B, 1), 16)
    if B16 <= 128:
        return B16                                   # single small tile
    if B16 <= 2048:
        half = _round_up((B16 + 1) // 2, 16)         # two (or few) big tiles
        return min(half, 1024)
    best_tb, best_key = 1024, None                   # very large batch
    for tb in (1024, 896, 768, 640, 512):
        key = (_round_up(B, tb) - B, -tb)            # minimize padding, prefer big
        if best_key is None or key < best_key:
            best_tb, best_key = tb, key
    return best_tb


# ----------------------------------------------------------------------------
# Kernel (one batch tile per grid step; all weights resident in VMEM)
# ----------------------------------------------------------------------------
def _vae_kernel(valid_rows_last, lat_pad, sigmoid_bf16,
                x_ref, eps_ref,
                w1_ref, w2_ref, wh_ref, wd1_ref, wd2_ref,
                b3_ref, bh_ref, bd2_ref,
                mean_ref, recon_ref, kl_ref):
    f32, bf16 = jnp.float32, jnp.bfloat16

    x = x_ref[...]                               # (tb, orig_pad) bf16
    b3 = b3_ref[...]                             # (3, inter)     f32: rows = b1, b2, bd1

    # Encoder: Linear -> ReLU -> Linear -> ReLU   (bf16 MXU, f32 accumulate)
    h = jnp.dot(x, w1_ref[...], preferred_element_type=f32) + b3[0:1, :]
    h = jnp.maximum(h, 0.0)
    h = jnp.dot(h.astype(bf16), w2_ref[...], preferred_element_type=f32) + b3[1:2, :]
    h = jnp.maximum(h, 0.0)

    # Fused latent heads: one matmul produces [mean | log_var], each lat_pad wide
    heads = jnp.dot(h.astype(bf16), wh_ref[...], preferred_element_type=f32) + bh_ref[...]
    mean = heads[:, :lat_pad]
    log_var = heads[:, lat_pad:]

    # Reparameterization: z = mu + eps * exp(log_var / 2)
    std = jnp.exp(0.5 * log_var)
    z = mean + eps_ref[...].astype(f32) * std

    # Decoder: Linear -> ReLU -> Linear -> Sigmoid
    d = jnp.dot(z.astype(bf16), wd1_ref[...], preferred_element_type=f32) + b3[2:3, :]
    d = jnp.maximum(d, 0.0)
    logits = jnp.dot(d.astype(bf16), wd2_ref[...], preferred_element_type=f32) + bd2_ref[...]
    if sigmoid_bf16:
        recon = jax.nn.sigmoid(logits.astype(bf16))      # bf16 EUP (v6e/v7x)
    else:
        recon = jax.nn.sigmoid(logits)                   # f32 EUP (v5e)

    mean_ref[...] = mean.astype(mean_ref.dtype)          # bf16, lane-dense store
    recon_ref[...] = recon.astype(recon_ref.dtype)       # bf16, lane-dense store

    # KL partial for this tile: -0.5 * sum(1 + lv - mu^2 - exp(lv)).
    # Padded latent lanes contribute exactly 0 (mean=lv=0 -> 1+0-0-1 = 0).
    kl_terms = 1.0 + log_var - mean * mean - std * std
    row_sum = jnp.sum(kl_terms, axis=1, keepdims=True)   # (tb, 1) f32
    tb = row_sum.shape[0]

    def _store(rs):
        kl_ref[...] = jnp.full((1, 8, 128), -0.5 * jnp.sum(rs), dtype=f32)

    if valid_rows_last == tb:
        _store(row_sum)                                  # no padded batch rows at all
    else:
        last = pl.num_programs(0) - 1

        @pl.when(pl.program_id(0) != last)
        def _():
            _store(row_sum)

        @pl.when(pl.program_id(0) == last)               # only the last tile has pad rows
        def _():
            row_ids = jax.lax.broadcasted_iota(jnp.int32, (tb, 1), 0)
            _store(jnp.where(row_ids < valid_rows_last, row_sum, 0.0))


# ----------------------------------------------------------------------------
# One-time parameter packing (hoisted out of the per-call path)
# ----------------------------------------------------------------------------
def prepare_vae_params(params):
    orig, inter = params["w1"].shape
    latent = params["wm"].shape[1]
    lat_pad = _round_up(latent, 128)
    orig_pad = _round_up(orig, 128)
    bf16 = jnp.bfloat16

    pad_to = lambda a, r, c: jnp.pad(a, ((0, r - a.shape[0]), (0, c - a.shape[1])))

    packed = dict(
        w1=pad_to(params["w1"], orig_pad, inter).astype(bf16),          # (orig_pad, inter)
        w2=params["w2"].astype(bf16),                                   # (inter, inter)
        wh=jnp.concatenate([pad_to(params["wm"], inter, lat_pad),       # (inter, 2*lat_pad)
                            pad_to(params["wv"], inter, lat_pad)], axis=1).astype(bf16),
        wd1=pad_to(params["wd1"], lat_pad, inter).astype(bf16),         # (lat_pad, inter)
        wd2=pad_to(params["wd2"], inter, orig_pad).astype(bf16),        # (inter, orig_pad)
        b3=jnp.concatenate([params["b1"], params["b2"], params["bd1"]], axis=0),  # (3, inter) f32
        bh=jnp.concatenate([pad_to(params["bm"], 1, lat_pad),           # (1, 2*lat_pad) f32
                            pad_to(params["bv"], 1, lat_pad)], axis=1),
        bd2=pad_to(params["bd2"], 1, orig_pad),                         # (1, orig_pad) f32
    )
    meta = dict(orig=orig, orig_pad=orig_pad, inter=inter, latent=latent, lat_pad=lat_pad)
    return packed, meta


# ----------------------------------------------------------------------------
# Jitted forward (static config) + public wrapper with a safe fallback path
# ----------------------------------------------------------------------------
@functools.partial(jax.jit, static_argnames=("cfg",))
def _vae_forward_impl(x, eps, packed, *, cfg):
    B = x.shape[0]
    tb = cfg.tb
    bp = _round_up(B, tb)
    grid = bp // tb
    valid_rows_last = B - (grid - 1) * tb

    bf16 = jnp.bfloat16
    x_p = jnp.pad(x, ((0, bp - B), (0, cfg.orig_pad - cfg.orig))).astype(bf16)
    eps_p = jnp.pad(eps, ((0, bp - B), (0, cfg.lat_pad - cfg.latent))).astype(bf16)

    row = lambda i: (i, 0)
    const = lambda i: (0, 0)
    wkw = dict(pipeline_mode=pl.Buffered(1)) if cfg.weights_buf1 else {}
    wspec = lambda shape: pl.BlockSpec(shape, const, **wkw)              # resident weights

    weight_elems = (cfg.orig_pad * cfg.inter + cfg.inter * cfg.inter
                    + cfg.inter * 2 * cfg.lat_pad + cfg.lat_pad * cfg.inter
                    + cfg.inter * cfg.orig_pad)
    flops = 2 * bp * weight_elems
    transcendentals = bp * (cfg.lat_pad + 2 * cfg.orig_pad)              # exp + sigmoid(exp,recip)
    bytes_accessed = (bp * cfg.orig_pad * 2 + bp * cfg.lat_pad * 2       # x, eps (bf16)
                      + 2 * weight_elems                                 # bf16 weights
                      + 4 * (3 * cfg.inter + 2 * cfg.lat_pad + cfg.orig_pad)  # f32 biases
                      + bp * cfg.lat_pad * 2 + bp * cfg.orig_pad * 2     # bf16 outputs
                      + grid * 8 * 128 * 4)                              # KL partials

    kernel = functools.partial(_vae_kernel, valid_rows_last, cfg.lat_pad, cfg.sigmoid_bf16)

    mean_p, recon_p, kl_blocks = pl.pallas_call(
        kernel,
        out_shape=(
            jax.ShapeDtypeStruct((bp, cfg.lat_pad), bf16),               # mean (padded, bf16)
            jax.ShapeDtypeStruct((bp, cfg.orig_pad), bf16),              # reconstruction (bf16)
            jax.ShapeDtypeStruct((grid, 8, 128), jnp.float32),           # per-block KL partials
        ),
        grid_spec=pltpu.PrefetchScalarGridSpec(
            num_scalar_prefetch=0,
            grid=(grid,),
            in_specs=[
                pl.BlockSpec((tb, cfg.orig_pad), row),                   # x tile
                pl.BlockSpec((tb, cfg.lat_pad), row),                    # eps tile
                wspec((cfg.orig_pad, cfg.inter)),                        # w1
                wspec((cfg.inter, cfg.inter)),                           # w2
                wspec((cfg.inter, 2 * cfg.lat_pad)),                     # [wm|wv]
                wspec((cfg.lat_pad, cfg.inter)),                         # wd1
                wspec((cfg.inter, cfg.orig_pad)),                        # wd2
                wspec((3, cfg.inter)),                                   # [b1;b2;bd1]
                wspec((1, 2 * cfg.lat_pad)),                             # [bm|bv]
                wspec((1, cfg.orig_pad)),                                # bd2
            ],
            out_specs=(
                pl.BlockSpec((tb, cfg.lat_pad), row),
                pl.BlockSpec((tb, cfg.orig_pad), row),
                pl.BlockSpec((1, 8, 128), lambda i: (i, 0, 0)),
            ),
        ),
        compiler_params=pltpu.CompilerParams(
            dimension_semantics=("parallel",)),
        cost_estimate=pl.CostEstimate(
            flops=flops,
            transcendentals=transcendentals,
            bytes_accessed=bytes_accessed),
    )(x_p, eps_p, packed["w1"], packed["w2"], packed["wh"], packed["wd1"],
      packed["wd2"], packed["b3"], packed["bh"], packed["bd2"])

    mean = mean_p[:B, :cfg.latent]       # bf16 (cast to f32 downstream if needed)
    recon = recon_p[:B, :cfg.orig]       # bf16
    kl = jnp.sum(kl_blocks[:, 0, 0])     # f32 scalar
    return mean, recon, kl


def vae_forward(x, eps, packed, meta):
    """Returns (mean, reconstruction, kl_loss) — same math as VAE.forward."""
    global _FAST_PATH_OK
    base = dict(orig=meta["orig"], orig_pad=meta["orig_pad"], inter=meta["inter"],
                latent=meta["latent"], lat_pad=meta["lat_pad"], tb=_choose_tb(x.shape[0]))
    if _FAST_PATH_OK is not False:
        try:
            out = _vae_forward_impl(
                x, eps, packed,
                cfg=_CFG(**base, sigmoid_bf16=_bf16_eup_ok(), weights_buf1=True))
            _FAST_PATH_OK = True
            return out
        except Exception:
            _FAST_PATH_OK = False   # fall back to the previously-validated config
    return _vae_forward_impl(
        x, eps, packed, cfg=_CFG(**base, sigmoid_bf16=False, weights_buf1=False))


# ----------------------------------------------------------------------------
# Deterministic parameter init (mirrors nn.Linear's uniform(-1/sqrt(fan_in), .))
# ----------------------------------------------------------------------------
def _linear_params(key, fan_in, fan_out):
    kw, kb = jax.random.split(key)
    bound = 1.0 / jnp.sqrt(jnp.float32(fan_in))
    # stored as (in, out): kernel computes x @ W  (== x @ W_pytorch.T)
    w = jax.random.uniform(kw, (fan_in, fan_out), jnp.float32, -bound, bound)
    b = jax.random.uniform(kb, (1, fan_out), jnp.float32, -bound, bound)
    return w, b


def init_vae_params(key, latent_dim, W, H):
    original_dim = W * H
    intermediate_dim = INTERMEDIATE_DIM
    keys = jax.random.split(key, 6)
    w1, b1 = _linear_params(keys[0], original_dim, intermediate_dim)
    w2, b2 = _linear_params(keys[1], intermediate_dim, intermediate_dim)
    wm, bm = _linear_params(keys[2], intermediate_dim, latent_dim)
    wv, bv = _linear_params(keys[3], intermediate_dim, latent_dim)
    wd1, bd1 = _linear_params(keys[4], latent_dim, intermediate_dim)
    wd2, bd2 = _linear_params(keys[5], intermediate_dim, original_dim)
    return dict(w1=w1, b1=b1, w2=w2, b2=b2, wm=wm, bm=bm, wv=wv, bv=bv,
                wd1=wd1, bd1=bd1, wd2=wd2, bd2=bd2)


# ----------------------------------------------------------------------------
# Pure-JAX f32 reference for a correctness sanity check
# ----------------------------------------------------------------------------
def vae_forward_ref(x, eps, p):
    h = jnp.maximum(x @ p["w1"] + p["b1"], 0.0)
    h = jnp.maximum(h @ p["w2"] + p["b2"], 0.0)
    mean = h @ p["wm"] + p["bm"]
    log_var = h @ p["wv"] + p["bv"]
    z = mean + eps * jnp.exp(log_var * 0.5)
    d = jnp.maximum(z @ p["wd1"] + p["bd1"], 0.0)
    recon = jax.nn.sigmoid(d @ p["wd2"] + p["bd2"])
    kl = -0.5 * jnp.sum(1.0 + log_var - mean**2 - jnp.exp(log_var))
    return mean, recon, kl


if __name__ == "__main__":
    key = jax.random.PRNGKey(0)
    k_param, k_x, k_eps = jax.random.split(key, 3)

    # Small shapes consistent with the module: x is (B, W*H)
    W, H = 16, 16
    latent_dim = 16
    B = 8

    params = init_vae_params(k_param, latent_dim, W, H)
    packed, meta = prepare_vae_params(params)           # one-time packing

    x = jax.random.uniform(k_x, (B, W * H), jnp.float32)           # flattened "image"
    eps = jax.random.normal(k_eps, (B, latent_dim), jnp.float32)   # reparameterization noise

    mean, recon, kl = vae_forward(x, eps, packed, meta)
    jax.block_until_ready((mean, recon, kl))

    # Sanity check against the f32 reference (kernel matmuls/outputs are bf16).
    mean_r, recon_r, kl_r = vae_forward_ref(x, eps, params)
    assert mean.shape == (B, latent_dim)
    assert recon.shape == (B, W * H)
    assert jnp.allclose(mean.astype(jnp.float32), mean_r, atol=2e-2, rtol=2e-2), "mean mismatch"
    assert jnp.allclose(recon.astype(jnp.float32), recon_r, atol=2e-2, rtol=2e-2), "recon mismatch"
    assert jnp.allclose(kl, kl_r, atol=0.1, rtol=0.05), "kl mismatch"

    print("KERNEL_OK")
</pallas_src>

<mosaic_0001>
module attributes {stable_mosaic.version = 11 : i64} {
  func.func @_vae_kernel(%arg0: i32, %arg1: memref<16x256xbf16, #tpu.memory_space<vmem>>, %arg2: memref<16x128xbf16, #tpu.memory_space<vmem>>, %arg3: memref<256x256xbf16, #tpu.memory_space<vmem>>, %arg4: memref<256x256xbf16, #tpu.memory_space<vmem>>, %arg5: memref<256x256xbf16, #tpu.memory_space<vmem>>, %arg6: memref<128x256xbf16, #tpu.memory_space<vmem>>, %arg7: memref<256x256xbf16, #tpu.memory_space<vmem>>, %arg8: memref<3x256xf32, #tpu.memory_space<vmem>>, %arg9: memref<1x256xf32, #tpu.memory_space<vmem>>, %arg10: memref<1x256xf32, #tpu.memory_space<vmem>>, %arg11: memref<16x128xbf16, #tpu.memory_space<vmem>>, %arg12: memref<16x256xbf16, #tpu.memory_space<vmem>>, %arg13: memref<1x8x128xf32, #tpu.memory_space<vmem>>) attributes {dimension_semantics = [#tpu.dimension_semantics<parallel>], iteration_bounds = array<i64: 1>, scalar_prefetch = 0 : i64, scratch_operands = 0 : i64, tpu.core_type = #tpu.core_type<tc>, window_params = [{transform_indices = @transform_0, window_bounds = array<i64: 16, 256>}, {transform_indices = @transform_1, window_bounds = array<i64: 16, 128>}, {pipeline_mode = #tpu.pipeline_mode<synchronous>, transform_indices = @transform_2, window_bounds = array<i64: 256, 256>}, {pipeline_mode = #tpu.pipeline_mode<synchronous>, transform_indices = @transform_3, window_bounds = array<i64: 256, 256>}, {pipeline_mode = #tpu.pipeline_mode<synchronous>, transform_indices = @transform_4, window_bounds = array<i64: 256, 256>}, {pipeline_mode = #tpu.pipeline_mode<synchronous>, transform_indices = @transform_5, window_bounds = array<i64: 128, 256>}, {pipeline_mode = #tpu.pipeline_mode<synchronous>, transform_indices = @transform_6, window_bounds = array<i64: 256, 256>}, {pipeline_mode = #tpu.pipeline_mode<synchronous>, transform_indices = @transform_7, window_bounds = array<i64: 3, 256>}, {pipeline_mode = #tpu.pipeline_mode<synchronous>, transform_indices = @transform_8, window_bounds = array<i64: 1, 256>}, {pipeline_mode = #tpu.pipeline_mode<synchronous>, transform_indices = @transform_9, window_bounds = array<i64: 1, 256>}, {transform_indices = @transform_10, window_bounds = array<i64: 16, 128>}, {transform_indices = @transform_11, window_bounds = array<i64: 16, 256>}, {transform_indices = @transform_12, window_bounds = array<i64: 1, 8, 128>}]} {
    %c0 = arith.constant 0 : index
    %c0_0 = arith.constant 0 : index
    %0 = vector.load %arg1[%c0, %c0_0] : memref<16x256xbf16, #tpu.memory_space<vmem>>, vector<16x256xbf16>
    %c0_1 = arith.constant 0 : index
    %c0_2 = arith.constant 0 : index
    %1 = vector.load %arg8[%c0_1, %c0_2] : memref<3x256xf32, #tpu.memory_space<vmem>>, vector<3x256xf32>
    %c0_3 = arith.constant 0 : index
    %c0_4 = arith.constant 0 : index
    %2 = vector.load %arg3[%c0_3, %c0_4] : memref<256x256xbf16, #tpu.memory_space<vmem>>, vector<256x256xbf16>
    %cst = arith.constant dense<0.000000e+00> : vector<16x256xf32>
    %3 = tpu.matmul %0, %2, %cst {dimension_numbers = #tpu.dot_dimension_numbers<[1], [0], [0], [1], [0, 0, 1, 1], [], []>} : vector<16x256xbf16>, vector<256x256xbf16>, vector<16x256xf32> -> vector<16x256xf32>
    %4 = vector.extract_strided_slice %1 {offsets = [0, 0], sizes = [1, 256], strides = [1, 1]} : vector<3x256xf32> to vector<1x256xf32>
    %5 = vector.broadcast %4 : vector<1x256xf32> to vector<16x256xf32>
    %6 = arith.addf %3, %5 : vector<16x256xf32>
    %cst_5 = arith.constant 0.000000e+00 : f32
    %7 = vector.broadcast %cst_5 : f32 to vector<16x256xf32>
    %8 = arith.maximumf %6, %7 : vector<16x256xf32>
    %9 = arith.truncf %8 : vector<16x256xf32> to vector<16x256xbf16>
    %c0_6 = arith.constant 0 : index
    %c0_7 = arith.constant 0 : index
    %10 = vector.load %arg4[%c0_6, %c0_7] : memref<256x256xbf16, #tpu.memory_space<vmem>>, vector<256x256xbf16>
    %cst_8 = arith.constant dense<0.000000e+00> : vector<16x256xf32>
    %11 = tpu.matmul %9, %10, %cst_8 {dimension_numbers = #tpu.dot_dimension_numbers<[1], [0], [0], [1], [0, 0, 1, 1], [], []>} : vector<16x256xbf16>, vector<256x256xbf16>, vector<16x256xf32> -> vector<16x256xf32>
    %12 = vector.extract_strided_slice %1 {offsets = [1, 0], sizes = [1, 256], strides = [1, 1]} : vector<3x256xf32> to vector<1x256xf32>
    %13 = vector.broadcast %12 : vector<1x256xf32> to vector<16x256xf32>
    %14 = arith.addf %11, %13 : vector<16x256xf32>
    %cst_9 = arith.constant 0.000000e+00 : f32
    %15 = vector.broadcast %cst_9 : f32 to vector<16x256xf32>
    %16 = arith.maximumf %14, %15 : vector<16x256xf32>
    %17 = arith.truncf %16 : vector<16x256xf32> to vector<16x256xbf16>
    %c0_10 = arith.constant 0 : index
    %c0_11 = arith.constant 0 : index
    %18 = vector.load %arg5[%c0_10, %c0_11] : memref<256x256xbf16, #tpu.memory_space<vmem>>, vector<256x256xbf16>
    %cst_12 = arith.constant dense<0.000000e+00> : vector<16x256xf32>
    %19 = tpu.matmul %17, %18, %cst_12 {dimension_numbers = #tpu.dot_dimension_numbers<[1], [0], [0], [1], [0, 0, 1, 1], [], []>} : vector<16x256xbf16>, vector<256x256xbf16>, vector<16x256xf32> -> vector<16x256xf32>
    %c0_13 = arith.constant 0 : index
    %c0_14 = arith.constant 0 : index
    %20 = vector.load %arg9[%c0_13, %c0_14] : memref<1x256xf32, #tpu.memory_space<vmem>>, vector<1x256xf32>
    %21 = vector.broadcast %20 : vector<1x256xf32> to vector<16x256xf32>
    %22 = arith.addf %19, %21 : vector<16x256xf32>
    %23 = vector.extract_strided_slice %22 {offsets = [0, 0], sizes = [16, 128], strides = [1, 1]} : vector<16x256xf32> to vector<16x128xf32>
    %24 = vector.extract_strided_slice %22 {offsets = [0, 128], sizes = [16, 128], strides = [1, 1]} : vector<16x256xf32> to vector<16x128xf32>
    %cst_15 = arith.constant 5.000000e-01 : f32
    %25 = vector.broadcast %cst_15 : f32 to vector<16x128xf32>
    %26 = arith.mulf %25, %24 : vector<16x128xf32>
    %27 = math.exp %26 : vector<16x128xf32>
    %c0_16 = arith.constant 0 : index
    %c0_17 = arith.constant 0 : index
    %28 = vector.load %arg2[%c0_16, %c0_17] : memref<16x128xbf16, #tpu.memory_space<vmem>>, vector<16x128xbf16>
    %29 = arith.extf %28 : vector<16x128xbf16> to vector<16x128xf32>
    %30 = arith.mulf %29, %27 : vector<16x128xf32>
    %31 = arith.addf %23, %30 : vector<16x128xf32>
    %32 = arith.truncf %31 : vector<16x128xf32> to vector<16x128xbf16>
    %c0_18 = arith.constant 0 : index
    %c0_19 = arith.constant 0 : index
    %33 = vector.load %arg6[%c0_18, %c0_19] : memref<128x256xbf16, #tpu.memory_space<vmem>>, vector<128x256xbf16>
    %cst_20 = arith.constant dense<0.000000e+00> : vector<16x256xf32>
    %34 = tpu.matmul %32, %33, %cst_20 {dimension_numbers = #tpu.dot_dimension_numbers<[1], [0], [0], [1], [0, 0, 1, 1], [], []>} : vector<16x128xbf16>, vector<128x256xbf16>, vector<16x256xf32> -> vector<16x256xf32>
    %35 = vector.extract_strided_slice %1 {offsets = [2, 0], sizes = [1, 256], strides = [1, 1]} : vector<3x256xf32> to vector<1x256xf32>
    %36 = vector.broadcast %35 : vector<1x256xf32> to vector<16x256xf32>
    %37 = arith.addf %34, %36 : vector<16x256xf32>
    %cst_21 = arith.constant 0.000000e+00 : f32
    %38 = vector.broadcast %cst_21 : f32 to vector<16x256xf32>
    %39 = arith.maximumf %37, %38 : vector<16x256xf32>
    %40 = arith.truncf %39 : vector<16x256xf32> to vector<16x256xbf16>
    %c0_22 = arith.constant 0 : index
    %c0_23 = arith.constant 0 : index
    %41 = vector.load %arg7[%c0_22, %c0_23] : memref<256x256xbf16, #tpu.memory_space<vmem>>, vector<256x256xbf16>
    %cst_24 = arith.constant dense<0.000000e+00> : vector<16x256xf32>
    %42 = tpu.matmul %40, %41, %cst_24 {dimension_numbers = #tpu.dot_dimension_numbers<[1], [0], [0], [1], [0, 0, 1, 1], [], []>} : vector<16x256xbf16>, vector<256x256xbf16>, vector<16x256xf32> -> vector<16x256xf32>
    %c0_25 = arith.constant 0 : index
    %c0_26 = arith.constant 0 : index
    %43 = vector.load %arg10[%c0_25, %c0_26] : memref<1x256xf32, #tpu.memory_space<vmem>>, vector<1x256xf32>
    %44 = vector.broadcast %43 : vector<1x256xf32> to vector<16x256xf32>
    %45 = arith.addf %42, %44 : vector<16x256xf32>
    %46 = arith.truncf %45 : vector<16x256xf32> to vector<16x256xbf16>
    %47 = arith.negf %46 : vector<16x256xbf16>
    %48 = math.exp %47 : vector<16x256xbf16>
    %cst_27 = arith.constant 1.000000e+00 : bf16
    %49 = vector.broadcast %cst_27 : bf16 to vector<16x256xbf16>
    %50 = arith.addf %49, %48 : vector<16x256xbf16>
    %51 = arith.divf %49, %50 : vector<16x256xbf16>
    %52 = arith.truncf %23 : vector<16x128xf32> to vector<16x128xbf16>
    %c0_28 = arith.constant 0 : index
    %c0_29 = arith.constant 0 : index
    %53 = vector.load %arg11[%c0_28, %c0_29] : memref<16x128xbf16, #tpu.memory_space<vmem>>, vector<16x128xbf16>
    tpu.vector_store %arg11[%c0_28, %c0_29], %52 {strides = array<i32>} : memref<16x128xbf16, #tpu.memory_space<vmem>>, vector<16x128xbf16>,
    %c0_30 = arith.constant 0 : index
    %c0_31 = arith.constant 0 : index
    %54 = vector.load %arg12[%c0_30, %c0_31] : memref<16x256xbf16, #tpu.memory_space<vmem>>, vector<16x256xbf16>
    tpu.vector_store %arg12[%c0_30, %c0_31], %51 {strides = array<i32>} : memref<16x256xbf16, #tpu.memory_space<vmem>>, vector<16x256xbf16>,
    %cst_32 = arith.constant 1.000000e+00 : f32
    %55 = vector.broadcast %cst_32 : f32 to vector<16x128xf32>
    %56 = arith.addf %55, %24 : vector<16x128xf32>
    %57 = arith.mulf %23, %23 : vector<16x128xf32>
    %58 = arith.subf %56, %57 : vector<16x128xf32>
    %59 = arith.mulf %27, %27 : vector<16x128xf32>
    %60 = arith.subf %58, %59 : vector<16x128xf32>
    %cst_33 = arith.constant dense<0.000000e+00> : vector<16xf32>
    %61 = vector.multi_reduction <add>, %60, %cst_33 [1] : vector<16x128xf32> to vector<16xf32>
    %62 = vector.shape_cast %61 : vector<16xf32> to vector<16x1xf32>
    %c0_i32 = arith.constant 0 : i32
    %63 = arith.cmpi ne, %arg0, %c0_i32 : i32
    %64 = arith.extui %63 : i1 to i32
    %c0_i32_34 = arith.constant 0 : i32
    %65 = arith.cmpi ne, %64, %c0_i32_34 : i32
    scf.if %65 {
      %69 = vector.shape_cast %62 : vector<16x1xf32> to vector<1x16x1xf32>
      %cst_37 = arith.constant dense<0.000000e+00> : vector<1xf32>
      %70 = vector.multi_reduction <add>, %69, %cst_37 [1, 2] : vector<1x16x1xf32> to vector<1xf32>
      %71 = vector.shape_cast %70 : vector<1xf32> to vector<1x1x1xf32>
      %72 = vector.extract %71[0, 0, 0] : f32 from vector<1x1x1xf32>
      %cst_38 = arith.constant -5.000000e-01 : f32
      %73 = arith.mulf %cst_38, %72 : f32
      %74 = vector.broadcast %73 : f32 to vector<1x8x128xf32>
      %c0_39 = arith.constant 0 : index
      %c0_40 = arith.constant 0 : index
      %c0_41 = arith.constant 0 : index
      %75 = vector.load %arg13[%c0_39, %c0_40, %c0_41] : memref<1x8x128xf32, #tpu.memory_space<vmem>>, vector<1x8x128xf32>
      tpu.vector_store %arg13[%c0_39, %c0_40, %c0_41], %74 {strides = array<i32>} : memref<1x8x128xf32, #tpu.memory_space<vmem>>, vector<1x8x128xf32>,
    } else {
    }
    %c0_i32_35 = arith.constant 0 : i32
    %66 = arith.cmpi eq, %arg0, %c0_i32_35 : i32
    %67 = arith.extui %66 : i1 to i32
    %c0_i32_36 = arith.constant 0 : i32
    %68 = arith.cmpi ne, %67, %c0_i32_36 : i32
    scf.if %68 {
      %69 = tpu.iota {dimensions = array<i32: 0>} : vector<16x1xi32>
      %c8_i32 = arith.constant 8 : i32
      %70 = vector.broadcast %c8_i32 : i32 to vector<16x1xi32>
      %71 = arith.cmpi slt, %69, %70 : vector<16x1xi32>
      %cst_37 = arith.constant 0.000000e+00 : f32
      %72 = vector.broadcast %cst_37 : f32 to vector<16x1xf32>
      %73 = arith.select %71, %62, %72 : vector<16x1xi1>, vector<16x1xf32>
      %74 = vector.shape_cast %73 : vector<16x1xf32> to vector<1x16x1xf32>
      %cst_38 = arith.constant dense<0.000000e+00> : vector<1xf32>
      %75 = vector.multi_reduction <add>, %74, %cst_38 [1, 2] : vector<1x16x1xf32> to vector<1xf32>
      %76 = vector.shape_cast %75 : vector<1xf32> to vector<1x1x1xf32>
      %77 = vector.extract %76[0, 0, 0] : f32 from vector<1x1x1xf32>
      %cst_39 = arith.constant -5.000000e-01 : f32
      %78 = arith.mulf %cst_39, %77 : f32
      %79 = vector.broadcast %78 : f32 to vector<1x8x128xf32>
      %c0_40 = arith.constant 0 : index
      %c0_41 = arith.constant 0 : index
      %c0_42 = arith.constant 0 : index
      %80 = vector.load %arg13[%c0_40, %c0_41, %c0_42] : memref<1x8x128xf32, #tpu.memory_space<vmem>>, vector<1x8x128xf32>
      tpu.vector_store %arg13[%c0_40, %c0_41, %c0_42], %79 {strides = array<i32>} : memref<1x8x128xf32, #tpu.memory_space<vmem>>, vector<1x8x128xf32>,
    } else {
    }
    return
  }
  func.func @transform_0(%arg0: i32) -> (i32, i32) {
    %c0_i32 = arith.constant 0 : i32
    %c0_i32_0 = arith.constant 0 : i32
    return %arg0, %c0_i32 : i32, i32
  }
  func.func @transform_1(%arg0: i32) -> (i32, i32) {
    %c0_i32 = arith.constant 0 : i32
    %c0_i32_0 = arith.constant 0 : i32
    return %arg0, %c0_i32 : i32, i32
  }
  func.func @transform_2(%arg0: i32) -> (i32, i32) {
    %c0_i32 = arith.constant 0 : i32
    %c0_i32_0 = arith.constant 0 : i32
    %c0_i32_1 = arith.constant 0 : i32
    return %c0_i32, %c0_i32_0 : i32, i32
  }
  func.func @transform_3(%arg0: i32) -> (i32, i32) {
    %c0_i32 = arith.constant 0 : i32
    %c0_i32_0 = arith.constant 0 : i32
    %c0_i32_1 = arith.constant 0 : i32
    return %c0_i32, %c0_i32_0 : i32, i32
  }
  func.func @transform_4(%arg0: i32) -> (i32, i32) {
    %c0_i32 = arith.constant 0 : i32
    %c0_i32_0 = arith.constant 0 : i32
    %c0_i32_1 = arith.constant 0 : i32
    return %c0_i32, %c0_i32_0 : i32, i32
  }
  func.func @transform_5(%arg0: i32) -> (i32, i32) {
    %c0_i32 = arith.constant 0 : i32
    %c0_i32_0 = arith.constant 0 : i32
    %c0_i32_1 = arith.constant 0 : i32
    return %c0_i32, %c0_i32_0 : i32, i32
  }
  func.func @transform_6(%arg0: i32) -> (i32, i32) {
    %c0_i32 = arith.constant 0 : i32
    %c0_i32_0 = arith.constant 0 : i32
    %c0_i32_1 = arith.constant 0 : i32
    return %c0_i32, %c0_i32_0 : i32, i32
  }
  func.func @transform_7(%arg0: i32) -> (i32, i32) {
    %c0_i32 = arith.constant 0 : i32
    %c0_i32_0 = arith.constant 0 : i32
    %c0_i32_1 = arith.constant 0 : i32
    return %c0_i32, %c0_i32_0 : i32, i32
  }
  func.func @transform_8(%arg0: i32) -> (i32, i32) {
    %c0_i32 = arith.constant 0 : i32
    %c0_i32_0 = arith.constant 0 : i32
    %c0_i32_1 = arith.constant 0 : i32
    return %c0_i32, %c0_i32_0 : i32, i32
  }
  func.func @transform_9(%arg0: i32) -> (i32, i32) {
    %c0_i32 = arith.constant 0 : i32
    %c0_i32_0 = arith.constant 0 : i32
    %c0_i32_1 = arith.constant 0 : i32
    return %c0_i32, %c0_i32_0 : i32, i32
  }
  func.func @transform_10(%arg0: i32) -> (i32, i32) {
    %c0_i32 = arith.constant 0 : i32
    %c0_i32_0 = arith.constant 0 : i32
    return %arg0, %c0_i32 : i32, i32
  }
  func.func @transform_11(%arg0: i32) -> (i32, i32) {
    %c0_i32 = arith.constant 0 : i32
    %c0_i32_0 = arith.constant 0 : i32
    return %arg0, %c0_i32 : i32, i32
  }
  func.func @transform_12(%arg0: i32) -> (i32, i32, i32) {
    %c0_i32 = arith.constant 0 : i32
    %c0_i32_0 = arith.constant 0 : i32
    %c0_i32_1 = arith.constant 0 : i32
    return %arg0, %c0_i32, %c0_i32_0 : i32, i32, i32
  }
}

module attributes {stable_mosaic.version = 11 : i64} {
  func.func @_vae_kernel(%arg0: i32, %arg1: memref<16x256xbf16, #tpu.memory_space<vmem>>, %arg2: memref<16x128xbf16, #tpu.memory_space<vmem>>, %arg3: memref<256x256xbf16, #tpu.memory_space<vmem>>, %arg4: memref<256x256xbf16, #tpu.memory_space<vmem>>, %arg5: memref<256x256xbf16, #tpu.memory_space<vmem>>, %arg6: memref<128x256xbf16, #tpu.memory_space<vmem>>, %arg7: memref<256x256xbf16, #tpu.memory_space<vmem>>, %arg8: memref<3x256xf32, #tpu.memory_space<vmem>>, %arg9: memref<1x256xf32, #tpu.memory_space<vmem>>, %arg10: memref<1x256xf32, #tpu.memory_space<vmem>>, %arg11: memref<16x128xbf16, #tpu.memory_space<vmem>>, %arg12: memref<16x256xbf16, #tpu.memory_space<vmem>>, %arg13: memref<1x8x128xf32, #tpu.memory_space<vmem>>) attributes {dimension_semantics = [#tpu.dimension_semantics<parallel>], iteration_bounds = array<i64: 1>, scalar_prefetch = 0 : i64, scratch_operands = 0 : i64, tpu.core_type = #tpu.core_type<tc>, window_params = [{transform_indices = @transform_0, window_bounds = array<i64: 16, 256>}, {transform_indices = @transform_1, window_bounds = array<i64: 16, 128>}, {pipeline_mode = #tpu.pipeline_mode<synchronous>, transform_indices = @transform_2, window_bounds = array<i64: 256, 256>}, {pipeline_mode = #tpu.pipeline_mode<synchronous>, transform_indices = @transform_3, window_bounds = array<i64: 256, 256>}, {pipeline_mode = #tpu.pipeline_mode<synchronous>, transform_indices = @transform_4, window_bounds = array<i64: 256, 256>}, {pipeline_mode = #tpu.pipeline_mode<synchronous>, transform_indices = @transform_5, window_bounds = array<i64: 128, 256>}, {pipeline_mode = #tpu.pipeline_mode<synchronous>, transform_indices = @transform_6, window_bounds = array<i64: 256, 256>}, {pipeline_mode = #tpu.pipeline_mode<synchronous>, transform_indices = @transform_7, window_bounds = array<i64: 3, 256>}, {pipeline_mode = #tpu.pipeline_mode<synchronous>, transform_indices = @transform_8, window_bounds = array<i64: 1, 256>}, {pipeline_mode = #tpu.pipeline_mode<synchronous>, transform_indices = @transform_9, window_bounds = array<i64: 1, 256>}, {transform_indices = @transform_10, window_bounds = array<i64: 16, 128>}, {transform_indices = @transform_11, window_bounds = array<i64: 16, 256>}, {transform_indices = @transform_12, window_bounds = array<i64: 1, 8, 128>}]} {
    %c0 = arith.constant 0 : index
    %c0_0 = arith.constant 0 : index
    %0 = vector.load %arg1[%c0, %c0_0] : memref<16x256xbf16, #tpu.memory_space<vmem>>, vector<16x256xbf16>
    %c0_1 = arith.constant 0 : index
    %c0_2 = arith.constant 0 : index
    %1 = vector.load %arg8[%c0_1, %c0_2] : memref<3x256xf32, #tpu.memory_space<vmem>>, vector<3x256xf32>
    %c0_3 = arith.constant 0 : index
    %c0_4 = arith.constant 0 : index
    %2 = vector.load %arg3[%c0_3, %c0_4] : memref<256x256xbf16, #tpu.memory_space<vmem>>, vector<256x256xbf16>
    %cst = arith.constant dense<0.000000e+00> : vector<16x256xf32>
    %3 = tpu.matmul %0, %2, %cst {dimension_numbers = #tpu.dot_dimension_numbers<[1], [0], [0], [1], [0, 0, 1, 1], [], []>} : vector<16x256xbf16>, vector<256x256xbf16>, vector<16x256xf32> -> vector<16x256xf32>
    %4 = vector.extract_strided_slice %1 {offsets = [0, 0], sizes = [1, 256], strides = [1, 1]} : vector<3x256xf32> to vector<1x256xf32>
    %5 = vector.broadcast %4 : vector<1x256xf32> to vector<16x256xf32>
    %6 = arith.addf %3, %5 : vector<16x256xf32>
    %cst_5 = arith.constant 0.000000e+00 : f32
    %7 = vector.broadcast %cst_5 : f32 to vector<16x256xf32>
    %8 = arith.maximumf %6, %7 : vector<16x256xf32>
    %9 = arith.truncf %8 : vector<16x256xf32> to vector<16x256xbf16>
    %c0_6 = arith.constant 0 : index
    %c0_7 = arith.constant 0 : index
    %10 = vector.load %arg4[%c0_6, %c0_7] : memref<256x256xbf16, #tpu.memory_space<vmem>>, vector<256x256xbf16>
    %cst_8 = arith.constant dense<0.000000e+00> : vector<16x256xf32>
    %11 = tpu.matmul %9, %10, %cst_8 {dimension_numbers = #tpu.dot_dimension_numbers<[1], [0], [0], [1], [0, 0, 1, 1], [], []>} : vector<16x256xbf16>, vector<256x256xbf16>, vector<16x256xf32> -> vector<16x256xf32>
    %12 = vector.extract_strided_slice %1 {offsets = [1, 0], sizes = [1, 256], strides = [1, 1]} : vector<3x256xf32> to vector<1x256xf32>
    %13 = vector.broadcast %12 : vector<1x256xf32> to vector<16x256xf32>
    %14 = arith.addf %11, %13 : vector<16x256xf32>
    %cst_9 = arith.constant 0.000000e+00 : f32
    %15 = vector.broadcast %cst_9 : f32 to vector<16x256xf32>
    %16 = arith.maximumf %14, %15 : vector<16x256xf32>
    %17 = arith.truncf %16 : vector<16x256xf32> to vector<16x256xbf16>
    %c0_10 = arith.constant 0 : index
    %c0_11 = arith.constant 0 : index
    %18 = vector.load %arg5[%c0_10, %c0_11] : memref<256x256xbf16, #tpu.memory_space<vmem>>, vector<256x256xbf16>
    %cst_12 = arith.constant dense<0.000000e+00> : vector<16x256xf32>
    %19 = tpu.matmul %17, %18, %cst_12 {dimension_numbers = #tpu.dot_dimension_numbers<[1], [0], [0], [1], [0, 0, 1, 1], [], []>} : vector<16x256xbf16>, vector<256x256xbf16>, vector<16x256xf32> -> vector<16x256xf32>
    %c0_13 = arith.constant 0 : index
    %c0_14 = arith.constant 0 : index
    %20 = vector.load %arg9[%c0_13, %c0_14] : memref<1x256xf32, #tpu.memory_space<vmem>>, vector<1x256xf32>
    %21 = vector.broadcast %20 : vector<1x256xf32> to vector<16x256xf32>
    %22 = arith.addf %19, %21 : vector<16x256xf32>
    %23 = vector.extract_strided_slice %22 {offsets = [0, 0], sizes = [16, 128], strides = [1, 1]} : vector<16x256xf32> to vector<16x128xf32>
    %24 = vector.extract_strided_slice %22 {offsets = [0, 128], sizes = [16, 128], strides = [1, 1]} : vector<16x256xf32> to vector<16x128xf32>
    %cst_15 = arith.constant 5.000000e-01 : f32
    %25 = vector.broadcast %cst_15 : f32 to vector<16x128xf32>
    %26 = arith.mulf %25, %24 : vector<16x128xf32>
    %27 = math.exp %26 : vector<16x128xf32>
    %c0_16 = arith.constant 0 : index
    %c0_17 = arith.constant 0 : index
    %28 = vector.load %arg2[%c0_16, %c0_17] : memref<16x128xbf16, #tpu.memory_space<vmem>>, vector<16x128xbf16>
    %29 = arith.extf %28 : vector<16x128xbf16> to vector<16x128xf32>
    %30 = arith.mulf %29, %27 : vector<16x128xf32>
    %31 = arith.addf %23, %30 : vector<16x128xf32>
    %32 = arith.truncf %31 : vector<16x128xf32> to vector<16x128xbf16>
    %c0_18 = arith.constant 0 : index
    %c0_19 = arith.constant 0 : index
    %33 = vector.load %arg6[%c0_18, %c0_19] : memref<128x256xbf16, #tpu.memory_space<vmem>>, vector<128x256xbf16>
    %cst_20 = arith.constant dense<0.000000e+00> : vector<16x256xf32>
    %34 = tpu.matmul %32, %33, %cst_20 {dimension_numbers = #tpu.dot_dimension_numbers<[1], [0], [0], [1], [0, 0, 1, 1], [], []>} : vector<16x128xbf16>, vector<128x256xbf16>, vector<16x256xf32> -> vector<16x256xf32>
    %35 = vector.extract_strided_slice %1 {offsets = [2, 0], sizes = [1, 256], strides = [1, 1]} : vector<3x256xf32> to vector<1x256xf32>
    %36 = vector.broadcast %35 : vector<1x256xf32> to vector<16x256xf32>
    %37 = arith.addf %34, %36 : vector<16x256xf32>
    %cst_21 = arith.constant 0.000000e+00 : f32
    %38 = vector.broadcast %cst_21 : f32 to vector<16x256xf32>
    %39 = arith.maximumf %37, %38 : vector<16x256xf32>
    %40 = arith.truncf %39 : vector<16x256xf32> to vector<16x256xbf16>
    %c0_22 = arith.constant 0 : index
    %c0_23 = arith.constant 0 : index
    %41 = vector.load %arg7[%c0_22, %c0_23] : memref<256x256xbf16, #tpu.memory_space<vmem>>, vector<256x256xbf16>
    %cst_24 = arith.constant dense<0.000000e+00> : vector<16x256xf32>
    %42 = tpu.matmul %40, %41, %cst_24 {dimension_numbers = #tpu.dot_dimension_numbers<[1], [0], [0], [1], [0, 0, 1, 1], [], []>} : vector<16x256xbf16>, vector<256x256xbf16>, vector<16x256xf32> -> vector<16x256xf32>
    %c0_25 = arith.constant 0 : index
    %c0_26 = arith.constant 0 : index
    %43 = vector.load %arg10[%c0_25, %c0_26] : memref<1x256xf32, #tpu.memory_space<vmem>>, vector<1x256xf32>
    %44 = vector.broadcast %43 : vector<1x256xf32> to vector<16x256xf32>
    %45 = arith.addf %42, %44 : vector<16x256xf32>
    %46 = arith.negf %45 : vector<16x256xf32>
    %47 = math.exp %46 : vector<16x256xf32>
    %cst_27 = arith.constant 1.000000e+00 : f32
    %48 = vector.broadcast %cst_27 : f32 to vector<16x256xf32>
    %49 = arith.addf %48, %47 : vector<16x256xf32>
    %50 = arith.divf %48, %49 : vector<16x256xf32>
    %51 = arith.truncf %23 : vector<16x128xf32> to vector<16x128xbf16>
    %c0_28 = arith.constant 0 : index
    %c0_29 = arith.constant 0 : index
    %52 = vector.load %arg11[%c0_28, %c0_29] : memref<16x128xbf16, #tpu.memory_space<vmem>>, vector<16x128xbf16>
    tpu.vector_store %arg11[%c0_28, %c0_29], %51 {strides = array<i32>} : memref<16x128xbf16, #tpu.memory_space<vmem>>, vector<16x128xbf16>,
    %53 = arith.truncf %50 : vector<16x256xf32> to vector<16x256xbf16>
    %c0_30 = arith.constant 0 : index
    %c0_31 = arith.constant 0 : index
    %54 = vector.load %arg12[%c0_30, %c0_31] : memref<16x256xbf16, #tpu.memory_space<vmem>>, vector<16x256xbf16>
    tpu.vector_store %arg12[%c0_30, %c0_31], %53 {strides = array<i32>} : memref<16x256xbf16, #tpu.memory_space<vmem>>, vector<16x256xbf16>,
    %cst_32 = arith.constant 1.000000e+00 : f32
    %55 = vector.broadcast %cst_32 : f32 to vector<16x128xf32>
    %56 = arith.addf %55, %24 : vector<16x128xf32>
    %57 = arith.mulf %23, %23 : vector<16x128xf32>
    %58 = arith.subf %56, %57 : vector<16x128xf32>
    %59 = arith.mulf %27, %27 : vector<16x128xf32>
    %60 = arith.subf %58, %59 : vector<16x128xf32>
    %cst_33 = arith.constant dense<0.000000e+00> : vector<16xf32>
    %61 = vector.multi_reduction <add>, %60, %cst_33 [1] : vector<16x128xf32> to vector<16xf32>
    %62 = vector.shape_cast %61 : vector<16xf32> to vector<16x1xf32>
    %c0_i32 = arith.constant 0 : i32
    %63 = arith.cmpi ne, %arg0, %c0_i32 : i32
    %64 = arith.extui %63 : i1 to i32
    %c0_i32_34 = arith.constant 0 : i32
    %65 = arith.cmpi ne, %64, %c0_i32_34 : i32
    scf.if %65 {
      %69 = vector.shape_cast %62 : vector<16x1xf32> to vector<1x16x1xf32>
      %cst_37 = arith.constant dense<0.000000e+00> : vector<1xf32>
      %70 = vector.multi_reduction <add>, %69, %cst_37 [1, 2] : vector<1x16x1xf32> to vector<1xf32>
      %71 = vector.shape_cast %70 : vector<1xf32> to vector<1x1x1xf32>
      %72 = vector.extract %71[0, 0, 0] : f32 from vector<1x1x1xf32>
      %cst_38 = arith.constant -5.000000e-01 : f32
      %73 = arith.mulf %cst_38, %72 : f32
      %74 = vector.broadcast %73 : f32 to vector<1x8x128xf32>
      %c0_39 = arith.constant 0 : index
      %c0_40 = arith.constant 0 : index
      %c0_41 = arith.constant 0 : index
      %75 = vector.load %arg13[%c0_39, %c0_40, %c0_41] : memref<1x8x128xf32, #tpu.memory_space<vmem>>, vector<1x8x128xf32>
      tpu.vector_store %arg13[%c0_39, %c0_40, %c0_41], %74 {strides = array<i32>} : memref<1x8x128xf32, #tpu.memory_space<vmem>>, vector<1x8x128xf32>,
    } else {
    }
    %c0_i32_35 = arith.constant 0 : i32
    %66 = arith.cmpi eq, %arg0, %c0_i32_35 : i32
    %67 = arith.extui %66 : i1 to i32
    %c0_i32_36 = arith.constant 0 : i32
    %68 = arith.cmpi ne, %67, %c0_i32_36 : i32
    scf.if %68 {
      %69 = tpu.iota {dimensions = array<i32: 0>} : vector<16x1xi32>
      %c8_i32 = arith.constant 8 : i32
      %70 = vector.broadcast %c8_i32 : i32 to vector<16x1xi32>
      %71 = arith.cmpi slt, %69, %70 : vector<16x1xi32>
      %cst_37 = arith.constant 0.000000e+00 : f32
      %72 = vector.broadcast %cst_37 : f32 to vector<16x1xf32>
      %73 = arith.select %71, %62, %72 : vector<16x1xi1>, vector<16x1xf32>
      %74 = vector.shape_cast %73 : vector<16x1xf32> to vector<1x16x1xf32>
      %cst_38 = arith.constant dense<0.000000e+00> : vector<1xf32>
      %75 = vector.multi_reduction <add>, %74, %cst_38 [1, 2] : vector<1x16x1xf32> to vector<1xf32>
      %76 = vector.shape_cast %75 : vector<1xf32> to vector<1x1x1xf32>
      %77 = vector.extract %76[0, 0, 0] : f32 from vector<1x1x1xf32>
      %cst_39 = arith.constant -5.000000e-01 : f32
      %78 = arith.mulf %cst_39, %77 : f32
      %79 = vector.broadcast %78 : f32 to vector<1x8x128xf32>
      %c0_40 = arith.constant 0 : index
      %c0_41 = arith.constant 0 : index
      %c0_42 = arith.constant 0 : index
      %80 = vector.load %arg13[%c0_40, %c0_41, %c0_42] : memref<1x8x128xf32, #tpu.memory_space<vmem>>, vector<1x8x128xf32>
      tpu.vector_store %arg13[%c0_40, %c0_41, %c0_42], %79 {strides = array<i32>} : memref<1x8x128xf32, #tpu.memory_space<vmem>>, vector<1x8x128xf32>,
    } else {
    }
    return
  }
  func.func @transform_0(%arg0: i32) -> (i32, i32) {
    %c0_i32 = arith.constant 0 : i32
    %c0_i32_0 = arith.constant 0 : i32
    return %arg0, %c0_i32 : i32, i32
  }
  func.func @transform_1(%arg0: i32) -> (i32, i32) {
    %c0_i32 = arith.constant 0 : i32
    %c0_i32_0 = arith.constant 0 : i32
    return %arg0, %c0_i32 : i32, i32
  }
  func.func @transform_2(%arg0: i32) -> (i32, i32) {
    %c0_i32 = arith.constant 0 : i32
    %c0_i32_0 = arith.constant 0 : i32
    %c0_i32_1 = arith.constant 0 : i32
    return %c0_i32, %c0_i32_0 : i32, i32
  }
  func.func @transform_3(%arg0: i32) -> (i32, i32) {
    %c0_i32 = arith.constant 0 : i32
    %c0_i32_0 = arith.constant 0 : i32
    %c0_i32_1 = arith.constant 0 : i32
    return %c0_i32, %c0_i32_0 : i32, i32
  }
  func.func @transform_4(%arg0: i32) -> (i32, i32) {
    %c0_i32 = arith.constant 0 : i32
    %c0_i32_0 = arith.constant 0 : i32
    %c0_i32_1 = arith.constant 0 : i32
    return %c0_i32, %c0_i32_0 : i32, i32
  }
  func.func @transform_5(%arg0: i32) -> (i32, i32) {
    %c0_i32 = arith.constant 0 : i32
    %c0_i32_0 = arith.constant 0 : i32
    %c0_i32_1 = arith.constant 0 : i32
    return %c0_i32, %c0_i32_0 : i32, i32
  }
  func.func @transform_6(%arg0: i32) -> (i32, i32) {
    %c0_i32 = arith.constant 0 : i32
    %c0_i32_0 = arith.constant 0 : i32
    %c0_i32_1 = arith.constant 0 : i32
    return %c0_i32, %c0_i32_0 : i32, i32
  }
  func.func @transform_7(%arg0: i32) -> (i32, i32) {
    %c0_i32 = arith.constant 0 : i32
    %c0_i32_0 = arith.constant 0 : i32
    %c0_i32_1 = arith.constant 0 : i32
    return %c0_i32, %c0_i32_0 : i32, i32
  }
  func.func @transform_8(%arg0: i32) -> (i32, i32) {
    %c0_i32 = arith.constant 0 : i32
    %c0_i32_0 = arith.constant 0 : i32
    %c0_i32_1 = arith.constant 0 : i32
    return %c0_i32, %c0_i32_0 : i32, i32
  }
  func.func @transform_9(%arg0: i32) -> (i32, i32) {
    %c0_i32 = arith.constant 0 : i32
    %c0_i32_0 = arith.constant 0 : i32
    %c0_i32_1 = arith.constant 0 : i32
    return %c0_i32, %c0_i32_0 : i32, i32
  }
  func.func @transform_10(%arg0: i32) -> (i32, i32) {
    %c0_i32 = arith.constant 0 : i32
    %c0_i32_0 = arith.constant 0 : i32
    return %arg0, %c0_i32 : i32, i32
  }
  func.func @transform_11(%arg0: i32) -> (i32, i32) {
    %c0_i32 = arith.constant 0 : i32
    %c0_i32_0 = arith.constant 0 : i32
    return %arg0, %c0_i32 : i32, i32
  }
  func.func @transform_12(%arg0: i32) -> (i32, i32, i32) {
    %c0_i32 = arith.constant 0 : i32
    %c0_i32_0 = arith.constant 0 : i32
    %c0_i32_1 = arith.constant 0 : i32
    return %arg0, %c0_i32, %c0_i32_0 : i32, i32, i32
  }
}

</mosaic_0001>

<llo_original>
// kernel: _vae_forward_impl.1
$region0: #{_vae_forward_impl.1}
  #allocation0 [shape = 'u32[]', space=smem, size = 0x4, offset = 0x4, fixed_abs, tag = 'smem constant byte address 0x4 - core index']
  #allocation1 [shape = 'u32[144,128]{1,0:T(1,128)}', space=vmem, size = 0x12000, scoped, tag = 'internal scratch']
  %s0 = inlined_call_operand.vmem [shape: bf16[16,256], index: 0, kind: input, shape index: {}]
  %s1 = inlined_call_operand.vmem [shape: bf16[16,128], index: 1, kind: input, shape index: {}]
  %s2 = inlined_call_operand.hbm [shape: bf16[256,256], index: 2, kind: input, shape index: {}]
  %s3 = inlined_call_operand.hbm [shape: bf16[256,256], index: 3, kind: input, shape index: {}]
  %s4 = inlined_call_operand.hbm [shape: bf16[256,256], index: 4, kind: input, shape index: {}]
  %s5 = inlined_call_operand.hbm [shape: bf16[128,256], index: 5, kind: input, shape index: {}]
  %s6 = inlined_call_operand.hbm [shape: bf16[256,256], index: 6, kind: input, shape index: {}]
  %s7 = inlined_call_operand.vmem [shape: f32[3,256], index: 7, kind: input, shape index: {}]
  %s8 = inlined_call_operand.vmem [shape: f32[1,256], index: 8, kind: input, shape index: {}]
  %s9 = inlined_call_operand.vmem [shape: f32[1,256], index: 9, kind: input, shape index: {}]
  %s10 = inlined_call_operand.vmem [shape: bf16[16,128], index: 10, kind: output, shape index: {0}]
  %s11 = inlined_call_operand.vmem [shape: bf16[16,256], index: 11, kind: output, shape index: {1}]
  %s12 = inlined_call_operand.vmem [shape: f32[1,8,128], index: 12, kind: output, shape index: {2}]
  %13 = xla_tuple %s10, %s11, %s12
  %s14 = sld [smem:[#allocation0]]
  $region94: #{_vae_forward_impl.1} parent=0
    _
  %s16 = ssub.s32 1, %s14
  %s17 = scalar_select 0, %s16, %s14
  $region1: #{_vae_forward_impl.1} parent=0
    #allocation2 [shape = 'u8[131072]{0}', space=vmem, size = 0x20000, scoped, tag = 'input window, operand 2, single buffered']
    #allocation3 [shape = 's32[1]{0}', space=sflag, size = 0x4, scoped, tag = 'scoped memory for _vae_forward_impl.1']
    #allocation4 [shape = 'u8[131072]{0}', space=vmem, size = 0x20000, scoped, tag = 'input window, operand 3, single buffered']
    #allocation5 [shape = 's32[1]{0}', space=sflag, size = 0x4, scoped, tag = 'scoped memory for _vae_forward_impl.1']
    #allocation6 [shape = 'u8[131072]{0}', space=vmem, size = 0x20000, scoped, tag = 'input window, operand 4, single buffered']
    #allocation7 [shape = 'u8[65536]{0}', space=vmem, size = 0x10000, scoped, tag = 'input window, operand 5, single buffered']
    #allocation8 [shape = 's32[1]{0}', space=sflag, size = 0x4, scoped, tag = 'scoped memory for _vae_forward_impl.1']
    #allocation9 [shape = 'u8[131072]{0}', space=vmem, size = 0x20000, scoped, tag = 'input window, operand 6, single buffered']
    %18 = vsyncpa [#allocation3], 0
    %19 = vsyncpa [#allocation5], 0
    %20 = vsyncpa [#allocation8], 0
    // Predicated region
    $region2: #{_vae_forward_impl.1} parent=1 // pred_check
      _
    $region3: #{_vae_forward_impl.1} parent=1 // pred_check_branch
      %22 = sbr.rel (0) target = $region5
    $region4: #{_vae_forward_impl.1} parent=1 // pred_region
      _
    $region5: #{_vae_forward_impl.1} parent=1 // pred_fallthru
      _
    // Predicated region
    $region6: #{_vae_forward_impl.1} parent=1 // pred_check
      _
    $region7: #{_vae_forward_impl.1} parent=1 // pred_check_branch
      %24 = sbr.rel (0) target = $region9
    $region8: #{_vae_forward_impl.1} parent=1 // pred_region
      _
    $region9: #{_vae_forward_impl.1} parent=1 // pred_fallthru
      _
    // Predicated region
    $region10: #{_vae_forward_impl.1} parent=1 // pred_check
      _
    $region11: #{_vae_forward_impl.1} parent=1 // pred_check_branch
      %26 = sbr.rel (0) target = $region13
    $region12: #{_vae_forward_impl.1} parent=1 // pred_region
      %s28 = ssub.s32 4096, 4096
      %29 = vsyncadd [#allocation3], %s28
      %s30 = sshll.u32 [#allocation2], 4
      %s31 = int_to_ptr.vmem [resolvable:$true] %s30
      %36 = dma.hbm_to_vmem [thread:$0]  %s2, 4096, %s31, [#allocation3], 128, 128, 8
    $region13: #{_vae_forward_impl.1} parent=1 // pred_fallthru
      _
    // Predicated region
    $region14: #{_vae_forward_impl.1} parent=1 // pred_check
      _
    $region15: #{_vae_forward_impl.1} parent=1 // pred_check_branch
      %38 = sbr.rel (0) target = $region17
    $region16: #{_vae_forward_impl.1} parent=1 // pred_region
      %s40 = ssub.s32 4096, 4096
      %41 = vsyncadd [#allocation5], %s40
      %s42 = sshll.u32 [#allocation4], 4
      %s43 = int_to_ptr.vmem [resolvable:$true] %s42
      %48 = dma.hbm_to_vmem [thread:$0]  %s3, 4096, %s43, [#allocation5], 128, 128, 8
    $region17: #{_vae_forward_impl.1} parent=1 // pred_fallthru
      _
    // Predicated region
    $region18: #{_vae_forward_impl.1} parent=1 // pred_check
      _
    $region19: #{_vae_forward_impl.1} parent=1 // pred_check_branch
      %50 = sbr.rel (0) target = $region21
    $region20: #{_vae_forward_impl.1} parent=1 // pred_region
      %s52 = ssub.s32 4096, 4096
      %53 = vsyncadd [#allocation5], %s52
      %s54 = sshll.u32 [#allocation6], 4
      %s55 = int_to_ptr.vmem [resolvable:$true] %s54
      %60 = dma.hbm_to_vmem [thread:$0]  %s4, 4096, %s55, [#allocation5], 128, 128, 8
    $region21: #{_vae_forward_impl.1} parent=1 // pred_fallthru
      _
    // Predicated region
    $region22: #{_vae_forward_impl.1} parent=1 // pred_check
      _
    $region23: #{_vae_forward_impl.1} parent=1 // pred_check_branch
      %62 = sbr.rel (0) target = $region25
    $region24: #{_vae_forward_impl.1} parent=1 // pred_region
      %s64 = ssub.s32 2048, 2048
      %65 = vsyncadd [#allocation8], %s64
      %s66 = sshll.u32 [#allocation7], 4
      %s67 = int_to_ptr.vmem [resolvable:$true] %s66
      %72 = dma.hbm_to_vmem [thread:$0]  %s5, 2048, %s67, [#allocation8], 128, 128, 8
    $region25: #{_vae_forward_impl.1} parent=1 // pred_fallthru
      _
    // Predicated region
    $region26: #{_vae_forward_impl.1} parent=1 // pred_check
      _
    $region27: #{_vae_forward_impl.1} parent=1 // pred_check_branch
      %74 = sbr.rel (0) target = $region29
    $region28: #{_vae_forward_impl.1} parent=1 // pred_region
      %s76 = ssub.s32 4096, 4096
      %77 = vsyncadd [#allocation8], %s76
      %s78 = sshll.u32 [#allocation9], 4
      %s79 = int_to_ptr.vmem [resolvable:$true] %s78
      %84 = dma.hbm_to_vmem [thread:$0]  %s6, 4096, %s79, [#allocation8], 128, 128, 8
    $region29: #{_vae_forward_impl.1} parent=1 // pred_fallthru
      _
    // Predicated region
    $region30: #{_vae_forward_impl.1} parent=1 // pred_check
      _
    $region31: #{_vae_forward_impl.1} parent=1 // pred_check_branch
      %86 = sbr.rel (0) target = $region33
    $region32: #{_vae_forward_impl.1} parent=1 // pred_region
      _
    $region33: #{_vae_forward_impl.1} parent=1 // pred_fallthru
      _
    // Predicated region
    $region34: #{_vae_forward_impl.1} parent=1 // pred_check
      _
    $region35: #{_vae_forward_impl.1} parent=1 // pred_check_branch
      %88 = sbr.rel (0) target = $region37
    $region36: #{_vae_forward_impl.1} parent=1 // pred_region
      _
    $region37: #{_vae_forward_impl.1} parent=1 // pred_fallthru
      _
    // Predicated region
    $region38: #{_vae_forward_impl.1} parent=1 // pred_check
      _
    $region39: #{_vae_forward_impl.1} parent=1 // pred_check_branch
      %90 = sbr.rel (0) target = $region41
    $region40: #{_vae_forward_impl.1} parent=1 // pred_region
      _
    $region41: #{_vae_forward_impl.1} parent=1 // pred_fallthru
      _
    // Predicated region
    $region42: #{_vae_forward_impl.1} parent=1 // pred_check
      _
    $region43: #{_vae_forward_impl.1} parent=1 // pred_check_branch
      %92 = sbr.rel (0) target = $region45
    $region44: #{_vae_forward_impl.1} parent=1 // pred_region
      %93 = dma.done [#allocation3], 4096
    $region45: #{_vae_forward_impl.1} parent=1 // pred_fallthru
      _
    // Predicated region
    $region46: #{_vae_forward_impl.1} parent=1 // pred_check
      _
    $region47: #{_vae_forward_impl.1} parent=1 // pred_check_branch
      %95 = sbr.rel (0) target = $region49
    $region48: #{_vae_forward_impl.1} parent=1 // pred_region
      %96 = dma.done [#allocation5], 4096
    $region49: #{_vae_forward_impl.1} parent=1 // pred_fallthru
      _
    // Predicated region
    $region50: #{_vae_forward_impl.1} parent=1 // pred_check
      _
    $region51: #{_vae_forward_impl.1} parent=1 // pred_check_branch
      %98 = sbr.rel (0) target = $region53
    $region52: #{_vae_forward_impl.1} parent=1 // pred_region
      %99 = dma.done [#allocation5], 4096
    $region53: #{_vae_forward_impl.1} parent=1 // pred_fallthru
      _
    // Predicated region
    $region54: #{_vae_forward_impl.1} parent=1 // pred_check
      _
    $region55: #{_vae_forward_impl.1} parent=1 // pred_check_branch
      %101 = sbr.rel (0) target = $region57
    $region56: #{_vae_forward_impl.1} parent=1 // pred_region
      %102 = dma.done [#allocation8], 2048
    $region57: #{_vae_forward_impl.1} parent=1 // pred_fallthru
      _
    // Predicated region
    $region58: #{_vae_forward_impl.1} parent=1 // pred_check
      _
    $region59: #{_vae_forward_impl.1} parent=1 // pred_check_branch
      %104 = sbr.rel (0) target = $region61
    $region60: #{_vae_forward_impl.1} parent=1 // pred_region
      %105 = dma.done [#allocation8], 4096
    $region61: #{_vae_forward_impl.1} parent=1 // pred_fallthru
      _
    %v108 = vld [vmem:[%s0] sm:$0xff]
    %v109 = vld [vmem:[%s0 + $0x8] sm:$0xff]
    %v110 = vld [vmem:[%s7] sm:$0x77]
    %v111 = vld [vmem:[#allocation2] sm:$0xff]
    %v112 = vld [vmem:[#allocation2 + $0x8] sm:$0xff]
    %v113 = vld [vmem:[#allocation2 + $0x10] sm:$0xff]
    %v114 = vld [vmem:[#allocation2 + $0x18] sm:$0xff]
    %v115 = vld [vmem:[#allocation2 + $0x20] sm:$0xff]
    %v116 = vld [vmem:[#allocation2 + $0x28] sm:$0xff]
    %v117 = vld [vmem:[#allocation2 + $0x30] sm:$0xff]
    %v118 = vld [vmem:[#allocation2 + $0x38] sm:$0xff]
    %v119 = vld [vmem:[#allocation2 + $0x40] sm:$0xff]
    %v120 = vld [vmem:[#allocation2 + $0x48] sm:$0xff]
    %v121 = vld [vmem:[#allocation2 + $0x50] sm:$0xff]
    %v122 = vld [vmem:[#allocation2 + $0x58] sm:$0xff]
    %v123 = vld [vmem:[#allocation2 + $0x60] sm:$0xff]
    %v124 = vld [vmem:[#allocation2 + $0x68] sm:$0xff]
    %v125 = vld [vmem:[#allocation2 + $0x70] sm:$0xff]
    %v126 = vld [vmem:[#allocation2 + $0x78] sm:$0xff]
    %v127 = vld [vmem:[#allocation2 + $0x80] sm:$0xff]
    %v128 = vld [vmem:[#allocation2 + $0x88] sm:$0xff]
    %v129 = vld [vmem:[#allocation2 + $0x90] sm:$0xff]
    %v130 = vld [vmem:[#allocation2 + $0x98] sm:$0xff]
    %v131 = vld [vmem:[#allocation2 + $0xa0] sm:$0xff]
    %v132 = vld [vmem:[#allocation2 + $0xa8] sm:$0xff]
    %v133 = vld [vmem:[#allocation2 + $0xb0] sm:$0xff]
    %v134 = vld [vmem:[#allocation2 + $0xb8] sm:$0xff]
    %v135 = vld [vmem:[#allocation2 + $0xc0] sm:$0xff]
    %v136 = vld [vmem:[#allocation2 + $0xc8] sm:$0xff]
    %v137 = vld [vmem:[#allocation2 + $0xd0] sm:$0xff]
    %v138 = vld [vmem:[#allocation2 + $0xd8] sm:$0xff]
    %v139 = vld [vmem:[#allocation2 + $0xe0] sm:$0xff]
    %v140 = vld [vmem:[#allocation2 + $0xe8] sm:$0xff]
    %v141 = vld [vmem:[#allocation2 + $0xf0] sm:$0xff]
    %v142 = vld [vmem:[#allocation2 + $0xf8] sm:$0xff]
    %v144 = vlaneseq
    %v145 = vshrl.u32 %v144, 7
    %v146 = vsub.s32 0, %v145
    %v147 = vrot.slane %v110, %v146
    %v148 = vlaneseq
    %v149 = vshrl.u32 %v148, 7
    %v150 = vsub.s32 4, %v149
    %v151 = vrot.slane %v110, %v150
    %v154 = vlaneseq
    %v155 = vshrl.u32 %v154, 7
    %v156 = vsub.s32 0, %v155
    %v157 = vrot.slane %v147, %v156
    %v158 = vlaneseq
    %v159 = vshrl.u32 %v158, 7
    %v160 = vsub.s32 0, %v159
    %v161 = vrot.slane %v151, %v160
    %v164 = vunpack.c.l.b16 %v108
    %v165 = vunpack.c.h.b16 %v108
    %v166 = vunpack.c.l.b16 %v109
    %v167 = vunpack.c.h.b16 %v109
    %v168 = vpack.c.b16 %v166, %v164
    %v169 = vpack.c.b16 %v167, %v165
    %v204 = vunpack.c.l.b16 %v111
    %v205 = vunpack.c.h.b16 %v111
    %v206 = vunpack.c.l.b16 %v112
    %v207 = vunpack.c.h.b16 %v112
    %v208 = vunpack.c.l.b16 %v113
    %v209 = vunpack.c.h.b16 %v113
    %v210 = vunpack.c.l.b16 %v114
    %v211 = vunpack.c.h.b16 %v114
    %v212 = vunpack.c.l.b16 %v115
    %v213 = vunpack.c.h.b16 %v115
    %v214 = vunpack.c.l.b16 %v116
    %v215 = vunpack.c.h.b16 %v116
    %v216 = vunpack.c.l.b16 %v117
    %v217 = vunpack.c.h.b16 %v117
    %v218 = vunpack.c.l.b16 %v118
    %v219 = vunpack.c.h.b16 %v118
    %v220 = vunpack.c.l.b16 %v119
    %v221 = vunpack.c.h.b16 %v119
    %v222 = vunpack.c.l.b16 %v120
    %v223 = vunpack.c.h.b16 %v120
    %v224 = vunpack.c.l.b16 %v121
    %v225 = vunpack.c.h.b16 %v121
    %v226 = vunpack.c.l.b16 %v122
    %v227 = vunpack.c.h.b16 %v122
    %v228 = vunpack.c.l.b16 %v123
    %v229 = vunpack.c.h.b16 %v123
    %v230 = vunpack.c.l.b16 %v124
    %v231 = vunpack.c.h.b16 %v124
    %v232 = vunpack.c.l.b16 %v125
    %v233 = vunpack.c.h.b16 %v125
    %v234 = vunpack.c.l.b16 %v126
    %v235 = vunpack.c.h.b16 %v126
    %v236 = vunpack.c.l.b16 %v127
    %v237 = vunpack.c.h.b16 %v127
    %v238 = vunpack.c.l.b16 %v128
    %v239 = vunpack.c.h.b16 %v128
    %v240 = vunpack.c.l.b16 %v129
    %v241 = vunpack.c.h.b16 %v129
    %v242 = vunpack.c.l.b16 %v130
    %v243 = vunpack.c.h.b16 %v130
    %v244 = vunpack.c.l.b16 %v131
    %v245 = vunpack.c.h.b16 %v131
    %v246 = vunpack.c.l.b16 %v132
    %v247 = vunpack.c.h.b16 %v132
    %v248 = vunpack.c.l.b16 %v133
    %v249 = vunpack.c.h.b16 %v133
    %v250 = vunpack.c.l.b16 %v134
    %v251 = vunpack.c.h.b16 %v134
    %v252 = vunpack.c.l.b16 %v135
    %v253 = vunpack.c.h.b16 %v135
    %v254 = vunpack.c.l.b16 %v136
    %v255 = vunpack.c.h.b16 %v136
    %v256 = vunpack.c.l.b16 %v137
    %v257 = vunpack.c.h.b16 %v137
    %v258 = vunpack.c.l.b16 %v138
    %v259 = vunpack.c.h.b16 %v138
    %v260 = vunpack.c.l.b16 %v139
    %v261 = vunpack.c.h.b16 %v139
    %v262 = vunpack.c.l.b16 %v140
    %v263 = vunpack.c.h.b16 %v140
    %v264 = vunpack.c.l.b16 %v141
    %v265 = vunpack.c.h.b16 %v141
    %v266 = vunpack.c.l.b16 %v142
    %v267 = vunpack.c.h.b16 %v142
    %v268 = vpack.c.b16 %v206, %v204
    %v269 = vpack.c.b16 %v207, %v205
    %v270 = vpack.c.b16 %v210, %v208
    %v271 = vpack.c.b16 %v211, %v209
    %v272 = vpack.c.b16 %v214, %v212
    %v273 = vpack.c.b16 %v215, %v213
    %v274 = vpack.c.b16 %v218, %v216
    %v275 = vpack.c.b16 %v219, %v217
    %v276 = vpack.c.b16 %v222, %v220
    %v277 = vpack.c.b16 %v223, %v221
    %v278 = vpack.c.b16 %v226, %v224
    %v279 = vpack.c.b16 %v227, %v225
    %v280 = vpack.c.b16 %v230, %v228
    %v281 = vpack.c.b16 %v231, %v229
    %v282 = vpack.c.b16 %v234, %v232
    %v283 = vpack.c.b16 %v235, %v233
    %v284 = vpack.c.b16 %v238, %v236
    %v285 = vpack.c.b16 %v239, %v237
    %v286 = vpack.c.b16 %v242, %v240
    %v287 = vpack.c.b16 %v243, %v241
    %v288 = vpack.c.b16 %v246, %v244
    %v289 = vpack.c.b16 %v247, %v245
    %v290 = vpack.c.b16 %v250, %v248
    %v291 = vpack.c.b16 %v251, %v249
    %v292 = vpack.c.b16 %v254, %v252
    %v293 = vpack.c.b16 %v255, %v253
    %v294 = vpack.c.b16 %v258, %v256
    %v295 = vpack.c.b16 %v259, %v257
    %v296 = vpack.c.b16 %v262, %v260
    %v297 = vpack.c.b16 %v263, %v261
    %v298 = vpack.c.b16 %v266, %v264
    %v299 = vpack.c.b16 %v267, %v265
    %332 = vmatprep.subr.bf16.mxu0 %v283
    %333 = vmatpush1.bf16.msra.mxu0 %v282
    %334 = vmatprep.subr.bf16.mxu0 %v281
    %335 = vmatpush1.bf16.msra.mxu0 %v280
    %336 = vmatprep.subr.bf16.mxu0 %v279
    %337 = vmatpush1.bf16.msra.mxu0 %v278
    %338 = vmatprep.subr.bf16.mxu0 %v277
    %339 = vmatpush1.bf16.msra.mxu0 %v276
    %340 = vmatprep.subr.bf16.mxu0 %v275
    %341 = vmatpush1.bf16.msra.mxu0 %v274
    %342 = vmatprep.subr.bf16.mxu0 %v273
    %343 = vmatpush1.bf16.msra.mxu0 %v272
    %344 = vmatprep.subr.bf16.mxu0 %v271
    %345 = vmatpush1.bf16.msra.mxu0 %v270
    %346 = vmatprep.subr.bf16.mxu0 %v269
    %347 = vmatpush1.bf16.msra.mxu0 %v268
    %348 = vmatprep.subr.bf16.mxu0 %v299
    %349 = vmatpush2.bf16.msra.mxu0 %v298
    %350 = vmatprep.subr.bf16.mxu0 %v297
    %351 = vmatpush2.bf16.msra.mxu0 %v296
    %352 = vmatprep.subr.bf16.mxu0 %v295
    %353 = vmatpush2.bf16.msra.mxu0 %v294
    %354 = vmatprep.subr.bf16.mxu0 %v293
    %355 = vmatpush2.bf16.msra.mxu0 %v292
    %356 = vmatprep.subr.bf16.mxu0 %v291
    %357 = vmatpush2.bf16.msra.mxu0 %v290
    %358 = vmatprep.subr.bf16.mxu0 %v289
    %359 = vmatpush2.bf16.msra.mxu0 %v288
    %360 = vmatprep.subr.bf16.mxu0 %v287
    %361 = vmatpush2.bf16.msra.mxu0 %v286
    %362 = vmatprep.subr.bf16.mxu0 %v285
    %363 = vmatpush2.bf16.msra.mxu0 %v284
    %364 = vmatprep.mubr.bf16.mxu0 %v169
    %365 = vmatmul.mubr.bf16.gmra.mxu0 %v168
    %v366 = vpop.f32.mrf.mxu0
    %v367 = vadd.f32 %v157, %v366
    %v368 = vpop.f32.mrf.mxu0
    %v369 = vadd.f32 %v161, %v368
    %v370 = vpop.f32.mrf.mxu0
    %v371 = vadd.f32 %v157, %v370
    %v372 = vpop.f32.mrf.mxu0
    %v373 = vadd.f32 %v161, %v372
    %374 = vdwg.mxu0
    %v375 = vmax.f32 %v367, 0.0
    %v376 = vmax.f32 %v369, 0.0
    %v377 = vmax.f32 %v371, 0.0
    %v378 = vmax.f32 %v373, 0.0
    %v379 = vpack.c.bf16 %v377, %v375
    %v380 = vpack.c.bf16 %v378, %v376
    %v381 = vld [vmem:[#allocation4] sm:$0xff]
    %v382 = vld [vmem:[#allocation4 + $0x8] sm:$0xff]
    %v383 = vld [vmem:[#allocation4 + $0x10] sm:$0xff]
    %v384 = vld [vmem:[#allocation4 + $0x18] sm:$0xff]
    %v385 = vld [vmem:[#allocation4 + $0x20] sm:$0xff]
    %v386 = vld [vmem:[#allocation4 + $0x28] sm:$0xff]
    %v387 = vld [vmem:[#allocation4 + $0x30] sm:$0xff]
    %v388 = vld [vmem:[#allocation4 + $0x38] sm:$0xff]
    %v389 = vld [vmem:[#allocation4 + $0x40] sm:$0xff]
    %v390 = vld [vmem:[#allocation4 + $0x48] sm:$0xff]
    %v391 = vld [vmem:[#allocation4 + $0x50] sm:$0xff]
    %v392 = vld [vmem:[#allocation4 + $0x58] sm:$0xff]
    %v393 = vld [vmem:[#allocation4 + $0x60] sm:$0xff]
    %v394 = vld [vmem:[#allocation4 + $0x68] sm:$0xff]
    %v395 = vld [vmem:[#allocation4 + $0x70] sm:$0xff]
    %v396 = vld [vmem:[#allocation4 + $0x78] sm:$0xff]
    %v397 = vld [vmem:[#allocation4 + $0x80] sm:$0xff]
    %v398 = vld [vmem:[#allocation4 + $0x88] sm:$0xff]
    %v399 = vld [vmem:[#allocation4 + $0x90] sm:$0xff]
    %v400 = vld [vmem:[#allocation4 + $0x98] sm:$0xff]
    %v401 = vld [vmem:[#allocation4 + $0xa0] sm:$0xff]
    %v402 = vld [vmem:[#allocation4 + $0xa8] sm:$0xff]
    %v403 = vld [vmem:[#allocation4 + $0xb0] sm:$0xff]
    %v404 = vld [vmem:[#allocation4 + $0xb8] sm:$0xff]
    %v405 = vld [vmem:[#allocation4 + $0xc0] sm:$0xff]
    %v406 = vld [vmem:[#allocation4 + $0xc8] sm:$0xff]
    %v407 = vld [vmem:[#allocation4 + $0xd0] sm:$0xff]
    %v408 = vld [vmem:[#allocation4 + $0xd8] sm:$0xff]
    %v409 = vld [vmem:[#allocation4 + $0xe0] sm:$0xff]
    %v410 = vld [vmem:[#allocation4 + $0xe8] sm:$0xff]
    %v411 = vld [vmem:[#allocation4 + $0xf0] sm:$0xff]
    %v412 = vld [vmem:[#allocation4 + $0xf8] sm:$0xff]
    %v413 = vlaneseq
    %v414 = vshrl.u32 %v413, 7
    %v415 = vsub.s32 1, %v414
    %v416 = vrot.slane %v110, %v415
    %v417 = vlaneseq
    %v418 = vshrl.u32 %v417, 7
    %v419 = vsub.s32 5, %v418
    %v420 = vrot.slane %v110, %v419
    %v423 = vlaneseq
    %v424 = vshrl.u32 %v423, 7
    %v425 = vsub.s32 1, %v424
    %v426 = vrot.slane %v416, %v425
    %v427 = vlaneseq
    %v428 = vshrl.u32 %v427, 7
    %v429 = vsub.s32 1, %v428
    %v430 = vrot.slane %v420, %v429
    %v463 = vunpack.c.l.b16 %v381
    %v464 = vunpack.c.h.b16 %v381
    %v465 = vunpack.c.l.b16 %v382
    %v466 = vunpack.c.h.b16 %v382
    %v467 = vunpack.c.l.b16 %v383
    %v468 = vunpack.c.h.b16 %v383
    %v469 = vunpack.c.l.b16 %v384
    %v470 = vunpack.c.h.b16 %v384
    %v471 = vunpack.c.l.b16 %v385
    %v472 = vunpack.c.h.b16 %v385
    %v473 = vunpack.c.l.b16 %v386
    %v474 = vunpack.c.h.b16 %v386
    %v475 = vunpack.c.l.b16 %v387
    %v476 = vunpack.c.h.b16 %v387
    %v477 = vunpack.c.l.b16 %v388
    %v478 = vunpack.c.h.b16 %v388
    %v479 = vunpack.c.l.b16 %v389
    %v480 = vunpack.c.h.b16 %v389
    %v481 = vunpack.c.l.b16 %v390
    %v482 = vunpack.c.h.b16 %v390
    %v483 = vunpack.c.l.b16 %v391
    %v484 = vunpack.c.h.b16 %v391
    %v485 = vunpack.c.l.b16 %v392
    %v486 = vunpack.c.h.b16 %v392
    %v487 = vunpack.c.l.b16 %v393
    %v488 = vunpack.c.h.b16 %v393
    %v489 = vunpack.c.l.b16 %v394
    %v490 = vunpack.c.h.b16 %v394
    %v491 = vunpack.c.l.b16 %v395
    %v492 = vunpack.c.h.b16 %v395
    %v493 = vunpack.c.l.b16 %v396
    %v494 = vunpack.c.h.b16 %v396
    %v495 = vunpack.c.l.b16 %v397
    %v496 = vunpack.c.h.b16 %v397
    %v497 = vunpack.c.l.b16 %v398
    %v498 = vunpack.c.h.b16 %v398
    %v499 = vunpack.c.l.b16 %v399
    %v500 = vunpack.c.h.b16 %v399
    %v501 = vunpack.c.l.b16 %v400
    %v502 = vunpack.c.h.b16 %v400
    %v503 = vunpack.c.l.b16 %v401
    %v504 = vunpack.c.h.b16 %v401
    %v505 = vunpack.c.l.b16 %v402
    %v506 = vunpack.c.h.b16 %v402
    %v507 = vunpack.c.l.b16 %v403
    %v508 = vunpack.c.h.b16 %v403
    %v509 = vunpack.c.l.b16 %v404
    %v510 = vunpack.c.h.b16 %v404
    %v511 = vunpack.c.l.b16 %v405
    %v512 = vunpack.c.h.b16 %v405
    %v513 = vunpack.c.l.b16 %v406
    %v514 = vunpack.c.h.b16 %v406
    %v515 = vunpack.c.l.b16 %v407
    %v516 = vunpack.c.h.b16 %v407
    %v517 = vunpack.c.l.b16 %v408
    %v518 = vunpack.c.h.b16 %v408
    %v519 = vunpack.c.l.b16 %v409
    %v520 = vunpack.c.h.b16 %v409
    %v521 = vunpack.c.l.b16 %v410
    %v522 = vunpack.c.h.b16 %v410
    %v523 = vunpack.c.l.b16 %v411
    %v524 = vunpack.c.h.b16 %v411
    %v525 = vunpack.c.l.b16 %v412
    %v526 = vunpack.c.h.b16 %v412
    %v527 = vpack.c.b16 %v465, %v463
    %v528 = vpack.c.b16 %v466, %v464
    %v529 = vpack.c.b16 %v469, %v467
    %v530 = vpack.c.b16 %v470, %v468
    %v531 = vpack.c.b16 %v473, %v471
    %v532 = vpack.c.b16 %v474, %v472
    %v533 = vpack.c.b16 %v477, %v475
    %v534 = vpack.c.b16 %v478, %v476
    %v535 = vpack.c.b16 %v481, %v479
    %v536 = vpack.c.b16 %v482, %v480
    %v537 = vpack.c.b16 %v485, %v483
    %v538 = vpack.c.b16 %v486, %v484
    %v539 = vpack.c.b16 %v489, %v487
    %v540 = vpack.c.b16 %v490, %v488
    %v541 = vpack.c.b16 %v493, %v491
    %v542 = vpack.c.b16 %v494, %v492
    %v543 = vpack.c.b16 %v497, %v495
    %v544 = vpack.c.b16 %v498, %v496
    %v545 = vpack.c.b16 %v501, %v499
    %v546 = vpack.c.b16 %v502, %v500
    %v547 = vpack.c.b16 %v505, %v503
    %v548 = vpack.c.b16 %v506, %v504
    %v549 = vpack.c.b16 %v509, %v507
    %v550 = vpack.c.b16 %v510, %v508
    %v551 = vpack.c.b16 %v513, %v511
    %v552 = vpack.c.b16 %v514, %v512
    %v553 = vpack.c.b16 %v517, %v515
    %v554 = vpack.c.b16 %v518, %v516
    %v555 = vpack.c.b16 %v521, %v519
    %v556 = vpack.c.b16 %v522, %v520
    %v557 = vpack.c.b16 %v525, %v523
    %v558 = vpack.c.b16 %v526, %v524
    %591 = vmatprep.subr.bf16.mxu0 %v542
    %592 = vmatpush1.bf16.msra.mxu0 %v541
    %593 = vmatprep.subr.bf16.mxu0 %v540
    %594 = vmatpush1.bf16.msra.mxu0 %v539
    %595 = vmatprep.subr.bf16.mxu0 %v538
    %596 = vmatpush1.bf16.msra.mxu0 %v537
    %597 = vmatprep.subr.bf16.mxu0 %v536
    %598 = vmatpush1.bf16.msra.mxu0 %v535
    %599 = vmatprep.subr.bf16.mxu0 %v534
    %600 = vmatpush1.bf16.msra.mxu0 %v533
    %601 = vmatprep.subr.bf16.mxu0 %v532
    %602 = vmatpush1.bf16.msra.mxu0 %v531
    %603 = vmatprep.subr.bf16.mxu0 %v530
    %604 = vmatpush1.bf16.msra.mxu0 %v529
    %605 = vmatprep.subr.bf16.mxu0 %v528
    %606 = vmatpush1.bf16.msra.mxu0 %v527
    %607 = vmatprep.subr.bf16.mxu0 %v558
    %608 = vmatpush2.bf16.msra.mxu0 %v557
    %609 = vmatprep.subr.bf16.mxu0 %v556
    %610 = vmatpush2.bf16.msra.mxu0 %v555
    %611 = vmatprep.subr.bf16.mxu0 %v554
    %612 = vmatpush2.bf16.msra.mxu0 %v553
    %613 = vmatprep.subr.bf16.mxu0 %v552
    %614 = vmatpush2.bf16.msra.mxu0 %v551
    %615 = vmatprep.subr.bf16.mxu0 %v550
    %616 = vmatpush2.bf16.msra.mxu0 %v549
    %617 = vmatprep.subr.bf16.mxu0 %v548
    %618 = vmatpush2.bf16.msra.mxu0 %v547
    %619 = vmatprep.subr.bf16.mxu0 %v546
    %620 = vmatpush2.bf16.msra.mxu0 %v545
    %621 = vmatprep.subr.bf16.mxu0 %v544
    %622 = vmatpush2.bf16.msra.mxu0 %v543
    %623 = vmatprep.mubr.bf16.mxu0 %v380
    %624 = vmatmul.mubr.bf16.gmra.mxu0 %v379
    %v625 = vpop.f32.mrf.mxu0
    %v626 = vadd.f32 %v426, %v625
    %v627 = vpop.f32.mrf.mxu0
    %v628 = vadd.f32 %v430, %v627
    %v629 = vpop.f32.mrf.mxu0
    %v630 = vadd.f32 %v426, %v629
    %v631 = vpop.f32.mrf.mxu0
    %v632 = vadd.f32 %v430, %v631
    %633 = vdwg.mxu0
    %v634 = vmax.f32 %v626, 0.0
    %v635 = vmax.f32 %v628, 0.0
    %v636 = vmax.f32 %v630, 0.0
    %v637 = vmax.f32 %v632, 0.0
    %v638 = vpack.c.bf16 %v636, %v634
    %v639 = vpack.c.bf16 %v637, %v635
    %v640 = vld [vmem:[#allocation6] sm:$0xff]
    %v641 = vld [vmem:[#allocation6 + $0x8] sm:$0xff]
    %v642 = vld [vmem:[#allocation6 + $0x10] sm:$0xff]
    %v643 = vld [vmem:[#allocation6 + $0x18] sm:$0xff]
    %v644 = vld [vmem:[#allocation6 + $0x20] sm:$0xff]
    %v645 = vld [vmem:[#allocation6 + $0x28] sm:$0xff]
    %v646 = vld [vmem:[#allocation6 + $0x30] sm:$0xff]
    %v647 = vld [vmem:[#allocation6 + $0x38] sm:$0xff]
    %v648 = vld [vmem:[#allocation6 + $0x40] sm:$0xff]
    %v649 = vld [vmem:[#allocation6 + $0x48] sm:$0xff]
    %v650 = vld [vmem:[#allocation6 + $0x50] sm:$0xff]
    %v651 = vld [vmem:[#allocation6 + $0x58] sm:$0xff]
    %v652 = vld [vmem:[#allocation6 + $0x60] sm:$0xff]
    %v653 = vld [vmem:[#allocation6 + $0x68] sm:$0xff]
    %v654 = vld [vmem:[#allocation6 + $0x70] sm:$0xff]
    %v655 = vld [vmem:[#allocation6 + $0x78] sm:$0xff]
    %v656 = vld [vmem:[#allocation6 + $0x80] sm:$0xff]
    %v657 = vld [vmem:[#allocation6 + $0x88] sm:$0xff]
    %v658 = vld [vmem:[#allocation6 + $0x90] sm:$0xff]
    %v659 = vld [vmem:[#allocation6 + $0x98] sm:$0xff]
    %v660 = vld [vmem:[#allocation6 + $0xa0] sm:$0xff]
    %v661 = vld [vmem:[#allocation6 + $0xa8] sm:$0xff]
    %v662 = vld [vmem:[#allocation6 + $0xb0] sm:$0xff]
    %v663 = vld [vmem:[#allocation6 + $0xb8] sm:$0xff]
    %v664 = vld [vmem:[#allocation6 + $0xc0] sm:$0xff]
    %v665 = vld [vmem:[#allocation6 + $0xc8] sm:$0xff]
    %v666 = vld [vmem:[#allocation6 + $0xd0] sm:$0xff]
    %v667 = vld [vmem:[#allocation6 + $0xd8] sm:$0xff]
    %v668 = vld [vmem:[#allocation6 + $0xe0] sm:$0xff]
    %v669 = vld [vmem:[#allocation6 + $0xe8] sm:$0xff]
    %v670 = vld [vmem:[#allocation6 + $0xf0] sm:$0xff]
    %v671 = vld [vmem:[#allocation6 + $0xf8] sm:$0xff]
    %v672 = vld [vmem:[%s8] sm:$0x3]
    %v674 = vlaneseq
    %v675 = vshrl.u32 %v674, 7
    %v676 = vsub.s32 0, %v675
    %v677 = vrot.slane %v672, %v676
    %v678 = vlaneseq
    %v679 = vshrl.u32 %v678, 7
    %v680 = vsub.s32 1, %v679
    %v681 = vrot.slane %v672, %v680
    %v716 = vunpack.c.l.b16 %v640
    %v717 = vunpack.c.h.b16 %v640
    %v718 = vunpack.c.l.b16 %v641
    %v719 = vunpack.c.h.b16 %v641
    %v720 = vunpack.c.l.b16 %v642
    %v721 = vunpack.c.h.b16 %v642
    %v722 = vunpack.c.l.b16 %v643
    %v723 = vunpack.c.h.b16 %v643
    %v724 = vunpack.c.l.b16 %v644
    %v725 = vunpack.c.h.b16 %v644
    %v726 = vunpack.c.l.b16 %v645
    %v727 = vunpack.c.h.b16 %v645
    %v728 = vunpack.c.l.b16 %v646
    %v729 = vunpack.c.h.b16 %v646
    %v730 = vunpack.c.l.b16 %v647
    %v731 = vunpack.c.h.b16 %v647
    %v732 = vunpack.c.l.b16 %v648
    %v733 = vunpack.c.h.b16 %v648
    %v734 = vunpack.c.l.b16 %v649
    %v735 = vunpack.c.h.b16 %v649
    %v736 = vunpack.c.l.b16 %v650
    %v737 = vunpack.c.h.b16 %v650
    %v738 = vunpack.c.l.b16 %v651
    %v739 = vunpack.c.h.b16 %v651
    %v740 = vunpack.c.l.b16 %v652
    %v741 = vunpack.c.h.b16 %v652
    %v742 = vunpack.c.l.b16 %v653
    %v743 = vunpack.c.h.b16 %v653
    %v744 = vunpack.c.l.b16 %v654
    %v745 = vunpack.c.h.b16 %v654
    %v746 = vunpack.c.l.b16 %v655
    %v747 = vunpack.c.h.b16 %v655
    %v748 = vunpack.c.l.b16 %v656
    %v749 = vunpack.c.h.b16 %v656
    %v750 = vunpack.c.l.b16 %v657
    %v751 = vunpack.c.h.b16 %v657
    %v752 = vunpack.c.l.b16 %v658
    %v753 = vunpack.c.h.b16 %v658
    %v754 = vunpack.c.l.b16 %v659
    %v755 = vunpack.c.h.b16 %v659
    %v756 = vunpack.c.l.b16 %v660
    %v757 = vunpack.c.h.b16 %v660
    %v758 = vunpack.c.l.b16 %v661
    %v759 = vunpack.c.h.b16 %v661
    %v760 = vunpack.c.l.b16 %v662
    %v761 = vunpack.c.h.b16 %v662
    %v762 = vunpack.c.l.b16 %v663
    %v763 = vunpack.c.h.b16 %v663
    %v764 = vunpack.c.l.b16 %v664
    %v765 = vunpack.c.h.b16 %v664
    %v766 = vunpack.c.l.b16 %v665
    %v767 = vunpack.c.h.b16 %v665
    %v768 = vunpack.c.l.b16 %v666
    %v769 = vunpack.c.h.b16 %v666
    %v770 = vunpack.c.l.b16 %v667
    %v771 = vunpack.c.h.b16 %v667
    %v772 = vunpack.c.l.b16 %v668
    %v773 = vunpack.c.h.b16 %v668
    %v774 = vunpack.c.l.b16 %v669
    %v775 = vunpack.c.h.b16 %v669
    %v776 = vunpack.c.l.b16 %v670
    %v777 = vunpack.c.h.b16 %v670
    %v778 = vunpack.c.l.b16 %v671
    %v779 = vunpack.c.h.b16 %v671
    %v780 = vpack.c.b16 %v718, %v716
    %v781 = vpack.c.b16 %v719, %v717
    %v782 = vpack.c.b16 %v722, %v720
    %v783 = vpack.c.b16 %v723, %v721
    %v784 = vpack.c.b16 %v726, %v724
    %v785 = vpack.c.b16 %v727, %v725
    %v786 = vpack.c.b16 %v730, %v728
    %v787 = vpack.c.b16 %v731, %v729
    %v788 = vpack.c.b16 %v734, %v732
    %v789 = vpack.c.b16 %v735, %v733
    %v790 = vpack.c.b16 %v738, %v736
    %v791 = vpack.c.b16 %v739, %v737
    %v792 = vpack.c.b16 %v742, %v740
    %v793 = vpack.c.b16 %v743, %v741
    %v794 = vpack.c.b16 %v746, %v744
    %v795 = vpack.c.b16 %v747, %v745
    %v796 = vpack.c.b16 %v750, %v748
    %v797 = vpack.c.b16 %v751, %v749
    %v798 = vpack.c.b16 %v754, %v752
    %v799 = vpack.c.b16 %v755, %v753
    %v800 = vpack.c.b16 %v758, %v756
    %v801 = vpack.c.b16 %v759, %v757
    %v802 = vpack.c.b16 %v762, %v760
    %v803 = vpack.c.b16 %v763, %v761
    %v804 = vpack.c.b16 %v766, %v764
    %v805 = vpack.c.b16 %v767, %v765
    %v806 = vpack.c.b16 %v770, %v768
    %v807 = vpack.c.b16 %v771, %v769
    %v808 = vpack.c.b16 %v774, %v772
    %v809 = vpack.c.b16 %v775, %v773
    %v810 = vpack.c.b16 %v778, %v776
    %v811 = vpack.c.b16 %v779, %v777
    %844 = vmatprep.subr.bf16.mxu0 %v795
    %845 = vmatpush1.bf16.msra.mxu0 %v794
    %846 = vmatprep.subr.bf16.mxu0 %v793
    %847 = vmatpush1.bf16.msra.mxu0 %v792
    %848 = vmatprep.subr.bf16.mxu0 %v791
    %849 = vmatpush1.bf16.msra.mxu0 %v790
    %850 = vmatprep.subr.bf16.mxu0 %v789
    %851 = vmatpush1.bf16.msra.mxu0 %v788
    %852 = vmatprep.subr.bf16.mxu0 %v787
    %853 = vmatpush1.bf16.msra.mxu0 %v786
    %854 = vmatprep.subr.bf16.mxu0 %v785
    %855 = vmatpush1.bf16.msra.mxu0 %v784
    %856 = vmatprep.subr.bf16.mxu0 %v783
    %857 = vmatpush1.bf16.msra.mxu0 %v782
    %858 = vmatprep.subr.bf16.mxu0 %v781
    %859 = vmatpush1.bf16.msra.mxu0 %v780
    %860 = vmatprep.subr.bf16.mxu0 %v811
    %861 = vmatpush2.bf16.msra.mxu0 %v810
    %862 = vmatprep.subr.bf16.mxu0 %v809
    %863 = vmatpush2.bf16.msra.mxu0 %v808
    %864 = vmatprep.subr.bf16.mxu0 %v807
    %865 = vmatpush2.bf16.msra.mxu0 %v806
    %866 = vmatprep.subr.bf16.mxu0 %v805
    %867 = vmatpush2.bf16.msra.mxu0 %v804
    %868 = vmatprep.subr.bf16.mxu0 %v803
    %869 = vmatpush2.bf16.msra.mxu0 %v802
    %870 = vmatprep.subr.bf16.mxu0 %v801
    %871 = vmatpush2.bf16.msra.mxu0 %v800
    %872 = vmatprep.subr.bf16.mxu0 %v799
    %873 = vmatpush2.bf16.msra.mxu0 %v798
    %874 = vmatprep.subr.bf16.mxu0 %v797
    %875 = vmatpush2.bf16.msra.mxu0 %v796
    %876 = vmatprep.mubr.bf16.mxu0 %v639
    %877 = vmatmul.mubr.bf16.gmra.mxu0 %v638
    %v878 = vpop.f32.mrf.mxu0
    %v879 = vadd.f32 %v677, %v878
    %v880 = vpop.f32.mrf.mxu0
    %v881 = vadd.f32 %v681, %v880
    %v882 = vpop.f32.mrf.mxu0
    %v883 = vadd.f32 %v677, %v882
    %v884 = vpop.f32.mrf.mxu0
    %v885 = vadd.f32 %v681, %v884
    %886 = vdwg.mxu0
    %v887 = vmul.f32 %v881, 0.5
    %v888 = vmul.f32 %v885, 0.5
    %v889 = vmul.f32 %v887, 1.442695
    %v890 = vpow.pop %v889
    %v891 = vmul.f32 %v888, 1.442695
    %v892 = vpow.pop %v891
    %v893 = vld [vmem:[%s1] sm:$0xf]
    %v894 = vld [vmem:[%s1 + $0x4] sm:$0xf]
    %v895 = vunpack.c.l.bf16 %v893
    %v896 = vunpack.c.l.bf16 %v894
    %v897 = vmul.f32 %v895, %v890
    %v898 = vmul.f32 %v896, %v892
    %v899 = vadd.f32 %v879, %v897
    %v900 = vadd.f32 %v883, %v898
    %v901 = vpack.c.bf16 %v900, %v899
    %v902 = vld [vmem:[#allocation7] sm:$0xff]
    %v903 = vld [vmem:[#allocation7 + $0x8] sm:$0xff]
    %v904 = vld [vmem:[#allocation7 + $0x10] sm:$0xff]
    %v905 = vld [vmem:[#allocation7 + $0x18] sm:$0xff]
    %v906 = vld [vmem:[#allocation7 + $0x20] sm:$0xff]
    %v907 = vld [vmem:[#allocation7 + $0x28] sm:$0xff]
    %v908 = vld [vmem:[#allocation7 + $0x30] sm:$0xff]
    %v909 = vld [vmem:[#allocation7 + $0x38] sm:$0xff]
    %v910 = vld [vmem:[#allocation7 + $0x40] sm:$0xff]
    %v911 = vld [vmem:[#allocation7 + $0x48] sm:$0xff]
    %v912 = vld [vmem:[#allocation7 + $0x50] sm:$0xff]
    %v913 = vld [vmem:[#allocation7 + $0x58] sm:$0xff]
    %v914 = vld [vmem:[#allocation7 + $0x60] sm:$0xff]
    %v915 = vld [vmem:[#allocation7 + $0x68] sm:$0xff]
    %v916 = vld [vmem:[#allocation7 + $0x70] sm:$0xff]
    %v917 = vld [vmem:[#allocation7 + $0x78] sm:$0xff]
    %v918 = vlaneseq
    %v919 = vshrl.u32 %v918, 7
    %v920 = vsub.s32 2, %v919
    %v921 = vrot.slane %v110, %v920
    %v922 = vlaneseq
    %v923 = vshrl.u32 %v922, 7
    %v924 = vsub.s32 6, %v923
    %v925 = vrot.slane %v110, %v924
    %v928 = vlaneseq
    %v929 = vshrl.u32 %v928, 7
    %v930 = vsub.s32 2, %v929
    %v931 = vrot.slane %v921, %v930
    %v932 = vlaneseq
    %v933 = vshrl.u32 %v932, 7
    %v934 = vsub.s32 2, %v933
    %v935 = vrot.slane %v925, %v934
    %v952 = vunpack.c.l.b16 %v902
    %v953 = vunpack.c.h.b16 %v902
    %v954 = vunpack.c.l.b16 %v903
    %v955 = vunpack.c.h.b16 %v903
    %v956 = vunpack.c.l.b16 %v904
    %v957 = vunpack.c.h.b16 %v904
    %v958 = vunpack.c.l.b16 %v905
    %v959 = vunpack.c.h.b16 %v905
    %v960 = vunpack.c.l.b16 %v906
    %v961 = vunpack.c.h.b16 %v906
    %v962 = vunpack.c.l.b16 %v907
    %v963 = vunpack.c.h.b16 %v907
    %v964 = vunpack.c.l.b16 %v908
    %v965 = vunpack.c.h.b16 %v908
    %v966 = vunpack.c.l.b16 %v909
    %v967 = vunpack.c.h.b16 %v909
    %v968 = vunpack.c.l.b16 %v910
    %v969 = vunpack.c.h.b16 %v910
    %v970 = vunpack.c.l.b16 %v911
    %v971 = vunpack.c.h.b16 %v911
    %v972 = vunpack.c.l.b16 %v912
    %v973 = vunpack.c.h.b16 %v912
    %v974 = vunpack.c.l.b16 %v913
    %v975 = vunpack.c.h.b16 %v913
    %v976 = vunpack.c.l.b16 %v914
    %v977 = vunpack.c.h.b16 %v914
    %v978 = vunpack.c.l.b16 %v915
    %v979 = vunpack.c.h.b16 %v915
    %v980 = vunpack.c.l.b16 %v916
    %v981 = vunpack.c.h.b16 %v916
    %v982 = vunpack.c.l.b16 %v917
    %v983 = vunpack.c.h.b16 %v917
    %v984 = vpack.c.b16 %v954, %v952
    %v985 = vpack.c.b16 %v955, %v953
    %v986 = vpack.c.b16 %v958, %v956
    %v987 = vpack.c.b16 %v959, %v957
    %v988 = vpack.c.b16 %v962, %v960
    %v989 = vpack.c.b16 %v963, %v961
    %v990 = vpack.c.b16 %v966, %v964
    %v991 = vpack.c.b16 %v967, %v965
    %v992 = vpack.c.b16 %v970, %v968
    %v993 = vpack.c.b16 %v971, %v969
    %v994 = vpack.c.b16 %v974, %v972
    %v995 = vpack.c.b16 %v975, %v973
    %v996 = vpack.c.b16 %v978, %v976
    %v997 = vpack.c.b16 %v979, %v977
    %v998 = vpack.c.b16 %v982, %v980
    %v999 = vpack.c.b16 %v983, %v981
    %1016 = vmatprep.subr.bf16.mxu0 %v999
    %1017 = vmatpush1.bf16.msra.mxu0 %v998
    %1018 = vmatprep.subr.bf16.mxu0 %v997
    %1019 = vmatpush1.bf16.msra.mxu0 %v996
    %1020 = vmatprep.subr.bf16.mxu0 %v995
    %1021 = vmatpush1.bf16.msra.mxu0 %v994
    %1022 = vmatprep.subr.bf16.mxu0 %v993
    %1023 = vmatpush1.bf16.msra.mxu0 %v992
    %1024 = vmatprep.subr.bf16.mxu0 %v991
    %1025 = vmatpush1.bf16.msra.mxu0 %v990
    %1026 = vmatprep.subr.bf16.mxu0 %v989
    %1027 = vmatpush1.bf16.msra.mxu0 %v988
    %1028 = vmatprep.subr.bf16.mxu0 %v987
    %1029 = vmatpush1.bf16.msra.mxu0 %v986
    %1030 = vmatprep.subr.bf16.mxu0 %v985
    %1031 = vmatpush1.bf16.msra.mxu0 %v984
    %1032 = vmatprep.subr.bf16.mxu0 0
    %1033 = vmatpush2.bf16.msra.mxu0 0
    %1034 = vmatprep.subr.bf16.mxu0 0
    %1035 = vmatpush2.bf16.msra.mxu0 0
    %1036 = vmatprep.subr.bf16.mxu0 0
    %1037 = vmatpush2.bf16.msra.mxu0 0
    %1038 = vmatprep.subr.bf16.mxu0 0
    %1039 = vmatpush2.bf16.msra.mxu0 0
    %1040 = vmatprep.subr.bf16.mxu0 0
    %1041 = vmatpush2.bf16.msra.mxu0 0
    %1042 = vmatprep.subr.bf16.mxu0 0
    %1043 = vmatpush2.bf16.msra.mxu0 0
    %1044 = vmatprep.subr.bf16.mxu0 0
    %1045 = vmatpush2.bf16.msra.mxu0 0
    %1046 = vmatprep.subr.bf16.mxu0 0
    %1047 = vmatpush2.bf16.msra.mxu0 0
    %1048 = vmatprep.mubr.bf16.mxu0 0
    %1049 = vmatmul.mubr.bf16.gmra.mxu0 %v901
    %v1050 = vpop.f32.mrf.mxu0
    %v1051 = vadd.f32 %v931, %v1050
    %v1052 = vpop.f32.mrf.mxu0
    %v1053 = vadd.f32 %v935, %v1052
    %v1054 = vpop.f32.mrf.mxu0
    %v1055 = vadd.f32 %v931, %v1054
    %v1056 = vpop.f32.mrf.mxu0
    %v1057 = vadd.f32 %v935, %v1056
    %1058 = vdwg.mxu0
    %v1059 = vmax.f32 %v1051, 0.0
    %v1060 = vmax.f32 %v1053, 0.0
    %v1061 = vmax.f32 %v1055, 0.0
    %v1062 = vmax.f32 %v1057, 0.0
    %v1063 = vpack.c.bf16 %v1061, %v1059
    %v1064 = vpack.c.bf16 %v1062, %v1060
    %v1065 = vld [vmem:[#allocation9] sm:$0xff]
    %v1066 = vld [vmem:[#allocation9 + $0x8] sm:$0xff]
    %v1067 = vld [vmem:[#allocation9 + $0x10] sm:$0xff]
    %v1068 = vld [vmem:[#allocation9 + $0x18] sm:$0xff]
    %v1069 = vld [vmem:[#allocation9 + $0x20] sm:$0xff]
    %v1070 = vld [vmem:[#allocation9 + $0x28] sm:$0xff]
    %v1071 = vld [vmem:[#allocation9 + $0x30] sm:$0xff]
    %v1072 = vld [vmem:[#allocation9 + $0x38] sm:$0xff]
    %v1073 = vld [vmem:[#allocation9 + $0x40] sm:$0xff]
    %v1074 = vld [vmem:[#allocation9 + $0x48] sm:$0xff]
    %v1075 = vld [vmem:[#allocation9 + $0x50] sm:$0xff]
    %v1076 = vld [vmem:[#allocation9 + $0x58] sm:$0xff]
    %v1077 = vld [vmem:[#allocation9 + $0x60] sm:$0xff]
    %v1078 = vld [vmem:[#allocation9 + $0x68] sm:$0xff]
    %v1079 = vld [vmem:[#allocation9 + $0x70] sm:$0xff]
    %v1080 = vld [vmem:[#allocation9 + $0x78] sm:$0xff]
    %v1081 = vld [vmem:[#allocation9 + $0x80] sm:$0xff]
    %v1082 = vld [vmem:[#allocation9 + $0x88] sm:$0xff]
    %v1083 = vld [vmem:[#allocation9 + $0x90] sm:$0xff]
    %v1084 = vld [vmem:[#allocation9 + $0x98] sm:$0xff]
    %v1085 = vld [vmem:[#allocation9 + $0xa0] sm:$0xff]
    %v1086 = vld [vmem:[#allocation9 + $0xa8] sm:$0xff]
    %v1087 = vld [vmem:[#allocation9 + $0xb0] sm:$0xff]
    %v1088 = vld [vmem:[#allocation9 + $0xb8] sm:$0xff]
    %v1089 = vld [vmem:[#allocation9 + $0xc0] sm:$0xff]
    %v1090 = vld [vmem:[#allocation9 + $0xc8] sm:$0xff]
    %v1091 = vld [vmem:[#allocation9 + $0xd0] sm:$0xff]
    %v1092 = vld [vmem:[#allocation9 + $0xd8] sm:$0xff]
    %v1093 = vld [vmem:[#allocation9 + $0xe0] sm:$0xff]
    %v1094 = vld [vmem:[#allocation9 + $0xe8] sm:$0xff]
    %v1095 = vld [vmem:[#allocation9 + $0xf0] sm:$0xff]
    %v1096 = vld [vmem:[#allocation9 + $0xf8] sm:$0xff]
    %v1097 = vld [vmem:[%s9] sm:$0x3]
    %v1099 = vlaneseq
    %v1100 = vshrl.u32 %v1099, 7
    %v1101 = vsub.s32 0, %v1100
    %v1102 = vrot.slane %v1097, %v1101
    %v1103 = vlaneseq
    %v1104 = vshrl.u32 %v1103, 7
    %v1105 = vsub.s32 1, %v1104
    %v1106 = vrot.slane %v1097, %v1105
    %v1141 = vunpack.c.l.b16 %v1065
    %v1142 = vunpack.c.h.b16 %v1065
    %v1143 = vunpack.c.l.b16 %v1066
    %v1144 = vunpack.c.h.b16 %v1066
    %v1145 = vunpack.c.l.b16 %v1067
    %v1146 = vunpack.c.h.b16 %v1067
    %v1147 = vunpack.c.l.b16 %v1068
    %v1148 = vunpack.c.h.b16 %v1068
    %v1149 = vunpack.c.l.b16 %v1069
    %v1150 = vunpack.c.h.b16 %v1069
    %v1151 = vunpack.c.l.b16 %v1070
    %v1152 = vunpack.c.h.b16 %v1070
    %v1153 = vunpack.c.l.b16 %v1071
    %v1154 = vunpack.c.h.b16 %v1071
    %v1155 = vunpack.c.l.b16 %v1072
    %v1156 = vunpack.c.h.b16 %v1072
    %v1157 = vunpack.c.l.b16 %v1073
    %v1158 = vunpack.c.h.b16 %v1073
    %v1159 = vunpack.c.l.b16 %v1074
    %v1160 = vunpack.c.h.b16 %v1074
    %v1161 = vunpack.c.l.b16 %v1075
    %v1162 = vunpack.c.h.b16 %v1075
    %v1163 = vunpack.c.l.b16 %v1076
    %v1164 = vunpack.c.h.b16 %v1076
    %v1165 = vunpack.c.l.b16 %v1077
    %v1166 = vunpack.c.h.b16 %v1077
    %v1167 = vunpack.c.l.b16 %v1078
    %v1168 = vunpack.c.h.b16 %v1078
    %v1169 = vunpack.c.l.b16 %v1079
    %v1170 = vunpack.c.h.b16 %v1079
    %v1171 = vunpack.c.l.b16 %v1080
    %v1172 = vunpack.c.h.b16 %v1080
    %v1173 = vunpack.c.l.b16 %v1081
    %v1174 = vunpack.c.h.b16 %v1081
    %v1175 = vunpack.c.l.b16 %v1082
    %v1176 = vunpack.c.h.b16 %v1082
    %v1177 = vunpack.c.l.b16 %v1083
    %v1178 = vunpack.c.h.b16 %v1083
    %v1179 = vunpack.c.l.b16 %v1084
    %v1180 = vunpack.c.h.b16 %v1084
    %v1181 = vunpack.c.l.b16 %v1085
    %v1182 = vunpack.c.h.b16 %v1085
    %v1183 = vunpack.c.l.b16 %v1086
    %v1184 = vunpack.c.h.b16 %v1086
    %v1185 = vunpack.c.l.b16 %v1087
    %v1186 = vunpack.c.h.b16 %v1087
    %v1187 = vunpack.c.l.b16 %v1088
    %v1188 = vunpack.c.h.b16 %v1088
    %v1189 = vunpack.c.l.b16 %v1089
    %v1190 = vunpack.c.h.b16 %v1089
    %v1191 = vunpack.c.l.b16 %v1090
    %v1192 = vunpack.c.h.b16 %v1090
    %v1193 = vunpack.c.l.b16 %v1091
    %v1194 = vunpack.c.h.b16 %v1091
    %v1195 = vunpack.c.l.b16 %v1092
    %v1196 = vunpack.c.h.b16 %v1092
    %v1197 = vunpack.c.l.b16 %v1093
    %v1198 = vunpack.c.h.b16 %v1093
    %v1199 = vunpack.c.l.b16 %v1094
    %v1200 = vunpack.c.h.b16 %v1094
    %v1201 = vunpack.c.l.b16 %v1095
    %v1202 = vunpack.c.h.b16 %v1095
    %v1203 = vunpack.c.l.b16 %v1096
    %v1204 = vunpack.c.h.b16 %v1096
    %v1205 = vpack.c.b16 %v1143, %v1141
    %v1206 = vpack.c.b16 %v1144, %v1142
    %v1207 = vpack.c.b16 %v1147, %v1145
    %v1208 = vpack.c.b16 %v1148, %v1146
    %v1209 = vpack.c.b16 %v1151, %v1149
    %v1210 = vpack.c.b16 %v1152, %v1150
    %v1211 = vpack.c.b16 %v1155, %v1153
    %v1212 = vpack.c.b16 %v1156, %v1154
    %v1213 = vpack.c.b16 %v1159, %v1157
    %v1214 = vpack.c.b16 %v1160, %v1158
    %v1215 = vpack.c.b16 %v1163, %v1161
    %v1216 = vpack.c.b16 %v1164, %v1162
    %v1217 = vpack.c.b16 %v1167, %v1165
    %v1218 = vpack.c.b16 %v1168, %v1166
    %v1219 = vpack.c.b16 %v1171, %v1169
    %v1220 = vpack.c.b16 %v1172, %v1170
    %v1221 = vpack.c.b16 %v1175, %v1173
    %v1222 = vpack.c.b16 %v1176, %v1174
    %v1223 = vpack.c.b16 %v1179, %v1177
    %v1224 = vpack.c.b16 %v1180, %v1178
    %v1225 = vpack.c.b16 %v1183, %v1181
    %v1226 = vpack.c.b16 %v1184, %v1182
    %v1227 = vpack.c.b16 %v1187, %v1185
    %v1228 = vpack.c.b16 %v1188, %v1186
    %v1229 = vpack.c.b16 %v1191, %v1189
    %v1230 = vpack.c.b16 %v1192, %v1190
    %v1231 = vpack.c.b16 %v1195, %v1193
    %v1232 = vpack.c.b16 %v1196, %v1194
    %v1233 = vpack.c.b16 %v1199, %v1197
    %v1234 = vpack.c.b16 %v1200, %v1198
    %v1235 = vpack.c.b16 %v1203, %v1201
    %v1236 = vpack.c.b16 %v1204, %v1202
    %1269 = vmatprep.subr.bf16.mxu0 %v1220
    %1270 = vmatpush1.bf16.msra.mxu0 %v1219
    %1271 = vmatprep.subr.bf16.mxu0 %v1218
    %1272 = vmatpush1.bf16.msra.mxu0 %v1217
    %1273 = vmatprep.subr.bf16.mxu0 %v1216
    %1274 = vmatpush1.bf16.msra.mxu0 %v1215
    %1275 = vmatprep.subr.bf16.mxu0 %v1214
    %1276 = vmatpush1.bf16.msra.mxu0 %v1213
    %1277 = vmatprep.subr.bf16.mxu0 %v1212
    %1278 = vmatpush1.bf16.msra.mxu0 %v1211
    %1279 = vmatprep.subr.bf16.mxu0 %v1210
    %1280 = vmatpush1.bf16.msra.mxu0 %v1209
    %1281 = vmatprep.subr.bf16.mxu0 %v1208
    %1282 = vmatpush1.bf16.msra.mxu0 %v1207
    %1283 = vmatprep.subr.bf16.mxu0 %v1206
    %1284 = vmatpush1.bf16.msra.mxu0 %v1205
    %1285 = vmatprep.subr.bf16.mxu0 %v1236
    %1286 = vmatpush2.bf16.msra.mxu0 %v1235
    %1287 = vmatprep.subr.bf16.mxu0 %v1234
    %1288 = vmatpush2.bf16.msra.mxu0 %v1233
    %1289 = vmatprep.subr.bf16.mxu0 %v1232
    %1290 = vmatpush2.bf16.msra.mxu0 %v1231
    %1291 = vmatprep.subr.bf16.mxu0 %v1230
    %1292 = vmatpush2.bf16.msra.mxu0 %v1229
    %1293 = vmatprep.subr.bf16.mxu0 %v1228
    %1294 = vmatpush2.bf16.msra.mxu0 %v1227
    %1295 = vmatprep.subr.bf16.mxu0 %v1226
    %1296 = vmatpush2.bf16.msra.mxu0 %v1225
    %1297 = vmatprep.subr.bf16.mxu0 %v1224
    %1298 = vmatpush2.bf16.msra.mxu0 %v1223
    %1299 = vmatprep.subr.bf16.mxu0 %v1222
    %1300 = vmatpush2.bf16.msra.mxu0 %v1221
    %1301 = vmatprep.mubr.bf16.mxu0 %v1064
    %1302 = vmatmul.mubr.bf16.gmra.mxu0 %v1063
    %v1303 = vpop.f32.mrf.mxu0
    %v1304 = vadd.f32 %v1102, %v1303
    %v1305 = vpop.f32.mrf.mxu0
    %v1306 = vadd.f32 %v1106, %v1305
    %v1307 = vpop.f32.mrf.mxu0
    %v1308 = vadd.f32 %v1102, %v1307
    %v1309 = vpop.f32.mrf.mxu0
    %v1310 = vadd.f32 %v1106, %v1309
    %1311 = vdwg.mxu0
    %v1312 = vpack.c.bf16 %v1308, %v1304
    %v1313 = vpack.c.bf16 %v1310, %v1306
    %v1314 = vxor.u32 %v1312, 2147516416
    %v1315 = vxor.u32 %v1313, 2147516416
    %v1317 = vmul.bf16 %v1314, 1069105081
    %v1318 = vpow.bf16.pop %v1317
    %v1320 = vmul.bf16 %v1315, 1069105081
    %v1321 = vpow.bf16.pop %v1320
    %v1322 = vadd.bf16 %v1318, 1065369472
    %v1323 = vadd.bf16 %v1321, 1065369472
    %v1324 = vrcp.bf16.pop %v1322
    %v1325 = vmul.bf16 1065369472, %v1324
    %v1326 = vrcp.bf16.pop %v1323
    %v1327 = vmul.bf16 1065369472, %v1326
    %v1328 = vpack.c.bf16 %v883, %v879
    %v1330 = vunpack.c.l.b16 %v1328
    %v1331 = vunpack.c.h.b16 %v1328
    %v1332 = vpack.c.b16 %v1330, %v1330
    %v1333 = vpack.c.b16 %v1331, %v1331
    %1336 = vst [vmem:[%s10] sm:$0xf] %v1332
    %1337 = vst [vmem:[%s10 + $0x4] sm:$0xf] %v1333
    %v1340 = vunpack.c.l.b16 %v1325
    %v1341 = vunpack.c.l.b16 %v1327
    %v1342 = vunpack.c.h.b16 %v1325
    %v1343 = vunpack.c.h.b16 %v1327
    %v1344 = vpack.c.b16 %v1341, %v1340
    %v1345 = vpack.c.b16 %v1343, %v1342
    %1348 = vst [vmem:[%s11] sm:$0xff] %v1344
    %1349 = vst [vmem:[%s11 + $0x8] sm:$0xff] %v1345
    %v1350 = vadd.f32 %v881, 1.0
    %v1351 = vadd.f32 %v885, 1.0
    %v1352 = vmul.f32 %v879, %v879
    %v1353 = vmul.f32 %v883, %v883
    %v1354 = vsub.f32 %v1350, %v1352
    %v1355 = vsub.f32 %v1351, %v1353
    %v1356 = vmul.f32 %v890, %v890
    %v1357 = vmul.f32 %v892, %v892
    %v1358 = vsub.f32 %v1354, %v1356
    %v1359 = vsub.f32 %v1355, %v1357
    %1360 = vadd.xlane.f32.xlu0 %v1358
    %v1361 = vpop.xlane.xlu0 %1360
    %1362 = vadd.xlane.f32.xlu0 %v1359
    %v1363 = vpop.xlane.xlu0 %1362
    %p1364 = scmp.ne.s32.totalorder 0, 0
    // Predicated region
    $region62: #{_vae_forward_impl.1} parent=1 // pred_check
      %p1365 = pneg %p1364
    $region63: #{_vae_forward_impl.1} parent=1 // pred_check_branch
      %1367 = sbr.rel (%p1365) target = $region65
    $region64: #{_vae_forward_impl.1} parent=1 // pred_region
      %vm1368 = vcmask 7168
      %v1369 = vsel %vm1368, %v1361, 0.0
      %v1370 = vsel %vm1368, %v1363, 0.0
      %v1371 = vadd.f32 %v1369, %v1370
      %1372 = vadd.xlane.f32.xlu0 %v1371
      %v1373 = vpop.xlane.xlu0 %1372
      %v1374 = vrot.slane %v1373, 4
      %v1375 = vadd.f32 %v1373, %v1374
      %v1376 = vrot.slane %v1375, 2
      %v1377 = vadd.f32 %v1375, %v1376
      %v1378 = vrot.slane %v1377, 1
      %v1379 = vadd.f32 %v1377, %v1378
      %s1380 = vtos %v1379
      %s1381 = smul.f32 %s1380, -0.5
      %v1382 = vstv %s1381
      %1383 = vst [vmem:[%s12] sm:$0xff] %v1382
    $region65: #{_vae_forward_impl.1} parent=1 // pred_fallthru
      _
    %p1384 = scmp.eq.s32.totalorder 0, 0
    // Predicated region
    $region66: #{_vae_forward_impl.1} parent=1 // pred_check
      %p1385 = pneg %p1384
    $region67: #{_vae_forward_impl.1} parent=1 // pred_check_branch
      %1387 = sbr.rel (%p1385) target = $region69
    $region68: #{_vae_forward_impl.1} parent=1 // pred_region
      %v1388 = vlaneseq
      %v1389 = vshrl.u32 %v1388, 7
      %v1390 = vadd.s32 %v1389, 8
      %vm1391 = vcmp.lt.s32.totalorder %v1389, 8
      %vm1392 = vcmp.lt.s32.totalorder %v1390, 8
      %v1393 = vsel %vm1391, %v1361, 0.0
      %v1394 = vsel %vm1392, %v1363, 0.0
      %vm1395 = vcmask 7168
      %v1396 = vsel %vm1395, %v1393, 0.0
      %v1397 = vsel %vm1395, %v1394, 0.0
      %v1398 = vadd.f32 %v1396, %v1397
      %1399 = vadd.xlane.f32.xlu0 %v1398
      %v1400 = vpop.xlane.xlu0 %1399
      %v1401 = vrot.slane %v1400, 4
      %v1402 = vadd.f32 %v1400, %v1401
      %v1403 = vrot.slane %v1402, 2
      %v1404 = vadd.f32 %v1402, %v1403
      %v1405 = vrot.slane %v1404, 1
      %v1406 = vadd.f32 %v1404, %v1405
      %s1407 = vtos %v1406
      %s1408 = smul.f32 %s1407, -0.5
      %v1409 = vstv %s1408
      %1410 = vst [vmem:[%s12] sm:$0xff] %v1409
    $region69: #{_vae_forward_impl.1} parent=1 // pred_fallthru
      _
    // Predicated region
    $region70: #{_vae_forward_impl.1} parent=1 // pred_check
      _
    $region71: #{_vae_forward_impl.1} parent=1 // pred_check_branch
      %1412 = sbr.rel (0) target = $region73
    $region72: #{_vae_forward_impl.1} parent=1 // pred_region
      _
    $region73: #{_vae_forward_impl.1} parent=1 // pred_fallthru
      _
    // Predicated region
    $region74: #{_vae_forward_impl.1} parent=1 // pred_check
      _
    $region75: #{_vae_forward_impl.1} parent=1 // pred_check_branch
      %1414 = sbr.rel (0) target = $region77
    $region76: #{_vae_forward_impl.1} parent=1 // pred_region
      _
    $region77: #{_vae_forward_impl.1} parent=1 // pred_fallthru
      _
    // Predicated region
    $region78: #{_vae_forward_impl.1} parent=1 // pred_check
      _
    $region79: #{_vae_forward_impl.1} parent=1 // pred_check_branch
      %1416 = sbr.rel (0) target = $region81
    $region80: #{_vae_forward_impl.1} parent=1 // pred_region
      _
    $region81: #{_vae_forward_impl.1} parent=1 // pred_fallthru
      _
    // Predicated region
    $region82: #{_vae_forward_impl.1} parent=1 // pred_check
      _
    $region83: #{_vae_forward_impl.1} parent=1 // pred_check_branch
      %1418 = sbr.rel (0) target = $region85
    $region84: #{_vae_forward_impl.1} parent=1 // pred_region
      _
    $region85: #{_vae_forward_impl.1} parent=1 // pred_fallthru
      _
    // Predicated region
    $region86: #{_vae_forward_impl.1} parent=1 // pred_check
      _
    $region87: #{_vae_forward_impl.1} parent=1 // pred_check_branch
      %1420 = sbr.rel (0) target = $region89
    $region88: #{_vae_forward_impl.1} parent=1 // pred_region
      _
    $region89: #{_vae_forward_impl.1} parent=1 // pred_fallthru
      _
    // Predicated region
    $region90: #{_vae_forward_impl.1} parent=1 // pred_check
      _
    $region91: #{_vae_forward_impl.1} parent=1 // pred_check_branch
      %1422 = sbr.rel (0) target = $region93
    $region92: #{_vae_forward_impl.1} parent=1 // pred_region
      _
    $region93: #{_vae_forward_impl.1} parent=1 // pred_fallthru
      _
    %1423 = vsyncpa [#allocation3], 1
    %1424 = vsyncpa [#allocation5], 1
    %1425 = vsyncpa [#allocation8], 1

// kernel: _vae_forward_impl.1
$region0: #{_vae_forward_impl.1}
  #allocation0 [shape = 'u32[]', space=smem, size = 0x4, offset = 0x4, fixed_abs, tag = 'smem constant byte address 0x4 - core index']
  #allocation1 [shape = 'u32[144,128]{1,0:T(1,128)}', space=vmem, size = 0x12000, scoped, tag = 'internal scratch']
  %s0 = inlined_call_operand.vmem [shape: bf16[16,256], index: 0, kind: input, shape index: {}]
  %s1 = inlined_call_operand.vmem [shape: bf16[16,128], index: 1, kind: input, shape index: {}]
  %s2 = inlined_call_operand.hbm [shape: bf16[256,256], index: 2, kind: input, shape index: {}]
  %s3 = inlined_call_operand.hbm [shape: bf16[256,256], index: 3, kind: input, shape index: {}]
  %s4 = inlined_call_operand.hbm [shape: bf16[256,256], index: 4, kind: input, shape index: {}]
  %s5 = inlined_call_operand.hbm [shape: bf16[128,256], index: 5, kind: input, shape index: {}]
  %s6 = inlined_call_operand.hbm [shape: bf16[256,256], index: 6, kind: input, shape index: {}]
  %s7 = inlined_call_operand.vmem [shape: f32[3,256], index: 7, kind: input, shape index: {}]
  %s8 = inlined_call_operand.vmem [shape: f32[1,256], index: 8, kind: input, shape index: {}]
  %s9 = inlined_call_operand.vmem [shape: f32[1,256], index: 9, kind: input, shape index: {}]
  %s10 = inlined_call_operand.vmem [shape: bf16[16,128], index: 10, kind: output, shape index: {0}]
  %s11 = inlined_call_operand.vmem [shape: bf16[16,256], index: 11, kind: output, shape index: {1}]
  %s12 = inlined_call_operand.vmem [shape: f32[1,8,128], index: 12, kind: output, shape index: {2}]
  %13 = xla_tuple %s10, %s11, %s12
  %s14 = sld [smem:[#allocation0]]
  $region94: #{_vae_forward_impl.1} parent=0
    _
  %s16 = ssub.s32 1, %s14
  %s17 = scalar_select 0, %s16, %s14
  $region1: #{_vae_forward_impl.1} parent=0
    #allocation2 [shape = 'u8[131072]{0}', space=vmem, size = 0x20000, scoped, tag = 'input window, operand 2, single buffered']
    #allocation3 [shape = 's32[1]{0}', space=sflag, size = 0x4, scoped, tag = 'scoped memory for _vae_forward_impl.1']
    #allocation4 [shape = 'u8[131072]{0}', space=vmem, size = 0x20000, scoped, tag = 'input window, operand 3, single buffered']
    #allocation5 [shape = 's32[1]{0}', space=sflag, size = 0x4, scoped, tag = 'scoped memory for _vae_forward_impl.1']
    #allocation6 [shape = 'u8[131072]{0}', space=vmem, size = 0x20000, scoped, tag = 'input window, operand 4, single buffered']
    #allocation7 [shape = 'u8[65536]{0}', space=vmem, size = 0x10000, scoped, tag = 'input window, operand 5, single buffered']
    #allocation8 [shape = 's32[1]{0}', space=sflag, size = 0x4, scoped, tag = 'scoped memory for _vae_forward_impl.1']
    #allocation9 [shape = 'u8[131072]{0}', space=vmem, size = 0x20000, scoped, tag = 'input window, operand 6, single buffered']
    %18 = vsyncpa [#allocation3], 0
    %19 = vsyncpa [#allocation5], 0
    %20 = vsyncpa [#allocation8], 0
    // Predicated region
    $region2: #{_vae_forward_impl.1} parent=1 // pred_check
      _
    $region3: #{_vae_forward_impl.1} parent=1 // pred_check_branch
      %22 = sbr.rel (0) target = $region5
    $region4: #{_vae_forward_impl.1} parent=1 // pred_region
      _
    $region5: #{_vae_forward_impl.1} parent=1 // pred_fallthru
      _
    // Predicated region
    $region6: #{_vae_forward_impl.1} parent=1 // pred_check
      _
    $region7: #{_vae_forward_impl.1} parent=1 // pred_check_branch
      %24 = sbr.rel (0) target = $region9
    $region8: #{_vae_forward_impl.1} parent=1 // pred_region
      _
    $region9: #{_vae_forward_impl.1} parent=1 // pred_fallthru
      _
    // Predicated region
    $region10: #{_vae_forward_impl.1} parent=1 // pred_check
      _
    $region11: #{_vae_forward_impl.1} parent=1 // pred_check_branch
      %26 = sbr.rel (0) target = $region13
    $region12: #{_vae_forward_impl.1} parent=1 // pred_region
      %s28 = ssub.s32 4096, 4096
      %29 = vsyncadd [#allocation3], %s28
      %s30 = sshll.u32 [#allocation2], 4
      %s31 = int_to_ptr.vmem [resolvable:$true] %s30
      %36 = dma.hbm_to_vmem [thread:$0]  %s2, 4096, %s31, [#allocation3], 128, 128, 8
    $region13: #{_vae_forward_impl.1} parent=1 // pred_fallthru
      _
    // Predicated region
    $region14: #{_vae_forward_impl.1} parent=1 // pred_check
      _
    $region15: #{_vae_forward_impl.1} parent=1 // pred_check_branch
      %38 = sbr.rel (0) target = $region17
    $region16: #{_vae_forward_impl.1} parent=1 // pred_region
      %s40 = ssub.s32 4096, 4096
      %41 = vsyncadd [#allocation5], %s40
      %s42 = sshll.u32 [#allocation4], 4
      %s43 = int_to_ptr.vmem [resolvable:$true] %s42
      %48 = dma.hbm_to_vmem [thread:$0]  %s3, 4096, %s43, [#allocation5], 128, 128, 8
    $region17: #{_vae_forward_impl.1} parent=1 // pred_fallthru
      _
    // Predicated region
    $region18: #{_vae_forward_impl.1} parent=1 // pred_check
      _
    $region19: #{_vae_forward_impl.1} parent=1 // pred_check_branch
      %50 = sbr.rel (0) target = $region21
    $region20: #{_vae_forward_impl.1} parent=1 // pred_region
      %s52 = ssub.s32 4096, 4096
      %53 = vsyncadd [#allocation5], %s52
      %s54 = sshll.u32 [#allocation6], 4
      %s55 = int_to_ptr.vmem [resolvable:$true] %s54
      %60 = dma.hbm_to_vmem [thread:$0]  %s4, 4096, %s55, [#allocation5], 128, 128, 8
    $region21: #{_vae_forward_impl.1} parent=1 // pred_fallthru
      _
    // Predicated region
    $region22: #{_vae_forward_impl.1} parent=1 // pred_check
      _
    $region23: #{_vae_forward_impl.1} parent=1 // pred_check_branch
      %62 = sbr.rel (0) target = $region25
    $region24: #{_vae_forward_impl.1} parent=1 // pred_region
      %s64 = ssub.s32 2048, 2048
      %65 = vsyncadd [#allocation8], %s64
      %s66 = sshll.u32 [#allocation7], 4
      %s67 = int_to_ptr.vmem [resolvable:$true] %s66
      %72 = dma.hbm_to_vmem [thread:$0]  %s5, 2048, %s67, [#allocation8], 128, 128, 8
    $region25: #{_vae_forward_impl.1} parent=1 // pred_fallthru
      _
    // Predicated region
    $region26: #{_vae_forward_impl.1} parent=1 // pred_check
      _
    $region27: #{_vae_forward_impl.1} parent=1 // pred_check_branch
      %74 = sbr.rel (0) target = $region29
    $region28: #{_vae_forward_impl.1} parent=1 // pred_region
      %s76 = ssub.s32 4096, 4096
      %77 = vsyncadd [#allocation8], %s76
      %s78 = sshll.u32 [#allocation9], 4
      %s79 = int_to_ptr.vmem [resolvable:$true] %s78
      %84 = dma.hbm_to_vmem [thread:$0]  %s6, 4096, %s79, [#allocation8], 128, 128, 8
    $region29: #{_vae_forward_impl.1} parent=1 // pred_fallthru
      _
    // Predicated region
    $region30: #{_vae_forward_impl.1} parent=1 // pred_check
      _
    $region31: #{_vae_forward_impl.1} parent=1 // pred_check_branch
      %86 = sbr.rel (0) target = $region33
    $region32: #{_vae_forward_impl.1} parent=1 // pred_region
      _
    $region33: #{_vae_forward_impl.1} parent=1 // pred_fallthru
      _
    // Predicated region
    $region34: #{_vae_forward_impl.1} parent=1 // pred_check
      _
    $region35: #{_vae_forward_impl.1} parent=1 // pred_check_branch
      %88 = sbr.rel (0) target = $region37
    $region36: #{_vae_forward_impl.1} parent=1 // pred_region
      _
    $region37: #{_vae_forward_impl.1} parent=1 // pred_fallthru
      _
    // Predicated region
    $region38: #{_vae_forward_impl.1} parent=1 // pred_check
      _
    $region39: #{_vae_forward_impl.1} parent=1 // pred_check_branch
      %90 = sbr.rel (0) target = $region41
    $region40: #{_vae_forward_impl.1} parent=1 // pred_region
      _
    $region41: #{_vae_forward_impl.1} parent=1 // pred_fallthru
      _
    // Predicated region
    $region42: #{_vae_forward_impl.1} parent=1 // pred_check
      _
    $region43: #{_vae_forward_impl.1} parent=1 // pred_check_branch
      %92 = sbr.rel (0) target = $region45
    $region44: #{_vae_forward_impl.1} parent=1 // pred_region
      %93 = dma.done [#allocation3], 4096
    $region45: #{_vae_forward_impl.1} parent=1 // pred_fallthru
      _
    // Predicated region
    $region46: #{_vae_forward_impl.1} parent=1 // pred_check
      _
    $region47: #{_vae_forward_impl.1} parent=1 // pred_check_branch
      %95 = sbr.rel (0) target = $region49
    $region48: #{_vae_forward_impl.1} parent=1 // pred_region
      %96 = dma.done [#allocation5], 4096
    $region49: #{_vae_forward_impl.1} parent=1 // pred_fallthru
      _
    // Predicated region
    $region50: #{_vae_forward_impl.1} parent=1 // pred_check
      _
    $region51: #{_vae_forward_impl.1} parent=1 // pred_check_branch
      %98 = sbr.rel (0) target = $region53
    $region52: #{_vae_forward_impl.1} parent=1 // pred_region
      %99 = dma.done [#allocation5], 4096
    $region53: #{_vae_forward_impl.1} parent=1 // pred_fallthru
      _
    // Predicated region
    $region54: #{_vae_forward_impl.1} parent=1 // pred_check
      _
    $region55: #{_vae_forward_impl.1} parent=1 // pred_check_branch
      %101 = sbr.rel (0) target = $region57
    $region56: #{_vae_forward_impl.1} parent=1 // pred_region
      %102 = dma.done [#allocation8], 2048
    $region57: #{_vae_forward_impl.1} parent=1 // pred_fallthru
      _
    // Predicated region
    $region58: #{_vae_forward_impl.1} parent=1 // pred_check
      _
    $region59: #{_vae_forward_impl.1} parent=1 // pred_check_branch
      %104 = sbr.rel (0) target = $region61
    $region60: #{_vae_forward_impl.1} parent=1 // pred_region
      %105 = dma.done [#allocation8], 4096
    $region61: #{_vae_forward_impl.1} parent=1 // pred_fallthru
      _
    %v107 = vld [vmem:[%s0] sm:$0xff]
    %v108 = vld [vmem:[%s0 + $0x8] sm:$0xff]
    %v109 = vld [vmem:[%s7] sm:$0x77]
    %v110 = vld [vmem:[#allocation2] sm:$0xff]
    %v111 = vld [vmem:[#allocation2 + $0x8] sm:$0xff]
    %v112 = vld [vmem:[#allocation2 + $0x10] sm:$0xff]
    %v113 = vld [vmem:[#allocation2 + $0x18] sm:$0xff]
    %v114 = vld [vmem:[#allocation2 + $0x20] sm:$0xff]
    %v115 = vld [vmem:[#allocation2 + $0x28] sm:$0xff]
    %v116 = vld [vmem:[#allocation2 + $0x30] sm:$0xff]
    %v117 = vld [vmem:[#allocation2 + $0x38] sm:$0xff]
    %v118 = vld [vmem:[#allocation2 + $0x40] sm:$0xff]
    %v119 = vld [vmem:[#allocation2 + $0x48] sm:$0xff]
    %v120 = vld [vmem:[#allocation2 + $0x50] sm:$0xff]
    %v121 = vld [vmem:[#allocation2 + $0x58] sm:$0xff]
    %v122 = vld [vmem:[#allocation2 + $0x60] sm:$0xff]
    %v123 = vld [vmem:[#allocation2 + $0x68] sm:$0xff]
    %v124 = vld [vmem:[#allocation2 + $0x70] sm:$0xff]
    %v125 = vld [vmem:[#allocation2 + $0x78] sm:$0xff]
    %v126 = vld [vmem:[#allocation2 + $0x80] sm:$0xff]
    %v127 = vld [vmem:[#allocation2 + $0x88] sm:$0xff]
    %v128 = vld [vmem:[#allocation2 + $0x90] sm:$0xff]
    %v129 = vld [vmem:[#allocation2 + $0x98] sm:$0xff]
    %v130 = vld [vmem:[#allocation2 + $0xa0] sm:$0xff]
    %v131 = vld [vmem:[#allocation2 + $0xa8] sm:$0xff]
    %v132 = vld [vmem:[#allocation2 + $0xb0] sm:$0xff]
    %v133 = vld [vmem:[#allocation2 + $0xb8] sm:$0xff]
    %v134 = vld [vmem:[#allocation2 + $0xc0] sm:$0xff]
    %v135 = vld [vmem:[#allocation2 + $0xc8] sm:$0xff]
    %v136 = vld [vmem:[#allocation2 + $0xd0] sm:$0xff]
    %v137 = vld [vmem:[#allocation2 + $0xd8] sm:$0xff]
    %v138 = vld [vmem:[#allocation2 + $0xe0] sm:$0xff]
    %v139 = vld [vmem:[#allocation2 + $0xe8] sm:$0xff]
    %v140 = vld [vmem:[#allocation2 + $0xf0] sm:$0xff]
    %v141 = vld [vmem:[#allocation2 + $0xf8] sm:$0xff]
    %v143 = vlaneseq
    %v144 = vshrl.u32 %v143, 7
    %v145 = vsub.s32 0, %v144
    %v146 = vrot.slane %v109, %v145
    %v147 = vlaneseq
    %v148 = vshrl.u32 %v147, 7
    %v149 = vsub.s32 4, %v148
    %v150 = vrot.slane %v109, %v149
    %v153 = vlaneseq
    %v154 = vshrl.u32 %v153, 7
    %v155 = vsub.s32 0, %v154
    %v156 = vrot.slane %v146, %v155
    %v157 = vlaneseq
    %v158 = vshrl.u32 %v157, 7
    %v159 = vsub.s32 0, %v158
    %v160 = vrot.slane %v150, %v159
    %v163 = vunpack.c.l.b16 %v107
    %v164 = vunpack.c.h.b16 %v107
    %v165 = vunpack.c.l.b16 %v108
    %v166 = vunpack.c.h.b16 %v108
    %v167 = vpack.c.b16 %v165, %v163
    %v168 = vpack.c.b16 %v166, %v164
    %v203 = vunpack.c.l.b16 %v110
    %v204 = vunpack.c.h.b16 %v110
    %v205 = vunpack.c.l.b16 %v111
    %v206 = vunpack.c.h.b16 %v111
    %v207 = vunpack.c.l.b16 %v112
    %v208 = vunpack.c.h.b16 %v112
    %v209 = vunpack.c.l.b16 %v113
    %v210 = vunpack.c.h.b16 %v113
    %v211 = vunpack.c.l.b16 %v114
    %v212 = vunpack.c.h.b16 %v114
    %v213 = vunpack.c.l.b16 %v115
    %v214 = vunpack.c.h.b16 %v115
    %v215 = vunpack.c.l.b16 %v116
    %v216 = vunpack.c.h.b16 %v116
    %v217 = vunpack.c.l.b16 %v117
    %v218 = vunpack.c.h.b16 %v117
    %v219 = vunpack.c.l.b16 %v118
    %v220 = vunpack.c.h.b16 %v118
    %v221 = vunpack.c.l.b16 %v119
    %v222 = vunpack.c.h.b16 %v119
    %v223 = vunpack.c.l.b16 %v120
    %v224 = vunpack.c.h.b16 %v120
    %v225 = vunpack.c.l.b16 %v121
    %v226 = vunpack.c.h.b16 %v121
    %v227 = vunpack.c.l.b16 %v122
    %v228 = vunpack.c.h.b16 %v122
    %v229 = vunpack.c.l.b16 %v123
    %v230 = vunpack.c.h.b16 %v123
    %v231 = vunpack.c.l.b16 %v124
    %v232 = vunpack.c.h.b16 %v124
    %v233 = vunpack.c.l.b16 %v125
    %v234 = vunpack.c.h.b16 %v125
    %v235 = vunpack.c.l.b16 %v126
    %v236 = vunpack.c.h.b16 %v126
    %v237 = vunpack.c.l.b16 %v127
    %v238 = vunpack.c.h.b16 %v127
    %v239 = vunpack.c.l.b16 %v128
    %v240 = vunpack.c.h.b16 %v128
    %v241 = vunpack.c.l.b16 %v129
    %v242 = vunpack.c.h.b16 %v129
    %v243 = vunpack.c.l.b16 %v130
    %v244 = vunpack.c.h.b16 %v130
    %v245 = vunpack.c.l.b16 %v131
    %v246 = vunpack.c.h.b16 %v131
    %v247 = vunpack.c.l.b16 %v132
    %v248 = vunpack.c.h.b16 %v132
    %v249 = vunpack.c.l.b16 %v133
    %v250 = vunpack.c.h.b16 %v133
    %v251 = vunpack.c.l.b16 %v134
    %v252 = vunpack.c.h.b16 %v134
    %v253 = vunpack.c.l.b16 %v135
    %v254 = vunpack.c.h.b16 %v135
    %v255 = vunpack.c.l.b16 %v136
    %v256 = vunpack.c.h.b16 %v136
    %v257 = vunpack.c.l.b16 %v137
    %v258 = vunpack.c.h.b16 %v137
    %v259 = vunpack.c.l.b16 %v138
    %v260 = vunpack.c.h.b16 %v138
    %v261 = vunpack.c.l.b16 %v139
    %v262 = vunpack.c.h.b16 %v139
    %v263 = vunpack.c.l.b16 %v140
    %v264 = vunpack.c.h.b16 %v140
    %v265 = vunpack.c.l.b16 %v141
    %v266 = vunpack.c.h.b16 %v141
    %v267 = vpack.c.b16 %v205, %v203
    %v268 = vpack.c.b16 %v206, %v204
    %v269 = vpack.c.b16 %v209, %v207
    %v270 = vpack.c.b16 %v210, %v208
    %v271 = vpack.c.b16 %v213, %v211
    %v272 = vpack.c.b16 %v214, %v212
    %v273 = vpack.c.b16 %v217, %v215
    %v274 = vpack.c.b16 %v218, %v216
    %v275 = vpack.c.b16 %v221, %v219
    %v276 = vpack.c.b16 %v222, %v220
    %v277 = vpack.c.b16 %v225, %v223
    %v278 = vpack.c.b16 %v226, %v224
    %v279 = vpack.c.b16 %v229, %v227
    %v280 = vpack.c.b16 %v230, %v228
    %v281 = vpack.c.b16 %v233, %v231
    %v282 = vpack.c.b16 %v234, %v232
    %v283 = vpack.c.b16 %v237, %v235
    %v284 = vpack.c.b16 %v238, %v236
    %v285 = vpack.c.b16 %v241, %v239
    %v286 = vpack.c.b16 %v242, %v240
    %v287 = vpack.c.b16 %v245, %v243
    %v288 = vpack.c.b16 %v246, %v244
    %v289 = vpack.c.b16 %v249, %v247
    %v290 = vpack.c.b16 %v250, %v248
    %v291 = vpack.c.b16 %v253, %v251
    %v292 = vpack.c.b16 %v254, %v252
    %v293 = vpack.c.b16 %v257, %v255
    %v294 = vpack.c.b16 %v258, %v256
    %v295 = vpack.c.b16 %v261, %v259
    %v296 = vpack.c.b16 %v262, %v260
    %v297 = vpack.c.b16 %v265, %v263
    %v298 = vpack.c.b16 %v266, %v264
    %331 = vmatprep.subr.bf16.mxu0 %v282
    %332 = vmatpush1.bf16.msra.mxu0 %v281
    %333 = vmatprep.subr.bf16.mxu0 %v280
    %334 = vmatpush1.bf16.msra.mxu0 %v279
    %335 = vmatprep.subr.bf16.mxu0 %v278
    %336 = vmatpush1.bf16.msra.mxu0 %v277
    %337 = vmatprep.subr.bf16.mxu0 %v276
    %338 = vmatpush1.bf16.msra.mxu0 %v275
    %339 = vmatprep.subr.bf16.mxu0 %v274
    %340 = vmatpush1.bf16.msra.mxu0 %v273
    %341 = vmatprep.subr.bf16.mxu0 %v272
    %342 = vmatpush1.bf16.msra.mxu0 %v271
    %343 = vmatprep.subr.bf16.mxu0 %v270
    %344 = vmatpush1.bf16.msra.mxu0 %v269
    %345 = vmatprep.subr.bf16.mxu0 %v268
    %346 = vmatpush1.bf16.msra.mxu0 %v267
    %347 = vmatprep.subr.bf16.mxu0 %v298
    %348 = vmatpush2.bf16.msra.mxu0 %v297
    %349 = vmatprep.subr.bf16.mxu0 %v296
    %350 = vmatpush2.bf16.msra.mxu0 %v295
    %351 = vmatprep.subr.bf16.mxu0 %v294
    %352 = vmatpush2.bf16.msra.mxu0 %v293
    %353 = vmatprep.subr.bf16.mxu0 %v292
    %354 = vmatpush2.bf16.msra.mxu0 %v291
    %355 = vmatprep.subr.bf16.mxu0 %v290
    %356 = vmatpush2.bf16.msra.mxu0 %v289
    %357 = vmatprep.subr.bf16.mxu0 %v288
    %358 = vmatpush2.bf16.msra.mxu0 %v287
    %359 = vmatprep.subr.bf16.mxu0 %v286
    %360 = vmatpush2.bf16.msra.mxu0 %v285
    %361 = vmatprep.subr.bf16.mxu0 %v284
    %362 = vmatpush2.bf16.msra.mxu0 %v283
    %363 = vmatprep.mubr.bf16.mxu0 %v168
    %364 = vmatmul.mubr.bf16.gmra.mxu0 %v167
    %v365 = vpop.f32.mrf.mxu0
    %v366 = vadd.f32 %v156, %v365
    %v367 = vpop.f32.mrf.mxu0
    %v368 = vadd.f32 %v160, %v367
    %v369 = vpop.f32.mrf.mxu0
    %v370 = vadd.f32 %v156, %v369
    %v371 = vpop.f32.mrf.mxu0
    %v372 = vadd.f32 %v160, %v371
    %373 = vdwg.mxu0
    %v374 = vmax.f32 %v366, 0.0
    %v375 = vmax.f32 %v368, 0.0
    %v376 = vmax.f32 %v370, 0.0
    %v377 = vmax.f32 %v372, 0.0
    %v378 = vpack.c.bf16 %v376, %v374
    %v379 = vpack.c.bf16 %v377, %v375
    %v380 = vld [vmem:[#allocation4] sm:$0xff]
    %v381 = vld [vmem:[#allocation4 + $0x8] sm:$0xff]
    %v382 = vld [vmem:[#allocation4 + $0x10] sm:$0xff]
    %v383 = vld [vmem:[#allocation4 + $0x18] sm:$0xff]
    %v384 = vld [vmem:[#allocation4 + $0x20] sm:$0xff]
    %v385 = vld [vmem:[#allocation4 + $0x28] sm:$0xff]
    %v386 = vld [vmem:[#allocation4 + $0x30] sm:$0xff]
    %v387 = vld [vmem:[#allocation4 + $0x38] sm:$0xff]
    %v388 = vld [vmem:[#allocation4 + $0x40] sm:$0xff]
    %v389 = vld [vmem:[#allocation4 + $0x48] sm:$0xff]
    %v390 = vld [vmem:[#allocation4 + $0x50] sm:$0xff]
    %v391 = vld [vmem:[#allocation4 + $0x58] sm:$0xff]
    %v392 = vld [vmem:[#allocation4 + $0x60] sm:$0xff]
    %v393 = vld [vmem:[#allocation4 + $0x68] sm:$0xff]
    %v394 = vld [vmem:[#allocation4 + $0x70] sm:$0xff]
    %v395 = vld [vmem:[#allocation4 + $0x78] sm:$0xff]
    %v396 = vld [vmem:[#allocation4 + $0x80] sm:$0xff]
    %v397 = vld [vmem:[#allocation4 + $0x88] sm:$0xff]
    %v398 = vld [vmem:[#allocation4 + $0x90] sm:$0xff]
    %v399 = vld [vmem:[#allocation4 + $0x98] sm:$0xff]
    %v400 = vld [vmem:[#allocation4 + $0xa0] sm:$0xff]
    %v401 = vld [vmem:[#allocation4 + $0xa8] sm:$0xff]
    %v402 = vld [vmem:[#allocation4 + $0xb0] sm:$0xff]
    %v403 = vld [vmem:[#allocation4 + $0xb8] sm:$0xff]
    %v404 = vld [vmem:[#allocation4 + $0xc0] sm:$0xff]
    %v405 = vld [vmem:[#allocation4 + $0xc8] sm:$0xff]
    %v406 = vld [vmem:[#allocation4 + $0xd0] sm:$0xff]
    %v407 = vld [vmem:[#allocation4 + $0xd8] sm:$0xff]
    %v408 = vld [vmem:[#allocation4 + $0xe0] sm:$0xff]
    %v409 = vld [vmem:[#allocation4 + $0xe8] sm:$0xff]
    %v410 = vld [vmem:[#allocation4 + $0xf0] sm:$0xff]
    %v411 = vld [vmem:[#allocation4 + $0xf8] sm:$0xff]
    %v412 = vlaneseq
    %v413 = vshrl.u32 %v412, 7
    %v414 = vsub.s32 1, %v413
    %v415 = vrot.slane %v109, %v414
    %v416 = vlaneseq
    %v417 = vshrl.u32 %v416, 7
    %v418 = vsub.s32 5, %v417
    %v419 = vrot.slane %v109, %v418
    %v422 = vlaneseq
    %v423 = vshrl.u32 %v422, 7
    %v424 = vsub.s32 1, %v423
    %v425 = vrot.slane %v415, %v424
    %v426 = vlaneseq
    %v427 = vshrl.u32 %v426, 7
    %v428 = vsub.s32 1, %v427
    %v429 = vrot.slane %v419, %v428
    %v462 = vunpack.c.l.b16 %v380
    %v463 = vunpack.c.h.b16 %v380
    %v464 = vunpack.c.l.b16 %v381
    %v465 = vunpack.c.h.b16 %v381
    %v466 = vunpack.c.l.b16 %v382
    %v467 = vunpack.c.h.b16 %v382
    %v468 = vunpack.c.l.b16 %v383
    %v469 = vunpack.c.h.b16 %v383
    %v470 = vunpack.c.l.b16 %v384
    %v471 = vunpack.c.h.b16 %v384
    %v472 = vunpack.c.l.b16 %v385
    %v473 = vunpack.c.h.b16 %v385
    %v474 = vunpack.c.l.b16 %v386
    %v475 = vunpack.c.h.b16 %v386
    %v476 = vunpack.c.l.b16 %v387
    %v477 = vunpack.c.h.b16 %v387
    %v478 = vunpack.c.l.b16 %v388
    %v479 = vunpack.c.h.b16 %v388
    %v480 = vunpack.c.l.b16 %v389
    %v481 = vunpack.c.h.b16 %v389
    %v482 = vunpack.c.l.b16 %v390
    %v483 = vunpack.c.h.b16 %v390
    %v484 = vunpack.c.l.b16 %v391
    %v485 = vunpack.c.h.b16 %v391
    %v486 = vunpack.c.l.b16 %v392
    %v487 = vunpack.c.h.b16 %v392
    %v488 = vunpack.c.l.b16 %v393
    %v489 = vunpack.c.h.b16 %v393
    %v490 = vunpack.c.l.b16 %v394
    %v491 = vunpack.c.h.b16 %v394
    %v492 = vunpack.c.l.b16 %v395
    %v493 = vunpack.c.h.b16 %v395
    %v494 = vunpack.c.l.b16 %v396
    %v495 = vunpack.c.h.b16 %v396
    %v496 = vunpack.c.l.b16 %v397
    %v497 = vunpack.c.h.b16 %v397
    %v498 = vunpack.c.l.b16 %v398
    %v499 = vunpack.c.h.b16 %v398
    %v500 = vunpack.c.l.b16 %v399
    %v501 = vunpack.c.h.b16 %v399
    %v502 = vunpack.c.l.b16 %v400
    %v503 = vunpack.c.h.b16 %v400
    %v504 = vunpack.c.l.b16 %v401
    %v505 = vunpack.c.h.b16 %v401
    %v506 = vunpack.c.l.b16 %v402
    %v507 = vunpack.c.h.b16 %v402
    %v508 = vunpack.c.l.b16 %v403
    %v509 = vunpack.c.h.b16 %v403
    %v510 = vunpack.c.l.b16 %v404
    %v511 = vunpack.c.h.b16 %v404
    %v512 = vunpack.c.l.b16 %v405
    %v513 = vunpack.c.h.b16 %v405
    %v514 = vunpack.c.l.b16 %v406
    %v515 = vunpack.c.h.b16 %v406
    %v516 = vunpack.c.l.b16 %v407
    %v517 = vunpack.c.h.b16 %v407
    %v518 = vunpack.c.l.b16 %v408
    %v519 = vunpack.c.h.b16 %v408
    %v520 = vunpack.c.l.b16 %v409
    %v521 = vunpack.c.h.b16 %v409
    %v522 = vunpack.c.l.b16 %v410
    %v523 = vunpack.c.h.b16 %v410
    %v524 = vunpack.c.l.b16 %v411
    %v525 = vunpack.c.h.b16 %v411
    %v526 = vpack.c.b16 %v464, %v462
    %v527 = vpack.c.b16 %v465, %v463
    %v528 = vpack.c.b16 %v468, %v466
    %v529 = vpack.c.b16 %v469, %v467
    %v530 = vpack.c.b16 %v472, %v470
    %v531 = vpack.c.b16 %v473, %v471
    %v532 = vpack.c.b16 %v476, %v474
    %v533 = vpack.c.b16 %v477, %v475
    %v534 = vpack.c.b16 %v480, %v478
    %v535 = vpack.c.b16 %v481, %v479
    %v536 = vpack.c.b16 %v484, %v482
    %v537 = vpack.c.b16 %v485, %v483
    %v538 = vpack.c.b16 %v488, %v486
    %v539 = vpack.c.b16 %v489, %v487
    %v540 = vpack.c.b16 %v492, %v490
    %v541 = vpack.c.b16 %v493, %v491
    %v542 = vpack.c.b16 %v496, %v494
    %v543 = vpack.c.b16 %v497, %v495
    %v544 = vpack.c.b16 %v500, %v498
    %v545 = vpack.c.b16 %v501, %v499
    %v546 = vpack.c.b16 %v504, %v502
    %v547 = vpack.c.b16 %v505, %v503
    %v548 = vpack.c.b16 %v508, %v506
    %v549 = vpack.c.b16 %v509, %v507
    %v550 = vpack.c.b16 %v512, %v510
    %v551 = vpack.c.b16 %v513, %v511
    %v552 = vpack.c.b16 %v516, %v514
    %v553 = vpack.c.b16 %v517, %v515
    %v554 = vpack.c.b16 %v520, %v518
    %v555 = vpack.c.b16 %v521, %v519
    %v556 = vpack.c.b16 %v524, %v522
    %v557 = vpack.c.b16 %v525, %v523
    %590 = vmatprep.subr.bf16.mxu0 %v541
    %591 = vmatpush1.bf16.msra.mxu0 %v540
    %592 = vmatprep.subr.bf16.mxu0 %v539
    %593 = vmatpush1.bf16.msra.mxu0 %v538
    %594 = vmatprep.subr.bf16.mxu0 %v537
    %595 = vmatpush1.bf16.msra.mxu0 %v536
    %596 = vmatprep.subr.bf16.mxu0 %v535
    %597 = vmatpush1.bf16.msra.mxu0 %v534
    %598 = vmatprep.subr.bf16.mxu0 %v533
    %599 = vmatpush1.bf16.msra.mxu0 %v532
    %600 = vmatprep.subr.bf16.mxu0 %v531
    %601 = vmatpush1.bf16.msra.mxu0 %v530
    %602 = vmatprep.subr.bf16.mxu0 %v529
    %603 = vmatpush1.bf16.msra.mxu0 %v528
    %604 = vmatprep.subr.bf16.mxu0 %v527
    %605 = vmatpush1.bf16.msra.mxu0 %v526
    %606 = vmatprep.subr.bf16.mxu0 %v557
    %607 = vmatpush2.bf16.msra.mxu0 %v556
    %608 = vmatprep.subr.bf16.mxu0 %v555
    %609 = vmatpush2.bf16.msra.mxu0 %v554
    %610 = vmatprep.subr.bf16.mxu0 %v553
    %611 = vmatpush2.bf16.msra.mxu0 %v552
    %612 = vmatprep.subr.bf16.mxu0 %v551
    %613 = vmatpush2.bf16.msra.mxu0 %v550
    %614 = vmatprep.subr.bf16.mxu0 %v549
    %615 = vmatpush2.bf16.msra.mxu0 %v548
    %616 = vmatprep.subr.bf16.mxu0 %v547
    %617 = vmatpush2.bf16.msra.mxu0 %v546
    %618 = vmatprep.subr.bf16.mxu0 %v545
    %619 = vmatpush2.bf16.msra.mxu0 %v544
    %620 = vmatprep.subr.bf16.mxu0 %v543
    %621 = vmatpush2.bf16.msra.mxu0 %v542
    %622 = vmatprep.mubr.bf16.mxu0 %v379
    %623 = vmatmul.mubr.bf16.gmra.mxu0 %v378
    %v624 = vpop.f32.mrf.mxu0
    %v625 = vadd.f32 %v425, %v624
    %v626 = vpop.f32.mrf.mxu0
    %v627 = vadd.f32 %v429, %v626
    %v628 = vpop.f32.mrf.mxu0
    %v629 = vadd.f32 %v425, %v628
    %v630 = vpop.f32.mrf.mxu0
    %v631 = vadd.f32 %v429, %v630
    %632 = vdwg.mxu0
    %v633 = vmax.f32 %v625, 0.0
    %v634 = vmax.f32 %v627, 0.0
    %v635 = vmax.f32 %v629, 0.0
    %v636 = vmax.f32 %v631, 0.0
    %v637 = vpack.c.bf16 %v635, %v633
    %v638 = vpack.c.bf16 %v636, %v634
    %v639 = vld [vmem:[#allocation6] sm:$0xff]
    %v640 = vld [vmem:[#allocation6 + $0x8] sm:$0xff]
    %v641 = vld [vmem:[#allocation6 + $0x10] sm:$0xff]
    %v642 = vld [vmem:[#allocation6 + $0x18] sm:$0xff]
    %v643 = vld [vmem:[#allocation6 + $0x20] sm:$0xff]
    %v644 = vld [vmem:[#allocation6 + $0x28] sm:$0xff]
    %v645 = vld [vmem:[#allocation6 + $0x30] sm:$0xff]
    %v646 = vld [vmem:[#allocation6 + $0x38] sm:$0xff]
    %v647 = vld [vmem:[#allocation6 + $0x40] sm:$0xff]
    %v648 = vld [vmem:[#allocation6 + $0x48] sm:$0xff]
    %v649 = vld [vmem:[#allocation6 + $0x50] sm:$0xff]
    %v650 = vld [vmem:[#allocation6 + $0x58] sm:$0xff]
    %v651 = vld [vmem:[#allocation6 + $0x60] sm:$0xff]
    %v652 = vld [vmem:[#allocation6 + $0x68] sm:$0xff]
    %v653 = vld [vmem:[#allocation6 + $0x70] sm:$0xff]
    %v654 = vld [vmem:[#allocation6 + $0x78] sm:$0xff]
    %v655 = vld [vmem:[#allocation6 + $0x80] sm:$0xff]
    %v656 = vld [vmem:[#allocation6 + $0x88] sm:$0xff]
    %v657 = vld [vmem:[#allocation6 + $0x90] sm:$0xff]
    %v658 = vld [vmem:[#allocation6 + $0x98] sm:$0xff]
    %v659 = vld [vmem:[#allocation6 + $0xa0] sm:$0xff]
    %v660 = vld [vmem:[#allocation6 + $0xa8] sm:$0xff]
    %v661 = vld [vmem:[#allocation6 + $0xb0] sm:$0xff]
    %v662 = vld [vmem:[#allocation6 + $0xb8] sm:$0xff]
    %v663 = vld [vmem:[#allocation6 + $0xc0] sm:$0xff]
    %v664 = vld [vmem:[#allocation6 + $0xc8] sm:$0xff]
    %v665 = vld [vmem:[#allocation6 + $0xd0] sm:$0xff]
    %v666 = vld [vmem:[#allocation6 + $0xd8] sm:$0xff]
    %v667 = vld [vmem:[#allocation6 + $0xe0] sm:$0xff]
    %v668 = vld [vmem:[#allocation6 + $0xe8] sm:$0xff]
    %v669 = vld [vmem:[#allocation6 + $0xf0] sm:$0xff]
    %v670 = vld [vmem:[#allocation6 + $0xf8] sm:$0xff]
    %v671 = vld [vmem:[%s8] sm:$0x3]
    %v673 = vlaneseq
    %v674 = vshrl.u32 %v673, 7
    %v675 = vsub.s32 0, %v674
    %v676 = vrot.slane %v671, %v675
    %v677 = vlaneseq
    %v678 = vshrl.u32 %v677, 7
    %v679 = vsub.s32 1, %v678
    %v680 = vrot.slane %v671, %v679
    %v715 = vunpack.c.l.b16 %v639
    %v716 = vunpack.c.h.b16 %v639
    %v717 = vunpack.c.l.b16 %v640
    %v718 = vunpack.c.h.b16 %v640
    %v719 = vunpack.c.l.b16 %v641
    %v720 = vunpack.c.h.b16 %v641
    %v721 = vunpack.c.l.b16 %v642
    %v722 = vunpack.c.h.b16 %v642
    %v723 = vunpack.c.l.b16 %v643
    %v724 = vunpack.c.h.b16 %v643
    %v725 = vunpack.c.l.b16 %v644
    %v726 = vunpack.c.h.b16 %v644
    %v727 = vunpack.c.l.b16 %v645
    %v728 = vunpack.c.h.b16 %v645
    %v729 = vunpack.c.l.b16 %v646
    %v730 = vunpack.c.h.b16 %v646
    %v731 = vunpack.c.l.b16 %v647
    %v732 = vunpack.c.h.b16 %v647
    %v733 = vunpack.c.l.b16 %v648
    %v734 = vunpack.c.h.b16 %v648
    %v735 = vunpack.c.l.b16 %v649
    %v736 = vunpack.c.h.b16 %v649
    %v737 = vunpack.c.l.b16 %v650
    %v738 = vunpack.c.h.b16 %v650
    %v739 = vunpack.c.l.b16 %v651
    %v740 = vunpack.c.h.b16 %v651
    %v741 = vunpack.c.l.b16 %v652
    %v742 = vunpack.c.h.b16 %v652
    %v743 = vunpack.c.l.b16 %v653
    %v744 = vunpack.c.h.b16 %v653
    %v745 = vunpack.c.l.b16 %v654
    %v746 = vunpack.c.h.b16 %v654
    %v747 = vunpack.c.l.b16 %v655
    %v748 = vunpack.c.h.b16 %v655
    %v749 = vunpack.c.l.b16 %v656
    %v750 = vunpack.c.h.b16 %v656
    %v751 = vunpack.c.l.b16 %v657
    %v752 = vunpack.c.h.b16 %v657
    %v753 = vunpack.c.l.b16 %v658
    %v754 = vunpack.c.h.b16 %v658
    %v755 = vunpack.c.l.b16 %v659
    %v756 = vunpack.c.h.b16 %v659
    %v757 = vunpack.c.l.b16 %v660
    %v758 = vunpack.c.h.b16 %v660
    %v759 = vunpack.c.l.b16 %v661
    %v760 = vunpack.c.h.b16 %v661
    %v761 = vunpack.c.l.b16 %v662
    %v762 = vunpack.c.h.b16 %v662
    %v763 = vunpack.c.l.b16 %v663
    %v764 = vunpack.c.h.b16 %v663
    %v765 = vunpack.c.l.b16 %v664
    %v766 = vunpack.c.h.b16 %v664
    %v767 = vunpack.c.l.b16 %v665
    %v768 = vunpack.c.h.b16 %v665
    %v769 = vunpack.c.l.b16 %v666
    %v770 = vunpack.c.h.b16 %v666
    %v771 = vunpack.c.l.b16 %v667
    %v772 = vunpack.c.h.b16 %v667
    %v773 = vunpack.c.l.b16 %v668
    %v774 = vunpack.c.h.b16 %v668
    %v775 = vunpack.c.l.b16 %v669
    %v776 = vunpack.c.h.b16 %v669
    %v777 = vunpack.c.l.b16 %v670
    %v778 = vunpack.c.h.b16 %v670
    %v779 = vpack.c.b16 %v717, %v715
    %v780 = vpack.c.b16 %v718, %v716
    %v781 = vpack.c.b16 %v721, %v719
    %v782 = vpack.c.b16 %v722, %v720
    %v783 = vpack.c.b16 %v725, %v723
    %v784 = vpack.c.b16 %v726, %v724
    %v785 = vpack.c.b16 %v729, %v727
    %v786 = vpack.c.b16 %v730, %v728
    %v787 = vpack.c.b16 %v733, %v731
    %v788 = vpack.c.b16 %v734, %v732
    %v789 = vpack.c.b16 %v737, %v735
    %v790 = vpack.c.b16 %v738, %v736
    %v791 = vpack.c.b16 %v741, %v739
    %v792 = vpack.c.b16 %v742, %v740
    %v793 = vpack.c.b16 %v745, %v743
    %v794 = vpack.c.b16 %v746, %v744
    %v795 = vpack.c.b16 %v749, %v747
    %v796 = vpack.c.b16 %v750, %v748
    %v797 = vpack.c.b16 %v753, %v751
    %v798 = vpack.c.b16 %v754, %v752
    %v799 = vpack.c.b16 %v757, %v755
    %v800 = vpack.c.b16 %v758, %v756
    %v801 = vpack.c.b16 %v761, %v759
    %v802 = vpack.c.b16 %v762, %v760
    %v803 = vpack.c.b16 %v765, %v763
    %v804 = vpack.c.b16 %v766, %v764
    %v805 = vpack.c.b16 %v769, %v767
    %v806 = vpack.c.b16 %v770, %v768
    %v807 = vpack.c.b16 %v773, %v771
    %v808 = vpack.c.b16 %v774, %v772
    %v809 = vpack.c.b16 %v777, %v775
    %v810 = vpack.c.b16 %v778, %v776
    %843 = vmatprep.subr.bf16.mxu0 %v794
    %844 = vmatpush1.bf16.msra.mxu0 %v793
    %845 = vmatprep.subr.bf16.mxu0 %v792
    %846 = vmatpush1.bf16.msra.mxu0 %v791
    %847 = vmatprep.subr.bf16.mxu0 %v790
    %848 = vmatpush1.bf16.msra.mxu0 %v789
    %849 = vmatprep.subr.bf16.mxu0 %v788
    %850 = vmatpush1.bf16.msra.mxu0 %v787
    %851 = vmatprep.subr.bf16.mxu0 %v786
    %852 = vmatpush1.bf16.msra.mxu0 %v785
    %853 = vmatprep.subr.bf16.mxu0 %v784
    %854 = vmatpush1.bf16.msra.mxu0 %v783
    %855 = vmatprep.subr.bf16.mxu0 %v782
    %856 = vmatpush1.bf16.msra.mxu0 %v781
    %857 = vmatprep.subr.bf16.mxu0 %v780
    %858 = vmatpush1.bf16.msra.mxu0 %v779
    %859 = vmatprep.subr.bf16.mxu0 %v810
    %860 = vmatpush2.bf16.msra.mxu0 %v809
    %861 = vmatprep.subr.bf16.mxu0 %v808
    %862 = vmatpush2.bf16.msra.mxu0 %v807
    %863 = vmatprep.subr.bf16.mxu0 %v806
    %864 = vmatpush2.bf16.msra.mxu0 %v805
    %865 = vmatprep.subr.bf16.mxu0 %v804
    %866 = vmatpush2.bf16.msra.mxu0 %v803
    %867 = vmatprep.subr.bf16.mxu0 %v802
    %868 = vmatpush2.bf16.msra.mxu0 %v801
    %869 = vmatprep.subr.bf16.mxu0 %v800
    %870 = vmatpush2.bf16.msra.mxu0 %v799
    %871 = vmatprep.subr.bf16.mxu0 %v798
    %872 = vmatpush2.bf16.msra.mxu0 %v797
    %873 = vmatprep.subr.bf16.mxu0 %v796
    %874 = vmatpush2.bf16.msra.mxu0 %v795
    %875 = vmatprep.mubr.bf16.mxu0 %v638
    %876 = vmatmul.mubr.bf16.gmra.mxu0 %v637
    %v877 = vpop.f32.mrf.mxu0
    %v878 = vadd.f32 %v676, %v877
    %v879 = vpop.f32.mrf.mxu0
    %v880 = vadd.f32 %v680, %v879
    %v881 = vpop.f32.mrf.mxu0
    %v882 = vadd.f32 %v676, %v881
    %v883 = vpop.f32.mrf.mxu0
    %v884 = vadd.f32 %v680, %v883
    %885 = vdwg.mxu0
    %v886 = vmul.f32 %v880, 0.5
    %v887 = vmul.f32 %v884, 0.5
    %v888 = vmul.f32 %v886, 1.442695
    %v889 = vpow.pop %v888
    %v890 = vmul.f32 %v887, 1.442695
    %v891 = vpow.pop %v890
    %v892 = vld [vmem:[%s1] sm:$0xf]
    %v893 = vld [vmem:[%s1 + $0x4] sm:$0xf]
    %v894 = vunpack.c.l.bf16 %v892
    %v895 = vunpack.c.l.bf16 %v893
    %v896 = vmul.f32 %v894, %v889
    %v897 = vmul.f32 %v895, %v891
    %v898 = vadd.f32 %v878, %v896
    %v899 = vadd.f32 %v882, %v897
    %v900 = vpack.c.bf16 %v899, %v898
    %v901 = vld [vmem:[#allocation7] sm:$0xff]
    %v902 = vld [vmem:[#allocation7 + $0x8] sm:$0xff]
    %v903 = vld [vmem:[#allocation7 + $0x10] sm:$0xff]
    %v904 = vld [vmem:[#allocation7 + $0x18] sm:$0xff]
    %v905 = vld [vmem:[#allocation7 + $0x20] sm:$0xff]
    %v906 = vld [vmem:[#allocation7 + $0x28] sm:$0xff]
    %v907 = vld [vmem:[#allocation7 + $0x30] sm:$0xff]
    %v908 = vld [vmem:[#allocation7 + $0x38] sm:$0xff]
    %v909 = vld [vmem:[#allocation7 + $0x40] sm:$0xff]
    %v910 = vld [vmem:[#allocation7 + $0x48] sm:$0xff]
    %v911 = vld [vmem:[#allocation7 + $0x50] sm:$0xff]
    %v912 = vld [vmem:[#allocation7 + $0x58] sm:$0xff]
    %v913 = vld [vmem:[#allocation7 + $0x60] sm:$0xff]
    %v914 = vld [vmem:[#allocation7 + $0x68] sm:$0xff]
    %v915 = vld [vmem:[#allocation7 + $0x70] sm:$0xff]
    %v916 = vld [vmem:[#allocation7 + $0x78] sm:$0xff]
    %v917 = vlaneseq
    %v918 = vshrl.u32 %v917, 7
    %v919 = vsub.s32 2, %v918
    %v920 = vrot.slane %v109, %v919
    %v921 = vlaneseq
    %v922 = vshrl.u32 %v921, 7
    %v923 = vsub.s32 6, %v922
    %v924 = vrot.slane %v109, %v923
    %v927 = vlaneseq
    %v928 = vshrl.u32 %v927, 7
    %v929 = vsub.s32 2, %v928
    %v930 = vrot.slane %v920, %v929
    %v931 = vlaneseq
    %v932 = vshrl.u32 %v931, 7
    %v933 = vsub.s32 2, %v932
    %v934 = vrot.slane %v924, %v933
    %v951 = vunpack.c.l.b16 %v901
    %v952 = vunpack.c.h.b16 %v901
    %v953 = vunpack.c.l.b16 %v902
    %v954 = vunpack.c.h.b16 %v902
    %v955 = vunpack.c.l.b16 %v903
    %v956 = vunpack.c.h.b16 %v903
    %v957 = vunpack.c.l.b16 %v904
    %v958 = vunpack.c.h.b16 %v904
    %v959 = vunpack.c.l.b16 %v905
    %v960 = vunpack.c.h.b16 %v905
    %v961 = vunpack.c.l.b16 %v906
    %v962 = vunpack.c.h.b16 %v906
    %v963 = vunpack.c.l.b16 %v907
    %v964 = vunpack.c.h.b16 %v907
    %v965 = vunpack.c.l.b16 %v908
    %v966 = vunpack.c.h.b16 %v908
    %v967 = vunpack.c.l.b16 %v909
    %v968 = vunpack.c.h.b16 %v909
    %v969 = vunpack.c.l.b16 %v910
    %v970 = vunpack.c.h.b16 %v910
    %v971 = vunpack.c.l.b16 %v911
    %v972 = vunpack.c.h.b16 %v911
    %v973 = vunpack.c.l.b16 %v912
    %v974 = vunpack.c.h.b16 %v912
    %v975 = vunpack.c.l.b16 %v913
    %v976 = vunpack.c.h.b16 %v913
    %v977 = vunpack.c.l.b16 %v914
    %v978 = vunpack.c.h.b16 %v914
    %v979 = vunpack.c.l.b16 %v915
    %v980 = vunpack.c.h.b16 %v915
    %v981 = vunpack.c.l.b16 %v916
    %v982 = vunpack.c.h.b16 %v916
    %v983 = vpack.c.b16 %v953, %v951
    %v984 = vpack.c.b16 %v954, %v952
    %v985 = vpack.c.b16 %v957, %v955
    %v986 = vpack.c.b16 %v958, %v956
    %v987 = vpack.c.b16 %v961, %v959
    %v988 = vpack.c.b16 %v962, %v960
    %v989 = vpack.c.b16 %v965, %v963
    %v990 = vpack.c.b16 %v966, %v964
    %v991 = vpack.c.b16 %v969, %v967
    %v992 = vpack.c.b16 %v970, %v968
    %v993 = vpack.c.b16 %v973, %v971
    %v994 = vpack.c.b16 %v974, %v972
    %v995 = vpack.c.b16 %v977, %v975
    %v996 = vpack.c.b16 %v978, %v976
    %v997 = vpack.c.b16 %v981, %v979
    %v998 = vpack.c.b16 %v982, %v980
    %1015 = vmatprep.subr.bf16.mxu0 %v998
    %1016 = vmatpush1.bf16.msra.mxu0 %v997
    %1017 = vmatprep.subr.bf16.mxu0 %v996
    %1018 = vmatpush1.bf16.msra.mxu0 %v995
    %1019 = vmatprep.subr.bf16.mxu0 %v994
    %1020 = vmatpush1.bf16.msra.mxu0 %v993
    %1021 = vmatprep.subr.bf16.mxu0 %v992
    %1022 = vmatpush1.bf16.msra.mxu0 %v991
    %1023 = vmatprep.subr.bf16.mxu0 %v990
    %1024 = vmatpush1.bf16.msra.mxu0 %v989
    %1025 = vmatprep.subr.bf16.mxu0 %v988
    %1026 = vmatpush1.bf16.msra.mxu0 %v987
    %1027 = vmatprep.subr.bf16.mxu0 %v986
    %1028 = vmatpush1.bf16.msra.mxu0 %v985
    %1029 = vmatprep.subr.bf16.mxu0 %v984
    %1030 = vmatpush1.bf16.msra.mxu0 %v983
    %1031 = vmatprep.subr.bf16.mxu0 0
    %1032 = vmatpush2.bf16.msra.mxu0 0
    %1033 = vmatprep.subr.bf16.mxu0 0
    %1034 = vmatpush2.bf16.msra.mxu0 0
    %1035 = vmatprep.subr.bf16.mxu0 0
    %1036 = vmatpush2.bf16.msra.mxu0 0
    %1037 = vmatprep.subr.bf16.mxu0 0
    %1038 = vmatpush2.bf16.msra.mxu0 0
    %1039 = vmatprep.subr.bf16.mxu0 0
    %1040 = vmatpush2.bf16.msra.mxu0 0
    %1041 = vmatprep.subr.bf16.mxu0 0
    %1042 = vmatpush2.bf16.msra.mxu0 0
    %1043 = vmatprep.subr.bf16.mxu0 0
    %1044 = vmatpush2.bf16.msra.mxu0 0
    %1045 = vmatprep.subr.bf16.mxu0 0
    %1046 = vmatpush2.bf16.msra.mxu0 0
    %1047 = vmatprep.mubr.bf16.mxu0 0
    %1048 = vmatmul.mubr.bf16.gmra.mxu0 %v900
    %v1049 = vpop.f32.mrf.mxu0
    %v1050 = vadd.f32 %v930, %v1049
    %v1051 = vpop.f32.mrf.mxu0
    %v1052 = vadd.f32 %v934, %v1051
    %v1053 = vpop.f32.mrf.mxu0
    %v1054 = vadd.f32 %v930, %v1053
    %v1055 = vpop.f32.mrf.mxu0
    %v1056 = vadd.f32 %v934, %v1055
    %1057 = vdwg.mxu0
    %v1058 = vmax.f32 %v1050, 0.0
    %v1059 = vmax.f32 %v1052, 0.0
    %v1060 = vmax.f32 %v1054, 0.0
    %v1061 = vmax.f32 %v1056, 0.0
    %v1062 = vpack.c.bf16 %v1060, %v1058
    %v1063 = vpack.c.bf16 %v1061, %v1059
    %v1064 = vld [vmem:[#allocation9] sm:$0xff]
    %v1065 = vld [vmem:[#allocation9 + $0x8] sm:$0xff]
    %v1066 = vld [vmem:[#allocation9 + $0x10] sm:$0xff]
    %v1067 = vld [vmem:[#allocation9 + $0x18] sm:$0xff]
    %v1068 = vld [vmem:[#allocation9 + $0x20] sm:$0xff]
    %v1069 = vld [vmem:[#allocation9 + $0x28] sm:$0xff]
    %v1070 = vld [vmem:[#allocation9 + $0x30] sm:$0xff]
    %v1071 = vld [vmem:[#allocation9 + $0x38] sm:$0xff]
    %v1072 = vld [vmem:[#allocation9 + $0x40] sm:$0xff]
    %v1073 = vld [vmem:[#allocation9 + $0x48] sm:$0xff]
    %v1074 = vld [vmem:[#allocation9 + $0x50] sm:$0xff]
    %v1075 = vld [vmem:[#allocation9 + $0x58] sm:$0xff]
    %v1076 = vld [vmem:[#allocation9 + $0x60] sm:$0xff]
    %v1077 = vld [vmem:[#allocation9 + $0x68] sm:$0xff]
    %v1078 = vld [vmem:[#allocation9 + $0x70] sm:$0xff]
    %v1079 = vld [vmem:[#allocation9 + $0x78] sm:$0xff]
    %v1080 = vld [vmem:[#allocation9 + $0x80] sm:$0xff]
    %v1081 = vld [vmem:[#allocation9 + $0x88] sm:$0xff]
    %v1082 = vld [vmem:[#allocation9 + $0x90] sm:$0xff]
    %v1083 = vld [vmem:[#allocation9 + $0x98] sm:$0xff]
    %v1084 = vld [vmem:[#allocation9 + $0xa0] sm:$0xff]
    %v1085 = vld [vmem:[#allocation9 + $0xa8] sm:$0xff]
    %v1086 = vld [vmem:[#allocation9 + $0xb0] sm:$0xff]
    %v1087 = vld [vmem:[#allocation9 + $0xb8] sm:$0xff]
    %v1088 = vld [vmem:[#allocation9 + $0xc0] sm:$0xff]
    %v1089 = vld [vmem:[#allocation9 + $0xc8] sm:$0xff]
    %v1090 = vld [vmem:[#allocation9 + $0xd0] sm:$0xff]
    %v1091 = vld [vmem:[#allocation9 + $0xd8] sm:$0xff]
    %v1092 = vld [vmem:[#allocation9 + $0xe0] sm:$0xff]
    %v1093 = vld [vmem:[#allocation9 + $0xe8] sm:$0xff]
    %v1094 = vld [vmem:[#allocation9 + $0xf0] sm:$0xff]
    %v1095 = vld [vmem:[#allocation9 + $0xf8] sm:$0xff]
    %v1096 = vld [vmem:[%s9] sm:$0x3]
    %v1098 = vlaneseq
    %v1099 = vshrl.u32 %v1098, 7
    %v1100 = vsub.s32 0, %v1099
    %v1101 = vrot.slane %v1096, %v1100
    %v1102 = vlaneseq
    %v1103 = vshrl.u32 %v1102, 7
    %v1104 = vsub.s32 1, %v1103
    %v1105 = vrot.slane %v1096, %v1104
    %v1140 = vunpack.c.l.b16 %v1064
    %v1141 = vunpack.c.h.b16 %v1064
    %v1142 = vunpack.c.l.b16 %v1065
    %v1143 = vunpack.c.h.b16 %v1065
    %v1144 = vunpack.c.l.b16 %v1066
    %v1145 = vunpack.c.h.b16 %v1066
    %v1146 = vunpack.c.l.b16 %v1067
    %v1147 = vunpack.c.h.b16 %v1067
    %v1148 = vunpack.c.l.b16 %v1068
    %v1149 = vunpack.c.h.b16 %v1068
    %v1150 = vunpack.c.l.b16 %v1069
    %v1151 = vunpack.c.h.b16 %v1069
    %v1152 = vunpack.c.l.b16 %v1070
    %v1153 = vunpack.c.h.b16 %v1070
    %v1154 = vunpack.c.l.b16 %v1071
    %v1155 = vunpack.c.h.b16 %v1071
    %v1156 = vunpack.c.l.b16 %v1072
    %v1157 = vunpack.c.h.b16 %v1072
    %v1158 = vunpack.c.l.b16 %v1073
    %v1159 = vunpack.c.h.b16 %v1073
    %v1160 = vunpack.c.l.b16 %v1074
    %v1161 = vunpack.c.h.b16 %v1074
    %v1162 = vunpack.c.l.b16 %v1075
    %v1163 = vunpack.c.h.b16 %v1075
    %v1164 = vunpack.c.l.b16 %v1076
    %v1165 = vunpack.c.h.b16 %v1076
    %v1166 = vunpack.c.l.b16 %v1077
    %v1167 = vunpack.c.h.b16 %v1077
    %v1168 = vunpack.c.l.b16 %v1078
    %v1169 = vunpack.c.h.b16 %v1078
    %v1170 = vunpack.c.l.b16 %v1079
    %v1171 = vunpack.c.h.b16 %v1079
    %v1172 = vunpack.c.l.b16 %v1080
    %v1173 = vunpack.c.h.b16 %v1080
    %v1174 = vunpack.c.l.b16 %v1081
    %v1175 = vunpack.c.h.b16 %v1081
    %v1176 = vunpack.c.l.b16 %v1082
    %v1177 = vunpack.c.h.b16 %v1082
    %v1178 = vunpack.c.l.b16 %v1083
    %v1179 = vunpack.c.h.b16 %v1083
    %v1180 = vunpack.c.l.b16 %v1084
    %v1181 = vunpack.c.h.b16 %v1084
    %v1182 = vunpack.c.l.b16 %v1085
    %v1183 = vunpack.c.h.b16 %v1085
    %v1184 = vunpack.c.l.b16 %v1086
    %v1185 = vunpack.c.h.b16 %v1086
    %v1186 = vunpack.c.l.b16 %v1087
    %v1187 = vunpack.c.h.b16 %v1087
    %v1188 = vunpack.c.l.b16 %v1088
    %v1189 = vunpack.c.h.b16 %v1088
    %v1190 = vunpack.c.l.b16 %v1089
    %v1191 = vunpack.c.h.b16 %v1089
    %v1192 = vunpack.c.l.b16 %v1090
    %v1193 = vunpack.c.h.b16 %v1090
    %v1194 = vunpack.c.l.b16 %v1091
    %v1195 = vunpack.c.h.b16 %v1091
    %v1196 = vunpack.c.l.b16 %v1092
    %v1197 = vunpack.c.h.b16 %v1092
    %v1198 = vunpack.c.l.b16 %v1093
    %v1199 = vunpack.c.h.b16 %v1093
    %v1200 = vunpack.c.l.b16 %v1094
    %v1201 = vunpack.c.h.b16 %v1094
    %v1202 = vunpack.c.l.b16 %v1095
    %v1203 = vunpack.c.h.b16 %v1095
    %v1204 = vpack.c.b16 %v1142, %v1140
    %v1205 = vpack.c.b16 %v1143, %v1141
    %v1206 = vpack.c.b16 %v1146, %v1144
    %v1207 = vpack.c.b16 %v1147, %v1145
    %v1208 = vpack.c.b16 %v1150, %v1148
    %v1209 = vpack.c.b16 %v1151, %v1149
    %v1210 = vpack.c.b16 %v1154, %v1152
    %v1211 = vpack.c.b16 %v1155, %v1153
    %v1212 = vpack.c.b16 %v1158, %v1156
    %v1213 = vpack.c.b16 %v1159, %v1157
    %v1214 = vpack.c.b16 %v1162, %v1160
    %v1215 = vpack.c.b16 %v1163, %v1161
    %v1216 = vpack.c.b16 %v1166, %v1164
    %v1217 = vpack.c.b16 %v1167, %v1165
    %v1218 = vpack.c.b16 %v1170, %v1168
    %v1219 = vpack.c.b16 %v1171, %v1169
    %v1220 = vpack.c.b16 %v1174, %v1172
    %v1221 = vpack.c.b16 %v1175, %v1173
    %v1222 = vpack.c.b16 %v1178, %v1176
    %v1223 = vpack.c.b16 %v1179, %v1177
    %v1224 = vpack.c.b16 %v1182, %v1180
    %v1225 = vpack.c.b16 %v1183, %v1181
    %v1226 = vpack.c.b16 %v1186, %v1184
    %v1227 = vpack.c.b16 %v1187, %v1185
    %v1228 = vpack.c.b16 %v1190, %v1188
    %v1229 = vpack.c.b16 %v1191, %v1189
    %v1230 = vpack.c.b16 %v1194, %v1192
    %v1231 = vpack.c.b16 %v1195, %v1193
    %v1232 = vpack.c.b16 %v1198, %v1196
    %v1233 = vpack.c.b16 %v1199, %v1197
    %v1234 = vpack.c.b16 %v1202, %v1200
    %v1235 = vpack.c.b16 %v1203, %v1201
    %1268 = vmatprep.subr.bf16.mxu0 %v1219
    %1269 = vmatpush1.bf16.msra.mxu0 %v1218
    %1270 = vmatprep.subr.bf16.mxu0 %v1217
    %1271 = vmatpush1.bf16.msra.mxu0 %v1216
    %1272 = vmatprep.subr.bf16.mxu0 %v1215
    %1273 = vmatpush1.bf16.msra.mxu0 %v1214
    %1274 = vmatprep.subr.bf16.mxu0 %v1213
    %1275 = vmatpush1.bf16.msra.mxu0 %v1212
    %1276 = vmatprep.subr.bf16.mxu0 %v1211
    %1277 = vmatpush1.bf16.msra.mxu0 %v1210
    %1278 = vmatprep.subr.bf16.mxu0 %v1209
    %1279 = vmatpush1.bf16.msra.mxu0 %v1208
    %1280 = vmatprep.subr.bf16.mxu0 %v1207
    %1281 = vmatpush1.bf16.msra.mxu0 %v1206
    %1282 = vmatprep.subr.bf16.mxu0 %v1205
    %1283 = vmatpush1.bf16.msra.mxu0 %v1204
    %1284 = vmatprep.subr.bf16.mxu0 %v1235
    %1285 = vmatpush2.bf16.msra.mxu0 %v1234
    %1286 = vmatprep.subr.bf16.mxu0 %v1233
    %1287 = vmatpush2.bf16.msra.mxu0 %v1232
    %1288 = vmatprep.subr.bf16.mxu0 %v1231
    %1289 = vmatpush2.bf16.msra.mxu0 %v1230
    %1290 = vmatprep.subr.bf16.mxu0 %v1229
    %1291 = vmatpush2.bf16.msra.mxu0 %v1228
    %1292 = vmatprep.subr.bf16.mxu0 %v1227
    %1293 = vmatpush2.bf16.msra.mxu0 %v1226
    %1294 = vmatprep.subr.bf16.mxu0 %v1225
    %1295 = vmatpush2.bf16.msra.mxu0 %v1224
    %1296 = vmatprep.subr.bf16.mxu0 %v1223
    %1297 = vmatpush2.bf16.msra.mxu0 %v1222
    %1298 = vmatprep.subr.bf16.mxu0 %v1221
    %1299 = vmatpush2.bf16.msra.mxu0 %v1220
    %1300 = vmatprep.mubr.bf16.mxu0 %v1063
    %1301 = vmatmul.mubr.bf16.gmra.mxu0 %v1062
    %v1302 = vpop.f32.mrf.mxu0
    %v1303 = vadd.f32 %v1101, %v1302
    %v1304 = vpop.f32.mrf.mxu0
    %v1305 = vadd.f32 %v1105, %v1304
    %v1306 = vpop.f32.mrf.mxu0
    %v1307 = vadd.f32 %v1101, %v1306
    %v1308 = vpop.f32.mrf.mxu0
    %v1309 = vadd.f32 %v1105, %v1308
    %1310 = vdwg.mxu0
    %v1311 = vxor.u32 %v1303, 2147483648
    %v1312 = vxor.u32 %v1305, 2147483648
    %v1313 = vxor.u32 %v1307, 2147483648
    %v1314 = vxor.u32 %v1309, 2147483648
    %v1315 = vmul.f32 %v1311, 1.442695
    %v1316 = vpow.pop %v1315
    %v1317 = vmul.f32 %v1312, 1.442695
    %v1318 = vpow.pop %v1317
    %v1319 = vmul.f32 %v1313, 1.442695
    %v1320 = vpow.pop %v1319
    %v1321 = vmul.f32 %v1314, 1.442695
    %v1322 = vpow.pop %v1321
    %v1323 = vadd.f32 %v1316, 1.0
    %v1324 = vadd.f32 %v1318, 1.0
    %v1325 = vadd.f32 %v1320, 1.0
    %v1326 = vadd.f32 %v1322, 1.0
    %v1327 = vrcp.pop %v1323
    %v1328 = vmul.f32 1.0, %v1327
    %v1329 = vrcp.pop %v1324
    %v1330 = vmul.f32 1.0, %v1329
    %v1331 = vrcp.pop %v1325
    %v1332 = vmul.f32 1.0, %v1331
    %v1333 = vrcp.pop %v1326
    %v1334 = vmul.f32 1.0, %v1333
    %v1335 = vpack.c.bf16 %v882, %v878
    %v1337 = vunpack.c.l.b16 %v1335
    %v1338 = vunpack.c.h.b16 %v1335
    %v1339 = vpack.c.b16 %v1337, %v1337
    %v1340 = vpack.c.b16 %v1338, %v1338
    %1343 = vst [vmem:[%s10] sm:$0xf] %v1339
    %1344 = vst [vmem:[%s10 + $0x4] sm:$0xf] %v1340
    %v1345 = vpack.c.bf16 %v1332, %v1328
    %v1346 = vpack.c.bf16 %v1334, %v1330
    %v1349 = vunpack.c.l.b16 %v1345
    %v1350 = vunpack.c.l.b16 %v1346
    %v1351 = vunpack.c.h.b16 %v1345
    %v1352 = vunpack.c.h.b16 %v1346
    %v1353 = vpack.c.b16 %v1350, %v1349
    %v1354 = vpack.c.b16 %v1352, %v1351
    %1357 = vst [vmem:[%s11] sm:$0xff] %v1353
    %1358 = vst [vmem:[%s11 + $0x8] sm:$0xff] %v1354
    %v1359 = vadd.f32 %v880, 1.0
    %v1360 = vadd.f32 %v884, 1.0
    %v1361 = vmul.f32 %v878, %v878
    %v1362 = vmul.f32 %v882, %v882
    %v1363 = vsub.f32 %v1359, %v1361
    %v1364 = vsub.f32 %v1360, %v1362
    %v1365 = vmul.f32 %v889, %v889
    %v1366 = vmul.f32 %v891, %v891
    %v1367 = vsub.f32 %v1363, %v1365
    %v1368 = vsub.f32 %v1364, %v1366
    %1369 = vadd.xlane.f32.xlu0 %v1367
    %v1370 = vpop.xlane.xlu0 %1369
    %1371 = vadd.xlane.f32.xlu0 %v1368
    %v1372 = vpop.xlane.xlu0 %1371
    %p1373 = scmp.ne.s32.totalorder 0, 0
    // Predicated region
    $region62: #{_vae_forward_impl.1} parent=1 // pred_check
      %p1374 = pneg %p1373
    $region63: #{_vae_forward_impl.1} parent=1 // pred_check_branch
      %1376 = sbr.rel (%p1374) target = $region65
    $region64: #{_vae_forward_impl.1} parent=1 // pred_region
      %vm1377 = vcmask 7168
      %v1378 = vsel %vm1377, %v1370, 0.0
      %v1379 = vsel %vm1377, %v1372, 0.0
      %v1380 = vadd.f32 %v1378, %v1379
      %1381 = vadd.xlane.f32.xlu0 %v1380
      %v1382 = vpop.xlane.xlu0 %1381
      %v1383 = vrot.slane %v1382, 4
      %v1384 = vadd.f32 %v1382, %v1383
      %v1385 = vrot.slane %v1384, 2
      %v1386 = vadd.f32 %v1384, %v1385
      %v1387 = vrot.slane %v1386, 1
      %v1388 = vadd.f32 %v1386, %v1387
      %s1389 = vtos %v1388
      %s1390 = smul.f32 %s1389, -0.5
      %v1391 = vstv %s1390
      %1392 = vst [vmem:[%s12] sm:$0xff] %v1391
    $region65: #{_vae_forward_impl.1} parent=1 // pred_fallthru
      _
    %p1393 = scmp.eq.s32.totalorder 0, 0
    // Predicated region
    $region66: #{_vae_forward_impl.1} parent=1 // pred_check
      %p1394 = pneg %p1393
    $region67: #{_vae_forward_impl.1} parent=1 // pred_check_branch
      %1396 = sbr.rel (%p1394) target = $region69
    $region68: #{_vae_forward_impl.1} parent=1 // pred_region
      %v1397 = vlaneseq
      %v1398 = vshrl.u32 %v1397, 7
      %v1399 = vadd.s32 %v1398, 8
      %vm1400 = vcmp.lt.s32.totalorder %v1398, 8
      %vm1401 = vcmp.lt.s32.totalorder %v1399, 8
      %v1402 = vsel %vm1400, %v1370, 0.0
      %v1403 = vsel %vm1401, %v1372, 0.0
      %vm1404 = vcmask 7168
      %v1405 = vsel %vm1404, %v1402, 0.0
      %v1406 = vsel %vm1404, %v1403, 0.0
      %v1407 = vadd.f32 %v1405, %v1406
      %1408 = vadd.xlane.f32.xlu0 %v1407
      %v1409 = vpop.xlane.xlu0 %1408
      %v1410 = vrot.slane %v1409, 4
      %v1411 = vadd.f32 %v1409, %v1410
      %v1412 = vrot.slane %v1411, 2
      %v1413 = vadd.f32 %v1411, %v1412
      %v1414 = vrot.slane %v1413, 1
      %v1415 = vadd.f32 %v1413, %v1414
      %s1416 = vtos %v1415
      %s1417 = smul.f32 %s1416, -0.5
      %v1418 = vstv %s1417
      %1419 = vst [vmem:[%s12] sm:$0xff] %v1418
    $region69: #{_vae_forward_impl.1} parent=1 // pred_fallthru
      _
    // Predicated region
    $region70: #{_vae_forward_impl.1} parent=1 // pred_check
      _
    $region71: #{_vae_forward_impl.1} parent=1 // pred_check_branch
      %1421 = sbr.rel (0) target = $region73
    $region72: #{_vae_forward_impl.1} parent=1 // pred_region
      _
    $region73: #{_vae_forward_impl.1} parent=1 // pred_fallthru
      _
    // Predicated region
    $region74: #{_vae_forward_impl.1} parent=1 // pred_check
      _
    $region75: #{_vae_forward_impl.1} parent=1 // pred_check_branch
      %1423 = sbr.rel (0) target = $region77
    $region76: #{_vae_forward_impl.1} parent=1 // pred_region
      _
    $region77: #{_vae_forward_impl.1} parent=1 // pred_fallthru
      _
    // Predicated region
    $region78: #{_vae_forward_impl.1} parent=1 // pred_check
      _
    $region79: #{_vae_forward_impl.1} parent=1 // pred_check_branch
      %1425 = sbr.rel (0) target = $region81
    $region80: #{_vae_forward_impl.1} parent=1 // pred_region
      _
    $region81: #{_vae_forward_impl.1} parent=1 // pred_fallthru
      _
    // Predicated region
    $region82: #{_vae_forward_impl.1} parent=1 // pred_check
      _
    $region83: #{_vae_forward_impl.1} parent=1 // pred_check_branch
      %1427 = sbr.rel (0) target = $region85
    $region84: #{_vae_forward_impl.1} parent=1 // pred_region
      _
    $region85: #{_vae_forward_impl.1} parent=1 // pred_fallthru
      _
    // Predicated region
    $region86: #{_vae_forward_impl.1} parent=1 // pred_check
      _
    $region87: #{_vae_forward_impl.1} parent=1 // pred_check_branch
      %1429 = sbr.rel (0) target = $region89
    $region88: #{_vae_forward_impl.1} parent=1 // pred_region
      _
    $region89: #{_vae_forward_impl.1} parent=1 // pred_fallthru
      _
    // Predicated region
    $region90: #{_vae_forward_impl.1} parent=1 // pred_check
      _
    $region91: #{_vae_forward_impl.1} parent=1 // pred_check_branch
      %1431 = sbr.rel (0) target = $region93
    $region92: #{_vae_forward_impl.1} parent=1 // pred_region
      _
    $region93: #{_vae_forward_impl.1} parent=1 // pred_fallthru
      _
    %1432 = vsyncpa [#allocation3], 1
    %1433 = vsyncpa [#allocation5], 1
    %1434 = vsyncpa [#allocation8], 1

</llo_original>
